<compile_context>
chip_gen: v7x
topology: tpu7x:2x2x1
jax: 0.10.0
libtpu: 0.0.40
codegen_flags: <defaults>
</compile_context>

<pallas_src>
import functools
import numpy as np
import jax
import jax.numpy as jnp
from jax.experimental import pallas as pl
from jax.experimental.pallas import tpu as pltpu

# ---------------- configuration (small, consistent with module) --------------
DIM = 32            # dim == out_dim
NUM_HEADS = 4
WINDOW = 4
MLP_RATIO = 4.0
DEPTH = 2           # block 0: shift=0, block 1: shift=WINDOW//2
RES = (8, 8)        # input_resolution (H, W)
BATCH = 2


# ---------------------------- helpers (host-side) ------------------------------
def window_partition(x, ws):
    B, H, W, C = x.shape
    x = x.reshape(B, H // ws, ws, W // ws, ws, C)
    return x.transpose(0, 1, 3, 2, 4, 5).reshape(-1, ws, ws, C)


def window_reverse(windows, ws, H, W):
    B = windows.shape[0] // (H * W // ws // ws)
    x = windows.reshape(B, H // ws, W // ws, ws, ws, -1)
    return x.transpose(0, 1, 3, 2, 4, 5).reshape(B, H, W, -1)


def _np_window_partition(x, ws):
    B, H, W, C = x.shape
    x = x.reshape(B, H // ws, ws, W // ws, ws, C)
    return x.transpose(0, 1, 3, 2, 4, 5).reshape(-1, ws, ws, C)


def compute_attn_mask_np(H, W, ws, ss):
    """(nW, N, N) 0 / -100 mask, exactly as in SwinTransformerBlock.__init__."""
    img_mask = np.zeros((1, H, W, 1), dtype=np.float32)
    h_slices = (slice(0, -ws), slice(-ws, -ss), slice(-ss, None))
    w_slices = (slice(0, -ws), slice(-ws, -ss), slice(-ss, None))
    cnt = 0
    for h in h_slices:
        for w in w_slices:
            img_mask[:, h, w, :] = cnt
            cnt += 1
    mw = _np_window_partition(img_mask, ws).reshape(-1, ws * ws)
    am = mw[:, None, :] - mw[:, :, None]
    am = np.where(am != 0, -100.0, 0.0).astype(np.float32)
    return am


def relative_position_index_np(ws):
    coords = np.stack(np.meshgrid(np.arange(ws), np.arange(ws), indexing="ij"))
    cf = coords.reshape(2, -1)                      # (2, N)
    rel = cf[:, :, None] - cf[:, None, :]           # (2, N, N)
    rel = rel.transpose(1, 2, 0).astype(np.int64)
    rel[:, :, 0] += ws - 1
    rel[:, :, 1] += ws - 1
    rel[:, :, 0] *= 2 * ws - 1
    return rel.sum(-1)                              # (N, N)


def build_window_perm(B, H, W, ws, ss):
    """Static token permutation: windowed order (roll by -ss + window_partition)
    -> source index in natural (B, H*W) row-major order; plus its inverse."""
    perm = np.empty((B * H * W,), dtype=np.int32)
    t = 0
    for b in range(B):
        for wh in range(H // ws):
            for ww in range(W // ws):
                for r in range(ws):
                    for c in range(ws):
                        sh = (wh * ws + r + ss) % H
                        sw = (ww * ws + c + ss) % W
                        perm[t] = b * H * W + sh * W + sw
                        t += 1
    inv = np.argsort(perm).astype(np.int32)          # perm[inv[i]] == i
    return perm, inv


# ------------------------------ fused Pallas kernel ----------------------------
def _swin_block_kernel(x_ref, g1_ref, b1_ref, wqkv_ref, bqkv_ref, bias_ref,
                       wproj_ref, bproj_ref, g2_ref, b2_ref,
                       w1_ref, bm1_ref, w2_ref, bm2_ref, o_ref, *, num_heads):
    x = x_ref[...]                                   # (T, C) tokens, window-ordered
    T, C = x.shape
    hd = C // num_heads

    # ---- LayerNorm 1 (eps = 1e-5, PyTorch default) ----
    mu = jnp.mean(x, axis=-1, keepdims=True)
    var = jnp.mean(jnp.square(x - mu), axis=-1, keepdims=True)
    xn = (x - mu) * jax.lax.rsqrt(var + 1e-5) * g1_ref[...] + b1_ref[...]

    # ---- QKV projection (q-scale pre-folded): one (T,C)@(C,3C) matmul ----
    qkv = jnp.dot(xn, wqkv_ref[...], preferred_element_type=jnp.float32) + bqkv_ref[...]

    # ---- multi-head window attention; window structure via block-diag bias ----
    acc = jnp.zeros((T, C), jnp.float32)
    for h in range(num_heads):
        qh = qkv[:, h * hd:(h + 1) * hd]
        kh = qkv[:, C + h * hd:C + (h + 1) * hd]
        vh = qkv[:, 2 * C + h * hd:2 * C + (h + 1) * hd]
        s = jax.lax.dot_general(qh, kh, (((1,), (1,)), ((), ())),
                                preferred_element_type=jnp.float32)   # (T, T)
        s = s + bias_ref[h]                          # rel-bias + mask + (-1e9 off-window)
        s = s - jnp.max(s, axis=-1, keepdims=True)
        e = jnp.exp(s)                               # off-window terms underflow to 0
        pattn = e * pl.reciprocal(jnp.sum(e, axis=-1, keepdims=True), approx=True)
        oh = jnp.dot(pattn, vh, preferred_element_type=jnp.float32)   # (T, hd)
        # accumulate the output projection per head (no concat / relayout)
        acc = acc + jnp.dot(oh, wproj_ref[h * hd:(h + 1) * hd, :],
                            preferred_element_type=jnp.float32)
    y = x + acc + bproj_ref[...]                     # residual (drop_path = Identity)

    # ---- LayerNorm 2 + MLP (exact GELU) + residual ----
    mu2 = jnp.mean(y, axis=-1, keepdims=True)
    var2 = jnp.mean(jnp.square(y - mu2), axis=-1, keepdims=True)
    yn = (y - mu2) * jax.lax.rsqrt(var2 + 1e-5) * g2_ref[...] + b2_ref[...]
    h1 = jnp.dot(yn, w1_ref[...], preferred_element_type=jnp.float32) + bm1_ref[...]
    h1 = 0.5 * h1 * (1.0 + jax.lax.erf(h1 * np.float32(1.0 / np.sqrt(2.0))))
    out = y + jnp.dot(h1, w2_ref[...], preferred_element_type=jnp.float32) + bm2_ref[...]
    o_ref[...] = out.astype(o_ref.dtype)


def swin_block_fused(xw, kp, num_heads):
    """One fused Swin block; xw is (B*L, C) tokens already in window order."""
    T, C = xw.shape
    kernel = functools.partial(_swin_block_kernel, num_heads=num_heads)
    vmem = pl.BlockSpec(memory_space=pltpu.MemorySpace.VMEM)   # whole-array blocks
    return pl.pallas_call(
        kernel,
        out_shape=jax.ShapeDtypeStruct((T, C), xw.dtype),
        in_specs=[vmem] * 14,
        out_specs=vmem,
    )(xw, kp["ln1_g"], kp["ln1_b"], kp["wqkv_s"], kp["bqkv_s"], kp["attn_bias"],
      kp["wproj"], kp["bproj"], kp["ln2_g"], kp["ln2_b"],
      kp["w1"], kp["b1"], kp["w2"], kp["b2"])


def encoder_basic_layer_pallas(x, kernel_params, num_heads):
    """downsample=None -> just the (fused) blocks, with 3 token permutations total."""
    B, L, C = x.shape
    xf = x.reshape(B * L, C)
    prev_inv = None
    for kp in kernel_params:
        gather = kp["perm"] if prev_inv is None else prev_inv[kp["perm"]]
        xf = jnp.take(xf, jnp.asarray(gather), axis=0)   # permute into window order
        xf = swin_block_fused(xf, kp, num_heads)
        prev_inv = kp["inv"]
    xf = jnp.take(xf, jnp.asarray(prev_inv), axis=0)     # back to natural order
    return xf.reshape(B, L, C)


# ------------------------------ parameter init --------------------------------
def init_block_params(key, C, num_heads, ws, mlp_ratio, res, shift):
    """Raw parameters, PyTorch-equivalent (weights stored transposed (in,out))."""
    Hd = int(C * mlp_ratio)
    N = ws * ws
    ks = jax.random.split(key, 8)
    table = 0.02 * jax.random.normal(ks[0], ((2 * ws - 1) ** 2, num_heads), jnp.float32)
    rel_idx = jnp.asarray(relative_position_index_np(ws))                 # (N, N)
    rel_bias = table[rel_idx.reshape(-1)].reshape(N, N, num_heads)
    rel_bias = jnp.transpose(rel_bias, (2, 0, 1))                         # (H, N, N)
    if shift > 0:
        mask = jnp.asarray(compute_attn_mask_np(res[0], res[1], ws, shift))
    else:
        mask = jnp.zeros((1, N, N), jnp.float32)
    return {
        "ln1_g": jnp.ones((C,), jnp.float32),
        "ln1_b": jnp.zeros((C,), jnp.float32),
        "wqkv": 0.02 * jax.random.normal(ks[1], (C, 3 * C), jnp.float32),  # W^T
        "bqkv": 0.02 * jax.random.normal(ks[2], (3 * C,), jnp.float32),
        "rel_bias": rel_bias,
        "mask": mask,
        "wproj": 0.02 * jax.random.normal(ks[3], (C, C), jnp.float32),     # W^T
        "bproj": 0.02 * jax.random.normal(ks[4], (C,), jnp.float32),
        "ln2_g": jnp.ones((C,), jnp.float32),
        "ln2_b": jnp.zeros((C,), jnp.float32),
        "w1": 0.02 * jax.random.normal(ks[5], (C, Hd), jnp.float32),       # W^T
        "b1": jnp.zeros((Hd,), jnp.float32),
        "w2": 0.02 * jax.random.normal(ks[6], (Hd, C), jnp.float32),       # W^T
        "b2": jnp.zeros((C,), jnp.float32),
    }


def prepare_kernel_params(p, B, res, num_heads, ws, ss):
    """Derive fused-kernel parameters: q-scale folded into Wqkv, combined
    block-diagonal bias (rel-pos + shift mask, -1e9 off-window), permutations."""
    H, W = res
    C = p["wproj"].shape[0]
    N = ws * ws
    nW = (H // ws) * (W // ws)
    T = B * H * W
    hd = C // num_heads
    scale = np.float32(hd ** (-0.5))

    wqkv = np.asarray(p["wqkv"]).copy()
    bqkv = np.asarray(p["bqkv"]).copy()
    wqkv[:, :C] *= scale                              # fold q scale into Q columns
    bqkv[:C] *= scale

    rel = np.asarray(p["rel_bias"])                   # (heads, N, N)
    if ss > 0:
        mask = np.asarray(p["mask"])                  # (nW, N, N)
    else:
        mask = np.zeros((nW, N, N), np.float32)       # no mask add needed; stays 0
    bias = np.full((num_heads, T, T), -1e9, dtype=np.float32)
    for w in range(B * nW):
        bias[:, w * N:(w + 1) * N, w * N:(w + 1) * N] = rel + mask[w % nW][None]

    perm, inv = build_window_perm(B, H, W, ws, ss)

    return {
        "ln1_g": jnp.asarray(p["ln1_g"])[None], "ln1_b": jnp.asarray(p["ln1_b"])[None],
        "wqkv_s": jnp.asarray(wqkv), "bqkv_s": jnp.asarray(bqkv)[None],
        "attn_bias": jnp.asarray(bias),
        "wproj": jnp.asarray(p["wproj"]), "bproj": jnp.asarray(p["bproj"])[None],
        "ln2_g": jnp.asarray(p["ln2_g"])[None], "ln2_b": jnp.asarray(p["ln2_b"])[None],
        "w1": jnp.asarray(p["w1"]), "b1": jnp.asarray(p["b1"])[None],
        "w2": jnp.asarray(p["w2"]), "b2": jnp.asarray(p["b2"])[None],
        "perm": perm, "inv": inv,
    }


# ------------------------------ pure-JAX reference -----------------------------
def _ln(x, g, b):
    mu = jnp.mean(x, axis=-1, keepdims=True)
    var = jnp.mean(jnp.square(x - mu), axis=-1, keepdims=True)
    return (x - mu) * jax.lax.rsqrt(var + 1e-5) * g + b


def ref_block(x, p, res, num_heads, ws, ss):
    H, W = res
    B, L, C = x.shape
    hd = C // num_heads
    shortcut = x
    xn = _ln(x, p["ln1_g"], p["ln1_b"])
    xr = xn.reshape(B, H, W, C)
    if ss > 0:
        xr = jnp.roll(xr, shift=(-ss, -ss), axis=(1, 2))
    xw = window_partition(xr, ws).reshape(-1, ws * ws, C)
    B_, N, _ = xw.shape
    qkv = xw @ p["wqkv"] + p["bqkv"]
    qkv = qkv.reshape(B_, N, 3, num_heads, hd).transpose(2, 0, 3, 1, 4)
    q, k, v = qkv[0], qkv[1], qkv[2]
    q = q * (hd ** -0.5)
    attn = jnp.einsum("bhnd,bhmd->bhnm", q, k)
    attn = attn + p["rel_bias"][None]
    if ss > 0:
        nW = p["mask"].shape[0]
        attn = attn.reshape(B_ // nW, nW, num_heads, N, N) + p["mask"][None, :, None]
        attn = attn.reshape(B_, num_heads, N, N)
    attn = jax.nn.softmax(attn, axis=-1)
    out = jnp.einsum("bhnm,bhmd->bhnd", attn, v).transpose(0, 2, 1, 3).reshape(B_, N, C)
    out = out @ p["wproj"] + p["bproj"]
    out = out.reshape(-1, ws, ws, C)
    xr = window_reverse(out, ws, H, W)
    if ss > 0:
        xr = jnp.roll(xr, shift=(ss, ss), axis=(1, 2))
    x = shortcut + xr.reshape(B, H * W, C)
    xn2 = _ln(x, p["ln2_g"], p["ln2_b"])
    h = xn2 @ p["w1"] + p["b1"]
    h = 0.5 * h * (1.0 + jax.lax.erf(h / np.sqrt(2.0)))
    x = x + (h @ p["w2"] + p["b2"])
    return x


# ------------------------------------ main -------------------------------------
if __name__ == "__main__":
    key = jax.random.PRNGKey(0)
    kx, kp = jax.random.split(key)
    B, (H, W), C = BATCH, RES, DIM
    x = jax.random.normal(kx, (B, H * W, C), dtype=jnp.float32)

    raw_params, kernel_params = [], []
    for i in range(DEPTH):
        ss = 0 if i % 2 == 0 else WINDOW // 2
        kp, kb = jax.random.split(kp)
        rp = init_block_params(kb, C, NUM_HEADS, WINDOW, MLP_RATIO, RES, ss)
        raw_params.append(rp)
        kernel_params.append(prepare_kernel_params(rp, B, RES, NUM_HEADS, WINDOW, ss))

    @jax.jit
    def run(xin):
        return encoder_basic_layer_pallas(xin, kernel_params, NUM_HEADS)

    out = jax.block_until_ready(run(x))

    # sanity check against a pure-JAX reference of the same math
    ref = x
    for i, p in enumerate(raw_params):
        ss = 0 if i % 2 == 0 else WINDOW // 2
        ref = ref_block(ref, p, RES, NUM_HEADS, WINDOW, ss)
    ref = jax.block_until_ready(ref)
    np.testing.assert_allclose(np.asarray(out), np.asarray(ref), rtol=2e-3, atol=2e-3)

    print("KERNEL_OK")
</pallas_src>

<mosaic_0001>
module attributes {stable_mosaic.version = 11 : i64} {
  func.func @_swin_block_kernel(%arg0: memref<128x32xf32, #tpu.memory_space<vmem>>, %arg1: memref<1x32xf32, #tpu.memory_space<vmem>>, %arg2: memref<1x32xf32, #tpu.memory_space<vmem>>, %arg3: memref<32x96xf32, #tpu.memory_space<vmem>>, %arg4: memref<1x96xf32, #tpu.memory_space<vmem>>, %arg5: memref<4x128x128xf32, #tpu.memory_space<vmem>>, %arg6: memref<32x32xf32, #tpu.memory_space<vmem>>, %arg7: memref<1x32xf32, #tpu.memory_space<vmem>>, %arg8: memref<1x32xf32, #tpu.memory_space<vmem>>, %arg9: memref<1x32xf32, #tpu.memory_space<vmem>>, %arg10: memref<32x128xf32, #tpu.memory_space<vmem>>, %arg11: memref<1x128xf32, #tpu.memory_space<vmem>>, %arg12: memref<128x32xf32, #tpu.memory_space<vmem>>, %arg13: memref<1x32xf32, #tpu.memory_space<vmem>>, %arg14: memref<128x32xf32, #tpu.memory_space<vmem>>) attributes {dimension_semantics = [], scalar_prefetch = 0 : i64, scratch_operands = 0 : i64, tpu.core_type = #tpu.core_type<tc>} {
    %c0 = arith.constant 0 : index
    %c0_0 = arith.constant 0 : index
    %0 = vector.load %arg0[%c0, %c0_0] : memref<128x32xf32, #tpu.memory_space<vmem>>, vector<128x32xf32>
    %cst = arith.constant dense<0.000000e+00> : vector<128xf32>
    %1 = vector.multi_reduction <add>, %0, %cst [1] : vector<128x32xf32> to vector<128xf32>
    %2 = vector.shape_cast %1 : vector<128xf32> to vector<128x1xf32>
    %cst_1 = arith.constant 3.200000e+01 : f32
    %3 = vector.broadcast %cst_1 : f32 to vector<128x1xf32>
    %4 = arith.divf %2, %3 : vector<128x1xf32>
    %5 = vector.broadcast %4 : vector<128x1xf32> to vector<128x32xf32>
    %6 = arith.subf %0, %5 : vector<128x32xf32>
    %7 = arith.mulf %6, %6 : vector<128x32xf32>
    %cst_2 = arith.constant dense<0.000000e+00> : vector<128xf32>
    %8 = vector.multi_reduction <add>, %7, %cst_2 [1] : vector<128x32xf32> to vector<128xf32>
    %9 = vector.shape_cast %8 : vector<128xf32> to vector<128x1xf32>
    %cst_3 = arith.constant 3.200000e+01 : f32
    %10 = vector.broadcast %cst_3 : f32 to vector<128x1xf32>
    %11 = arith.divf %9, %10 : vector<128x1xf32>
    %12 = vector.broadcast %4 : vector<128x1xf32> to vector<128x32xf32>
    %13 = arith.subf %0, %12 : vector<128x32xf32>
    %cst_4 = arith.constant 9.99999974E-6 : f32
    %14 = vector.broadcast %cst_4 : f32 to vector<128x1xf32>
    %15 = arith.addf %11, %14 : vector<128x1xf32>
    %16 = math.rsqrt %15 : vector<128x1xf32>
    %17 = vector.broadcast %16 : vector<128x1xf32> to vector<128x32xf32>
    %18 = arith.mulf %13, %17 : vector<128x32xf32>
    %c0_5 = arith.constant 0 : index
    %c0_6 = arith.constant 0 : index
    %19 = vector.load %arg1[%c0_5, %c0_6] : memref<1x32xf32, #tpu.memory_space<vmem>>, vector<1x32xf32>
    %20 = vector.broadcast %19 : vector<1x32xf32> to vector<128x32xf32>
    %21 = arith.mulf %18, %20 : vector<128x32xf32>
    %c0_7 = arith.constant 0 : index
    %c0_8 = arith.constant 0 : index
    %22 = vector.load %arg2[%c0_7, %c0_8] : memref<1x32xf32, #tpu.memory_space<vmem>>, vector<1x32xf32>
    %23 = vector.broadcast %22 : vector<1x32xf32> to vector<128x32xf32>
    %24 = arith.addf %21, %23 : vector<128x32xf32>
    %c0_9 = arith.constant 0 : index
    %c0_10 = arith.constant 0 : index
    %25 = vector.load %arg3[%c0_9, %c0_10] : memref<32x96xf32, #tpu.memory_space<vmem>>, vector<32x96xf32>
    %cst_11 = arith.constant dense<0.000000e+00> : vector<128x96xf32>
    %26 = tpu.matmul %24, %25, %cst_11 {dimension_numbers = #tpu.dot_dimension_numbers<[1], [0], [0], [1], [0, 0, 1, 1], [], []>} : vector<128x32xf32>, vector<32x96xf32>, vector<128x96xf32> -> vector<128x96xf32>
    %c0_12 = arith.constant 0 : index
    %c0_13 = arith.constant 0 : index
    %27 = vector.load %arg4[%c0_12, %c0_13] : memref<1x96xf32, #tpu.memory_space<vmem>>, vector<1x96xf32>
    %28 = vector.broadcast %27 : vector<1x96xf32> to vector<128x96xf32>
    %29 = arith.addf %26, %28 : vector<128x96xf32>
    %cst_14 = arith.constant 0.000000e+00 : f32
    %30 = vector.broadcast %cst_14 : f32 to vector<128x32xf32>
    %31 = vector.extract_strided_slice %29 {offsets = [0, 0], sizes = [128, 8], strides = [1, 1]} : vector<128x96xf32> to vector<128x8xf32>
    %32 = vector.extract_strided_slice %29 {offsets = [0, 32], sizes = [128, 8], strides = [1, 1]} : vector<128x96xf32> to vector<128x8xf32>
    %33 = vector.extract_strided_slice %29 {offsets = [0, 64], sizes = [128, 8], strides = [1, 1]} : vector<128x96xf32> to vector<128x8xf32>
    %cst_15 = arith.constant dense<0.000000e+00> : vector<128x128xf32>
    %34 = tpu.matmul %31, %32, %cst_15 {dimension_numbers = #tpu.dot_dimension_numbers<[1], [1], [0], [0], [0, 0, 1, 0], [], []>} : vector<128x8xf32>, vector<128x8xf32>, vector<128x128xf32> -> vector<128x128xf32>
    %c0_16 = arith.constant 0 : index
    %c0_17 = arith.constant 0 : index
    %c0_18 = arith.constant 0 : index
    %35 = vector.load %arg5[%c0_16, %c0_17, %c0_18] : memref<4x128x128xf32, #tpu.memory_space<vmem>>, vector<1x128x128xf32>
    %36 = vector.shape_cast %35 : vector<1x128x128xf32> to vector<128x128xf32>
    %37 = arith.addf %34, %36 : vector<128x128xf32>
    %cst_19 = arith.constant dense<0xFF800000> : vector<128xf32>
    %38 = vector.multi_reduction <maximumf>, %37, %cst_19 [1] : vector<128x128xf32> to vector<128xf32>
    %39 = vector.shape_cast %38 : vector<128xf32> to vector<128x1xf32>
    %40 = vector.broadcast %39 : vector<128x1xf32> to vector<128x128xf32>
    %41 = arith.subf %37, %40 : vector<128x128xf32>
    %42 = math.exp %41 : vector<128x128xf32>
    %cst_20 = arith.constant dense<0.000000e+00> : vector<128xf32>
    %43 = vector.multi_reduction <add>, %42, %cst_20 [1] : vector<128x128xf32> to vector<128xf32>
    %44 = vector.shape_cast %43 : vector<128xf32> to vector<128x1xf32>
    %45 = tpu.reciprocal %44 {approx = true} : vector<128x1xf32> -> vector<128x1xf32>
    %46 = vector.broadcast %45 : vector<128x1xf32> to vector<128x128xf32>
    %47 = arith.mulf %42, %46 : vector<128x128xf32>
    %cst_21 = arith.constant dense<0.000000e+00> : vector<128x8xf32>
    %48 = tpu.matmul %47, %33, %cst_21 {dimension_numbers = #tpu.dot_dimension_numbers<[1], [0], [0], [1], [0, 0, 1, 1], [], []>} : vector<128x128xf32>, vector<128x8xf32>, vector<128x8xf32> -> vector<128x8xf32>
    %c0_22 = arith.constant 0 : index
    %c0_23 = arith.constant 0 : index
    %49 = vector.load %arg6[%c0_22, %c0_23] : memref<32x32xf32, #tpu.memory_space<vmem>>, vector<8x32xf32>
    %cst_24 = arith.constant dense<0.000000e+00> : vector<128x32xf32>
    %50 = tpu.matmul %48, %49, %cst_24 {dimension_numbers = #tpu.dot_dimension_numbers<[1], [0], [0], [1], [0, 0, 1, 1], [], []>} : vector<128x8xf32>, vector<8x32xf32>, vector<128x32xf32> -> vector<128x32xf32>
    %51 = arith.addf %30, %50 : vector<128x32xf32>
    %52 = vector.extract_strided_slice %29 {offsets = [0, 8], sizes = [128, 8], strides = [1, 1]} : vector<128x96xf32> to vector<128x8xf32>
    %53 = vector.extract_strided_slice %29 {offsets = [0, 40], sizes = [128, 8], strides = [1, 1]} : vector<128x96xf32> to vector<128x8xf32>
    %54 = vector.extract_strided_slice %29 {offsets = [0, 72], sizes = [128, 8], strides = [1, 1]} : vector<128x96xf32> to vector<128x8xf32>
    %cst_25 = arith.constant dense<0.000000e+00> : vector<128x128xf32>
    %55 = tpu.matmul %52, %53, %cst_25 {dimension_numbers = #tpu.dot_dimension_numbers<[1], [1], [0], [0], [0, 0, 1, 0], [], []>} : vector<128x8xf32>, vector<128x8xf32>, vector<128x128xf32> -> vector<128x128xf32>
    %c1 = arith.constant 1 : index
    %c0_26 = arith.constant 0 : index
    %c0_27 = arith.constant 0 : index
    %56 = vector.load %arg5[%c1, %c0_26, %c0_27] : memref<4x128x128xf32, #tpu.memory_space<vmem>>, vector<1x128x128xf32>
    %57 = vector.shape_cast %56 : vector<1x128x128xf32> to vector<128x128xf32>
    %58 = arith.addf %55, %57 : vector<128x128xf32>
    %cst_28 = arith.constant dense<0xFF800000> : vector<128xf32>
    %59 = vector.multi_reduction <maximumf>, %58, %cst_28 [1] : vector<128x128xf32> to vector<128xf32>
    %60 = vector.shape_cast %59 : vector<128xf32> to vector<128x1xf32>
    %61 = vector.broadcast %60 : vector<128x1xf32> to vector<128x128xf32>
    %62 = arith.subf %58, %61 : vector<128x128xf32>
    %63 = math.exp %62 : vector<128x128xf32>
    %cst_29 = arith.constant dense<0.000000e+00> : vector<128xf32>
    %64 = vector.multi_reduction <add>, %63, %cst_29 [1] : vector<128x128xf32> to vector<128xf32>
    %65 = vector.shape_cast %64 : vector<128xf32> to vector<128x1xf32>
    %66 = tpu.reciprocal %65 {approx = true} : vector<128x1xf32> -> vector<128x1xf32>
    %67 = vector.broadcast %66 : vector<128x1xf32> to vector<128x128xf32>
    %68 = arith.mulf %63, %67 : vector<128x128xf32>
    %cst_30 = arith.constant dense<0.000000e+00> : vector<128x8xf32>
    %69 = tpu.matmul %68, %54, %cst_30 {dimension_numbers = #tpu.dot_dimension_numbers<[1], [0], [0], [1], [0, 0, 1, 1], [], []>} : vector<128x128xf32>, vector<128x8xf32>, vector<128x8xf32> -> vector<128x8xf32>
    %c8 = arith.constant 8 : index
    %c0_31 = arith.constant 0 : index
    %70 = vector.load %arg6[%c8, %c0_31] : memref<32x32xf32, #tpu.memory_space<vmem>>, vector<8x32xf32>
    %cst_32 = arith.constant dense<0.000000e+00> : vector<128x32xf32>
    %71 = tpu.matmul %69, %70, %cst_32 {dimension_numbers = #tpu.dot_dimension_numbers<[1], [0], [0], [1], [0, 0, 1, 1], [], []>} : vector<128x8xf32>, vector<8x32xf32>, vector<128x32xf32> -> vector<128x32xf32>
    %72 = arith.addf %51, %71 : vector<128x32xf32>
    %73 = vector.extract_strided_slice %29 {offsets = [0, 16], sizes = [128, 8], strides = [1, 1]} : vector<128x96xf32> to vector<128x8xf32>
    %74 = vector.extract_strided_slice %29 {offsets = [0, 48], sizes = [128, 8], strides = [1, 1]} : vector<128x96xf32> to vector<128x8xf32>
    %75 = vector.extract_strided_slice %29 {offsets = [0, 80], sizes = [128, 8], strides = [1, 1]} : vector<128x96xf32> to vector<128x8xf32>
    %cst_33 = arith.constant dense<0.000000e+00> : vector<128x128xf32>
    %76 = tpu.matmul %73, %74, %cst_33 {dimension_numbers = #tpu.dot_dimension_numbers<[1], [1], [0], [0], [0, 0, 1, 0], [], []>} : vector<128x8xf32>, vector<128x8xf32>, vector<128x128xf32> -> vector<128x128xf32>
    %c2 = arith.constant 2 : index
    %c0_34 = arith.constant 0 : index
    %c0_35 = arith.constant 0 : index
    %77 = vector.load %arg5[%c2, %c0_34, %c0_35] : memref<4x128x128xf32, #tpu.memory_space<vmem>>, vector<1x128x128xf32>
    %78 = vector.shape_cast %77 : vector<1x128x128xf32> to vector<128x128xf32>
    %79 = arith.addf %76, %78 : vector<128x128xf32>
    %cst_36 = arith.constant dense<0xFF800000> : vector<128xf32>
    %80 = vector.multi_reduction <maximumf>, %79, %cst_36 [1] : vector<128x128xf32> to vector<128xf32>
    %81 = vector.shape_cast %80 : vector<128xf32> to vector<128x1xf32>
    %82 = vector.broadcast %81 : vector<128x1xf32> to vector<128x128xf32>
    %83 = arith.subf %79, %82 : vector<128x128xf32>
    %84 = math.exp %83 : vector<128x128xf32>
    %cst_37 = arith.constant dense<0.000000e+00> : vector<128xf32>
    %85 = vector.multi_reduction <add>, %84, %cst_37 [1] : vector<128x128xf32> to vector<128xf32>
    %86 = vector.shape_cast %85 : vector<128xf32> to vector<128x1xf32>
    %87 = tpu.reciprocal %86 {approx = true} : vector<128x1xf32> -> vector<128x1xf32>
    %88 = vector.broadcast %87 : vector<128x1xf32> to vector<128x128xf32>
    %89 = arith.mulf %84, %88 : vector<128x128xf32>
    %cst_38 = arith.constant dense<0.000000e+00> : vector<128x8xf32>
    %90 = tpu.matmul %89, %75, %cst_38 {dimension_numbers = #tpu.dot_dimension_numbers<[1], [0], [0], [1], [0, 0, 1, 1], [], []>} : vector<128x128xf32>, vector<128x8xf32>, vector<128x8xf32> -> vector<128x8xf32>
    %c16 = arith.constant 16 : index
    %c0_39 = arith.constant 0 : index
    %91 = vector.load %arg6[%c16, %c0_39] : memref<32x32xf32, #tpu.memory_space<vmem>>, vector<8x32xf32>
    %cst_40 = arith.constant dense<0.000000e+00> : vector<128x32xf32>
    %92 = tpu.matmul %90, %91, %cst_40 {dimension_numbers = #tpu.dot_dimension_numbers<[1], [0], [0], [1], [0, 0, 1, 1], [], []>} : vector<128x8xf32>, vector<8x32xf32>, vector<128x32xf32> -> vector<128x32xf32>
    %93 = arith.addf %72, %92 : vector<128x32xf32>
    %94 = vector.extract_strided_slice %29 {offsets = [0, 24], sizes = [128, 8], strides = [1, 1]} : vector<128x96xf32> to vector<128x8xf32>
    %95 = vector.extract_strided_slice %29 {offsets = [0, 56], sizes = [128, 8], strides = [1, 1]} : vector<128x96xf32> to vector<128x8xf32>
    %96 = vector.extract_strided_slice %29 {offsets = [0, 88], sizes = [128, 8], strides = [1, 1]} : vector<128x96xf32> to vector<128x8xf32>
    %cst_41 = arith.constant dense<0.000000e+00> : vector<128x128xf32>
    %97 = tpu.matmul %94, %95, %cst_41 {dimension_numbers = #tpu.dot_dimension_numbers<[1], [1], [0], [0], [0, 0, 1, 0], [], []>} : vector<128x8xf32>, vector<128x8xf32>, vector<128x128xf32> -> vector<128x128xf32>
    %c3 = arith.constant 3 : index
    %c0_42 = arith.constant 0 : index
    %c0_43 = arith.constant 0 : index
    %98 = vector.load %arg5[%c3, %c0_42, %c0_43] : memref<4x128x128xf32, #tpu.memory_space<vmem>>, vector<1x128x128xf32>
    %99 = vector.shape_cast %98 : vector<1x128x128xf32> to vector<128x128xf32>
    %100 = arith.addf %97, %99 : vector<128x128xf32>
    %cst_44 = arith.constant dense<0xFF800000> : vector<128xf32>
    %101 = vector.multi_reduction <maximumf>, %100, %cst_44 [1] : vector<128x128xf32> to vector<128xf32>
    %102 = vector.shape_cast %101 : vector<128xf32> to vector<128x1xf32>
    %103 = vector.broadcast %102 : vector<128x1xf32> to vector<128x128xf32>
    %104 = arith.subf %100, %103 : vector<128x128xf32>
    %105 = math.exp %104 : vector<128x128xf32>
    %cst_45 = arith.constant dense<0.000000e+00> : vector<128xf32>
    %106 = vector.multi_reduction <add>, %105, %cst_45 [1] : vector<128x128xf32> to vector<128xf32>
    %107 = vector.shape_cast %106 : vector<128xf32> to vector<128x1xf32>
    %108 = tpu.reciprocal %107 {approx = true} : vector<128x1xf32> -> vector<128x1xf32>
    %109 = vector.broadcast %108 : vector<128x1xf32> to vector<128x128xf32>
    %110 = arith.mulf %105, %109 : vector<128x128xf32>
    %cst_46 = arith.constant dense<0.000000e+00> : vector<128x8xf32>
    %111 = tpu.matmul %110, %96, %cst_46 {dimension_numbers = #tpu.dot_dimension_numbers<[1], [0], [0], [1], [0, 0, 1, 1], [], []>} : vector<128x128xf32>, vector<128x8xf32>, vector<128x8xf32> -> vector<128x8xf32>
    %c24 = arith.constant 24 : index
    %c0_47 = arith.constant 0 : index
    %112 = vector.load %arg6[%c24, %c0_47] : memref<32x32xf32, #tpu.memory_space<vmem>>, vector<8x32xf32>
    %cst_48 = arith.constant dense<0.000000e+00> : vector<128x32xf32>
    %113 = tpu.matmul %111, %112, %cst_48 {dimension_numbers = #tpu.dot_dimension_numbers<[1], [0], [0], [1], [0, 0, 1, 1], [], []>} : vector<128x8xf32>, vector<8x32xf32>, vector<128x32xf32> -> vector<128x32xf32>
    %114 = arith.addf %93, %113 : vector<128x32xf32>
    %115 = arith.addf %0, %114 : vector<128x32xf32>
    %c0_49 = arith.constant 0 : index
    %c0_50 = arith.constant 0 : index
    %116 = vector.load %arg7[%c0_49, %c0_50] : memref<1x32xf32, #tpu.memory_space<vmem>>, vector<1x32xf32>
    %117 = vector.broadcast %116 : vector<1x32xf32> to vector<128x32xf32>
    %118 = arith.addf %115, %117 : vector<128x32xf32>
    %cst_51 = arith.constant dense<0.000000e+00> : vector<128xf32>
    %119 = vector.multi_reduction <add>, %118, %cst_51 [1] : vector<128x32xf32> to vector<128xf32>
    %120 = vector.shape_cast %119 : vector<128xf32> to vector<128x1xf32>
    %cst_52 = arith.constant 3.200000e+01 : f32
    %121 = vector.broadcast %cst_52 : f32 to vector<128x1xf32>
    %122 = arith.divf %120, %121 : vector<128x1xf32>
    %123 = vector.broadcast %122 : vector<128x1xf32> to vector<128x32xf32>
    %124 = arith.subf %118, %123 : vector<128x32xf32>
    %125 = arith.mulf %124, %124 : vector<128x32xf32>
    %cst_53 = arith.constant dense<0.000000e+00> : vector<128xf32>
    %126 = vector.multi_reduction <add>, %125, %cst_53 [1] : vector<128x32xf32> to vector<128xf32>
    %127 = vector.shape_cast %126 : vector<128xf32> to vector<128x1xf32>
    %cst_54 = arith.constant 3.200000e+01 : f32
    %128 = vector.broadcast %cst_54 : f32 to vector<128x1xf32>
    %129 = arith.divf %127, %128 : vector<128x1xf32>
    %130 = vector.broadcast %122 : vector<128x1xf32> to vector<128x32xf32>
    %131 = arith.subf %118, %130 : vector<128x32xf32>
    %cst_55 = arith.constant 9.99999974E-6 : f32
    %132 = vector.broadcast %cst_55 : f32 to vector<128x1xf32>
    %133 = arith.addf %129, %132 : vector<128x1xf32>
    %134 = math.rsqrt %133 : vector<128x1xf32>
    %135 = vector.broadcast %134 : vector<128x1xf32> to vector<128x32xf32>
    %136 = arith.mulf %131, %135 : vector<128x32xf32>
    %c0_56 = arith.constant 0 : index
    %c0_57 = arith.constant 0 : index
    %137 = vector.load %arg8[%c0_56, %c0_57] : memref<1x32xf32, #tpu.memory_space<vmem>>, vector<1x32xf32>
    %138 = vector.broadcast %137 : vector<1x32xf32> to vector<128x32xf32>
    %139 = arith.mulf %136, %138 : vector<128x32xf32>
    %c0_58 = arith.constant 0 : index
    %c0_59 = arith.constant 0 : index
    %140 = vector.load %arg9[%c0_58, %c0_59] : memref<1x32xf32, #tpu.memory_space<vmem>>, vector<1x32xf32>
    %141 = vector.broadcast %140 : vector<1x32xf32> to vector<128x32xf32>
    %142 = arith.addf %139, %141 : vector<128x32xf32>
    %c0_60 = arith.constant 0 : index
    %c0_61 = arith.constant 0 : index
    %143 = vector.load %arg10[%c0_60, %c0_61] : memref<32x128xf32, #tpu.memory_space<vmem>>, vector<32x128xf32>
    %cst_62 = arith.constant dense<0.000000e+00> : vector<128x128xf32>
    %144 = tpu.matmul %142, %143, %cst_62 {dimension_numbers = #tpu.dot_dimension_numbers<[1], [0], [0], [1], [0, 0, 1, 1], [], []>} : vector<128x32xf32>, vector<32x128xf32>, vector<128x128xf32> -> vector<128x128xf32>
    %c0_63 = arith.constant 0 : index
    %c0_64 = arith.constant 0 : index
    %145 = vector.load %arg11[%c0_63, %c0_64] : memref<1x128xf32, #tpu.memory_space<vmem>>, vector<1x128xf32>
    %146 = vector.broadcast %145 : vector<1x128xf32> to vector<128x128xf32>
    %147 = arith.addf %144, %146 : vector<128x128xf32>
    %cst_65 = arith.constant 5.000000e-01 : f32
    %148 = vector.broadcast %cst_65 : f32 to vector<128x128xf32>
    %149 = arith.mulf %148, %147 : vector<128x128xf32>
    %cst_66 = arith.constant 0.707106769 : f32
    %150 = vector.broadcast %cst_66 : f32 to vector<128x128xf32>
    %151 = arith.mulf %147, %150 : vector<128x128xf32>
    %152 = math.erf %151 : vector<128x128xf32>
    %cst_67 = arith.constant 1.000000e+00 : f32
    %153 = vector.broadcast %cst_67 : f32 to vector<128x128xf32>
    %154 = arith.addf %153, %152 : vector<128x128xf32>
    %155 = arith.mulf %149, %154 : vector<128x128xf32>
    %c0_68 = arith.constant 0 : index
    %c0_69 = arith.constant 0 : index
    %156 = vector.load %arg12[%c0_68, %c0_69] : memref<128x32xf32, #tpu.memory_space<vmem>>, vector<128x32xf32>
    %cst_70 = arith.constant dense<0.000000e+00> : vector<128x32xf32>
    %157 = tpu.matmul %155, %156, %cst_70 {dimension_numbers = #tpu.dot_dimension_numbers<[1], [0], [0], [1], [0, 0, 1, 1], [], []>} : vector<128x128xf32>, vector<128x32xf32>, vector<128x32xf32> -> vector<128x32xf32>
    %158 = arith.addf %118, %157 : vector<128x32xf32>
    %c0_71 = arith.constant 0 : index
    %c0_72 = arith.constant 0 : index
    %159 = vector.load %arg13[%c0_71, %c0_72] : memref<1x32xf32, #tpu.memory_space<vmem>>, vector<1x32xf32>
    %160 = vector.broadcast %159 : vector<1x32xf32> to vector<128x32xf32>
    %161 = arith.addf %158, %160 : vector<128x32xf32>
    %c0_73 = arith.constant 0 : index
    %c0_74 = arith.constant 0 : index
    %162 = vector.load %arg14[%c0_73, %c0_74] : memref<128x32xf32, #tpu.memory_space<vmem>>, vector<128x32xf32>
    tpu.vector_store %arg14[%c0_73, %c0_74], %161 {strides = array<i32>} : memref<128x32xf32, #tpu.memory_space<vmem>>, vector<128x32xf32>,
    return
  }
}

</mosaic_0001>

<llo_original>
// kernel: run.2
$region0: #{run.2}
  #allocation0 [shape = 'u32[]', space=smem, size = 0x4, offset = 0x4, fixed_abs, tag = 'smem constant byte address 0x4 - core index']
  #allocation1 [shape = 'u32[144,128]{1,0:T(1,128)}', space=vmem, size = 0x12000, scoped, tag = 'internal scratch']
  %s0 = inlined_call_operand.vmem [shape: f32[128,32], index: 0, kind: input, shape index: {}]
  %s1 = inlined_call_operand.vmem [shape: f32[1,32], index: 1, kind: input, shape index: {}, may-alias: {1,8}]
  %s2 = inlined_call_operand.vmem [shape: f32[1,32], index: 2, kind: input, shape index: {}, may-alias: {2,9,13}]
  %s3 = inlined_call_operand.vmem [shape: f32[32,96], index: 3, kind: input, shape index: {}]
  %s4 = inlined_call_operand.vmem [shape: f32[1,96], index: 4, kind: input, shape index: {}]
  %s5 = inlined_call_operand.vmem [shape: f32[4,128,128], index: 5, kind: input, shape index: {}]
  %s6 = inlined_call_operand.vmem [shape: f32[32,32], index: 6, kind: input, shape index: {}]
  %s7 = inlined_call_operand.vmem [shape: f32[1,32], index: 7, kind: input, shape index: {}]
  %s8 = inlined_call_operand.vmem [shape: f32[1,32], index: 8, kind: input, shape index: {}, may-alias: {1,8}]
  %s9 = inlined_call_operand.vmem [shape: f32[1,32], index: 9, kind: input, shape index: {}, may-alias: {2,9,13}]
  %s10 = inlined_call_operand.vmem [shape: f32[32,128], index: 10, kind: input, shape index: {}]
  %s11 = inlined_call_operand.vmem [shape: f32[1,128], index: 11, kind: input, shape index: {}]
  %s12 = inlined_call_operand.vmem [shape: f32[128,32], index: 12, kind: input, shape index: {}]
  %s13 = inlined_call_operand.vmem [shape: f32[1,32], index: 13, kind: input, shape index: {}, may-alias: {2,9,13}]
  %s14 = inlined_call_operand.vmem [shape: f32[128,32], index: 14, kind: output, shape index: {}]
  %s15 = sld [smem:[#allocation0]]
  $region66: #{run.2} parent=0
    _
  %s17 = ssub.s32 1, %s15
  %s18 = scalar_select 0, %s17, %s15
  // Predicated region
  $region2: #{run.2} parent=0 // pred_check
    _
  $region3: #{run.2} parent=0 // pred_check_branch
    %20 = sbr.rel (0) target = $region5
  $region4: #{run.2} parent=0 // pred_region
    _
  $region5: #{run.2} parent=0 // pred_fallthru
    _
  // Predicated region
  $region6: #{run.2} parent=0 // pred_check
    _
  $region7: #{run.2} parent=0 // pred_check_branch
    %22 = sbr.rel (0) target = $region9
  $region8: #{run.2} parent=0 // pred_region
    _
  $region9: #{run.2} parent=0 // pred_fallthru
    _
  // Predicated region
  $region10: #{run.2} parent=0 // pred_check
    _
  $region11: #{run.2} parent=0 // pred_check_branch
    %24 = sbr.rel (0) target = $region13
  $region12: #{run.2} parent=0 // pred_region
    _
  $region13: #{run.2} parent=0 // pred_fallthru
    _
  // Predicated region
  $region14: #{run.2} parent=0 // pred_check
    _
  $region15: #{run.2} parent=0 // pred_check_branch
    %26 = sbr.rel (0) target = $region17
  $region16: #{run.2} parent=0 // pred_region
    _
  $region17: #{run.2} parent=0 // pred_fallthru
    _
  // Predicated region
  $region18: #{run.2} parent=0 // pred_check
    _
  $region19: #{run.2} parent=0 // pred_check_branch
    %28 = sbr.rel (0) target = $region21
  $region20: #{run.2} parent=0 // pred_region
    _
  $region21: #{run.2} parent=0 // pred_fallthru
    _
  // Predicated region
  $region22: #{run.2} parent=0 // pred_check
    _
  $region23: #{run.2} parent=0 // pred_check_branch
    %30 = sbr.rel (0) target = $region25
  $region24: #{run.2} parent=0 // pred_region
    _
  $region25: #{run.2} parent=0 // pred_fallthru
    _
  // Predicated region
  $region26: #{run.2} parent=0 // pred_check
    _
  $region27: #{run.2} parent=0 // pred_check_branch
    %32 = sbr.rel (0) target = $region29
  $region28: #{run.2} parent=0 // pred_region
    _
  $region29: #{run.2} parent=0 // pred_fallthru
    _
  // Predicated region
  $region30: #{run.2} parent=0 // pred_check
    _
  $region31: #{run.2} parent=0 // pred_check_branch
    %34 = sbr.rel (0) target = $region33
  $region32: #{run.2} parent=0 // pred_region
    _
  $region33: #{run.2} parent=0 // pred_fallthru
    _
  // Predicated region
  $region34: #{run.2} parent=0 // pred_check
    _
  $region35: #{run.2} parent=0 // pred_check_branch
    %36 = sbr.rel (0) target = $region37
  $region36: #{run.2} parent=0 // pred_region
    _
  $region37: #{run.2} parent=0 // pred_fallthru
    _
  // Predicated region
  $region38: #{run.2} parent=0 // pred_check
    _
  $region39: #{run.2} parent=0 // pred_check_branch
    %38 = sbr.rel (0) target = $region41
  $region40: #{run.2} parent=0 // pred_region
    _
  $region41: #{run.2} parent=0 // pred_fallthru
    _
  // Predicated region
  $region42: #{run.2} parent=0 // pred_check
    _
  $region43: #{run.2} parent=0 // pred_check_branch
    %40 = sbr.rel (0) target = $region45
  $region44: #{run.2} parent=0 // pred_region
    _
  $region45: #{run.2} parent=0 // pred_fallthru
    _
  // Predicated region
  $region46: #{run.2} parent=0 // pred_check
    _
  $region47: #{run.2} parent=0 // pred_check_branch
    %42 = sbr.rel (0) target = $region49
  $region48: #{run.2} parent=0 // pred_region
    _
  $region49: #{run.2} parent=0 // pred_fallthru
    _
  // Predicated region
  $region50: #{run.2} parent=0 // pred_check
    _
  $region51: #{run.2} parent=0 // pred_check_branch
    %44 = sbr.rel (0) target = $region53
  $region52: #{run.2} parent=0 // pred_region
    _
  $region53: #{run.2} parent=0 // pred_fallthru
    _
  // Predicated region
  $region54: #{run.2} parent=0 // pred_check
    _
  $region55: #{run.2} parent=0 // pred_check_branch
    %46 = sbr.rel (0) target = $region57
  $region56: #{run.2} parent=0 // pred_region
    _
  $region57: #{run.2} parent=0 // pred_fallthru
    _
  %v47 = vld [vmem:[%s0] sm:$0xff]
  %v48 = vld [vmem:[%s0 + $0x8] sm:$0xff]
  %v49 = vld [vmem:[%s0 + $0x10] sm:$0xff]
  %v50 = vld [vmem:[%s0 + $0x18] sm:$0xff]
  %v51 = vld [vmem:[%s0 + $0x20] sm:$0xff]
  %v52 = vld [vmem:[%s0 + $0x28] sm:$0xff]
  %v53 = vld [vmem:[%s0 + $0x30] sm:$0xff]
  %v54 = vld [vmem:[%s0 + $0x38] sm:$0xff]
  %v55 = vld [vmem:[%s0 + $0x40] sm:$0xff]
  %v56 = vld [vmem:[%s0 + $0x48] sm:$0xff]
  %v57 = vld [vmem:[%s0 + $0x50] sm:$0xff]
  %v58 = vld [vmem:[%s0 + $0x58] sm:$0xff]
  %v59 = vld [vmem:[%s0 + $0x60] sm:$0xff]
  %v60 = vld [vmem:[%s0 + $0x68] sm:$0xff]
  %v61 = vld [vmem:[%s0 + $0x70] sm:$0xff]
  %v62 = vld [vmem:[%s0 + $0x78] sm:$0xff]
  %vm63 = vcmask 261120
  %v64 = vsel %vm63, %v47, 0.0
  %65 = vadd.xlane.f32.xlu0 %v64
  %v66 = vpop.xlane.xlu0 %65
  %v67 = vsel %vm63, %v48, 0.0
  %68 = vadd.xlane.f32.xlu0 %v67
  %v69 = vpop.xlane.xlu0 %68
  %v70 = vsel %vm63, %v49, 0.0
  %71 = vadd.xlane.f32.xlu0 %v70
  %v72 = vpop.xlane.xlu0 %71
  %v73 = vsel %vm63, %v50, 0.0
  %74 = vadd.xlane.f32.xlu0 %v73
  %v75 = vpop.xlane.xlu0 %74
  %v76 = vsel %vm63, %v51, 0.0
  %77 = vadd.xlane.f32.xlu0 %v76
  %v78 = vpop.xlane.xlu0 %77
  %v79 = vsel %vm63, %v52, 0.0
  %80 = vadd.xlane.f32.xlu0 %v79
  %v81 = vpop.xlane.xlu0 %80
  %v82 = vsel %vm63, %v53, 0.0
  %83 = vadd.xlane.f32.xlu0 %v82
  %v84 = vpop.xlane.xlu0 %83
  %v85 = vsel %vm63, %v54, 0.0
  %86 = vadd.xlane.f32.xlu0 %v85
  %v87 = vpop.xlane.xlu0 %86
  %v88 = vsel %vm63, %v55, 0.0
  %89 = vadd.xlane.f32.xlu0 %v88
  %v90 = vpop.xlane.xlu0 %89
  %v91 = vsel %vm63, %v56, 0.0
  %92 = vadd.xlane.f32.xlu0 %v91
  %v93 = vpop.xlane.xlu0 %92
  %v94 = vsel %vm63, %v57, 0.0
  %95 = vadd.xlane.f32.xlu0 %v94
  %v96 = vpop.xlane.xlu0 %95
  %v97 = vsel %vm63, %v58, 0.0
  %98 = vadd.xlane.f32.xlu0 %v97
  %v99 = vpop.xlane.xlu0 %98
  %v100 = vsel %vm63, %v59, 0.0
  %101 = vadd.xlane.f32.xlu0 %v100
  %v102 = vpop.xlane.xlu0 %101
  %v103 = vsel %vm63, %v60, 0.0
  %104 = vadd.xlane.f32.xlu0 %v103
  %v105 = vpop.xlane.xlu0 %104
  %v106 = vsel %vm63, %v61, 0.0
  %107 = vadd.xlane.f32.xlu0 %v106
  %v108 = vpop.xlane.xlu0 %107
  %v109 = vsel %vm63, %v62, 0.0
  %110 = vadd.xlane.f32.xlu0 %v109
  %v111 = vpop.xlane.xlu0 %110
  %v112 = vrcp.pop 32.0
  %v113 = vmul.f32 %v66, %v112
  %v114 = vmul.f32 %v69, %v112
  %v115 = vmul.f32 %v72, %v112
  %v116 = vmul.f32 %v75, %v112
  %v117 = vmul.f32 %v78, %v112
  %v118 = vmul.f32 %v81, %v112
  %v119 = vmul.f32 %v84, %v112
  %v120 = vmul.f32 %v87, %v112
  %v121 = vmul.f32 %v90, %v112
  %v122 = vmul.f32 %v93, %v112
  %v123 = vmul.f32 %v96, %v112
  %v124 = vmul.f32 %v99, %v112
  %v125 = vmul.f32 %v102, %v112
  %v126 = vmul.f32 %v105, %v112
  %v127 = vmul.f32 %v108, %v112
  %v128 = vmul.f32 %v111, %v112
  %v129 = vsub.f32 %v47, %v113
  %v130 = vsub.f32 %v48, %v114
  %v131 = vsub.f32 %v49, %v115
  %v132 = vsub.f32 %v50, %v116
  %v133 = vsub.f32 %v51, %v117
  %v134 = vsub.f32 %v52, %v118
  %v135 = vsub.f32 %v53, %v119
  %v136 = vsub.f32 %v54, %v120
  %v137 = vsub.f32 %v55, %v121
  %v138 = vsub.f32 %v56, %v122
  %v139 = vsub.f32 %v57, %v123
  %v140 = vsub.f32 %v58, %v124
  %v141 = vsub.f32 %v59, %v125
  %v142 = vsub.f32 %v60, %v126
  %v143 = vsub.f32 %v61, %v127
  %v144 = vsub.f32 %v62, %v128
  %v145 = vmul.f32 %v129, %v129
  %v146 = vmul.f32 %v130, %v130
  %v147 = vmul.f32 %v131, %v131
  %v148 = vmul.f32 %v132, %v132
  %v149 = vmul.f32 %v133, %v133
  %v150 = vmul.f32 %v134, %v134
  %v151 = vmul.f32 %v135, %v135
  %v152 = vmul.f32 %v136, %v136
  %v153 = vmul.f32 %v137, %v137
  %v154 = vmul.f32 %v138, %v138
  %v155 = vmul.f32 %v139, %v139
  %v156 = vmul.f32 %v140, %v140
  %v157 = vmul.f32 %v141, %v141
  %v158 = vmul.f32 %v142, %v142
  %v159 = vmul.f32 %v143, %v143
  %v160 = vmul.f32 %v144, %v144
  %v161 = vsel %vm63, %v145, 0.0
  %162 = vadd.xlane.f32.xlu0 %v161
  %v163 = vpop.xlane.xlu0 %162
  %v164 = vsel %vm63, %v146, 0.0
  %165 = vadd.xlane.f32.xlu0 %v164
  %v166 = vpop.xlane.xlu0 %165
  %v167 = vsel %vm63, %v147, 0.0
  %168 = vadd.xlane.f32.xlu0 %v167
  %v169 = vpop.xlane.xlu0 %168
  %v170 = vsel %vm63, %v148, 0.0
  %171 = vadd.xlane.f32.xlu0 %v170
  %v172 = vpop.xlane.xlu0 %171
  %v173 = vsel %vm63, %v149, 0.0
  %174 = vadd.xlane.f32.xlu0 %v173
  %v175 = vpop.xlane.xlu0 %174
  %v176 = vsel %vm63, %v150, 0.0
  %177 = vadd.xlane.f32.xlu0 %v176
  %v178 = vpop.xlane.xlu0 %177
  %v179 = vsel %vm63, %v151, 0.0
  %180 = vadd.xlane.f32.xlu0 %v179
  %v181 = vpop.xlane.xlu0 %180
  %v182 = vsel %vm63, %v152, 0.0
  %183 = vadd.xlane.f32.xlu0 %v182
  %v184 = vpop.xlane.xlu0 %183
  %v185 = vsel %vm63, %v153, 0.0
  %186 = vadd.xlane.f32.xlu0 %v185
  %v187 = vpop.xlane.xlu0 %186
  %v188 = vsel %vm63, %v154, 0.0
  %189 = vadd.xlane.f32.xlu0 %v188
  %v190 = vpop.xlane.xlu0 %189
  %v191 = vsel %vm63, %v155, 0.0
  %192 = vadd.xlane.f32.xlu0 %v191
  %v193 = vpop.xlane.xlu0 %192
  %v194 = vsel %vm63, %v156, 0.0
  %195 = vadd.xlane.f32.xlu0 %v194
  %v196 = vpop.xlane.xlu0 %195
  %v197 = vsel %vm63, %v157, 0.0
  %198 = vadd.xlane.f32.xlu0 %v197
  %v199 = vpop.xlane.xlu0 %198
  %v200 = vsel %vm63, %v158, 0.0
  %201 = vadd.xlane.f32.xlu0 %v200
  %v202 = vpop.xlane.xlu0 %201
  %v203 = vsel %vm63, %v159, 0.0
  %204 = vadd.xlane.f32.xlu0 %v203
  %v205 = vpop.xlane.xlu0 %204
  %v206 = vsel %vm63, %v160, 0.0
  %207 = vadd.xlane.f32.xlu0 %v206
  %v208 = vpop.xlane.xlu0 %207
  %v209 = vmul.f32 %v163, %v112
  %v210 = vmul.f32 %v166, %v112
  %v211 = vmul.f32 %v169, %v112
  %v212 = vmul.f32 %v172, %v112
  %v213 = vmul.f32 %v175, %v112
  %v214 = vmul.f32 %v178, %v112
  %v215 = vmul.f32 %v181, %v112
  %v216 = vmul.f32 %v184, %v112
  %v217 = vmul.f32 %v187, %v112
  %v218 = vmul.f32 %v190, %v112
  %v219 = vmul.f32 %v193, %v112
  %v220 = vmul.f32 %v196, %v112
  %v221 = vmul.f32 %v199, %v112
  %v222 = vmul.f32 %v202, %v112
  %v223 = vmul.f32 %v205, %v112
  %v224 = vmul.f32 %v208, %v112
  %v225 = vadd.f32 %v209, 1e-05
  %v226 = vadd.f32 %v210, 1e-05
  %v227 = vadd.f32 %v211, 1e-05
  %v228 = vadd.f32 %v212, 1e-05
  %v229 = vadd.f32 %v213, 1e-05
  %v230 = vadd.f32 %v214, 1e-05
  %v231 = vadd.f32 %v215, 1e-05
  %v232 = vadd.f32 %v216, 1e-05
  %v233 = vadd.f32 %v217, 1e-05
  %v234 = vadd.f32 %v218, 1e-05
  %v235 = vadd.f32 %v219, 1e-05
  %v236 = vadd.f32 %v220, 1e-05
  %v237 = vadd.f32 %v221, 1e-05
  %v238 = vadd.f32 %v222, 1e-05
  %v239 = vadd.f32 %v223, 1e-05
  %v240 = vadd.f32 %v224, 1e-05
  %v241 = vrsqrt.pop %v225
  %v242 = vrsqrt.pop %v226
  %v243 = vrsqrt.pop %v227
  %v244 = vrsqrt.pop %v228
  %v245 = vrsqrt.pop %v229
  %v246 = vrsqrt.pop %v230
  %v247 = vrsqrt.pop %v231
  %v248 = vrsqrt.pop %v232
  %v249 = vrsqrt.pop %v233
  %v250 = vrsqrt.pop %v234
  %v251 = vrsqrt.pop %v235
  %v252 = vrsqrt.pop %v236
  %v253 = vrsqrt.pop %v237
  %v254 = vrsqrt.pop %v238
  %v255 = vrsqrt.pop %v239
  %v256 = vrsqrt.pop %v240
  %v257 = vmul.f32 %v129, %v241
  %v258 = vmul.f32 %v130, %v242
  %v259 = vmul.f32 %v131, %v243
  %v260 = vmul.f32 %v132, %v244
  %v261 = vmul.f32 %v133, %v245
  %v262 = vmul.f32 %v134, %v246
  %v263 = vmul.f32 %v135, %v247
  %v264 = vmul.f32 %v136, %v248
  %v265 = vmul.f32 %v137, %v249
  %v266 = vmul.f32 %v138, %v250
  %v267 = vmul.f32 %v139, %v251
  %v268 = vmul.f32 %v140, %v252
  %v269 = vmul.f32 %v141, %v253
  %v270 = vmul.f32 %v142, %v254
  %v271 = vmul.f32 %v143, %v255
  %v272 = vmul.f32 %v144, %v256
  %v273 = vld [vmem:[%s1] sm:$0x1]
  %v275 = vlaneseq
  %v276 = vshrl.u32 %v275, 7
  %v277 = vsub.s32 0, %v276
  %v278 = vrot.slane %v273, %v277
  %v280 = vmul.f32 %v257, %v278
  %v281 = vmul.f32 %v258, %v278
  %v282 = vmul.f32 %v259, %v278
  %v283 = vmul.f32 %v260, %v278
  %v284 = vmul.f32 %v261, %v278
  %v285 = vmul.f32 %v262, %v278
  %v286 = vmul.f32 %v263, %v278
  %v287 = vmul.f32 %v264, %v278
  %v288 = vmul.f32 %v265, %v278
  %v289 = vmul.f32 %v266, %v278
  %v290 = vmul.f32 %v267, %v278
  %v291 = vmul.f32 %v268, %v278
  %v292 = vmul.f32 %v269, %v278
  %v293 = vmul.f32 %v270, %v278
  %v294 = vmul.f32 %v271, %v278
  %v295 = vmul.f32 %v272, %v278
  %v296 = vld [vmem:[%s2] sm:$0x1]
  %v298 = vlaneseq
  %v299 = vshrl.u32 %v298, 7
  %v300 = vsub.s32 0, %v299
  %v301 = vrot.slane %v296, %v300
  %v303 = vadd.f32 %v280, %v301
  %v304 = vadd.f32 %v281, %v301
  %v305 = vadd.f32 %v282, %v301
  %v306 = vadd.f32 %v283, %v301
  %v307 = vadd.f32 %v284, %v301
  %v308 = vadd.f32 %v285, %v301
  %v309 = vadd.f32 %v286, %v301
  %v310 = vadd.f32 %v287, %v301
  %v311 = vadd.f32 %v288, %v301
  %v312 = vadd.f32 %v289, %v301
  %v313 = vadd.f32 %v290, %v301
  %v314 = vadd.f32 %v291, %v301
  %v315 = vadd.f32 %v292, %v301
  %v316 = vadd.f32 %v293, %v301
  %v317 = vadd.f32 %v294, %v301
  %v318 = vadd.f32 %v295, %v301
  %v319 = vld [vmem:[%s3] sm:$0xff]
  %v320 = vld [vmem:[%s3 + $0x8] sm:$0xff]
  %v321 = vld [vmem:[%s3 + $0x10] sm:$0xff]
  %v322 = vld [vmem:[%s3 + $0x18] sm:$0xff]
  %v323 = vld [vmem:[%s4] sm:$0x1]
  %v325 = vlaneseq
  %v326 = vshrl.u32 %v325, 7
  %v327 = vsub.s32 0, %v326
  %v328 = vrot.slane %v323, %v327
  %v331 = vsel %vm63, %v303, 0
  %v334 = vsel %vm63, %v304, 0
  %v337 = vsel %vm63, %v305, 0
  %v340 = vsel %vm63, %v306, 0
  %v343 = vsel %vm63, %v307, 0
  %v346 = vsel %vm63, %v308, 0
  %v349 = vsel %vm63, %v309, 0
  %v352 = vsel %vm63, %v310, 0
  %v355 = vsel %vm63, %v311, 0
  %v358 = vsel %vm63, %v312, 0
  %v361 = vsel %vm63, %v313, 0
  %v364 = vsel %vm63, %v314, 0
  %v367 = vsel %vm63, %v315, 0
  %v370 = vsel %vm63, %v316, 0
  %v373 = vsel %vm63, %v317, 0
  %v376 = vsel %vm63, %v318, 0
  %378 = vmatprep.subr.mxu0 0.0
  %379 = vmatpush1.msra.mxu0 %v319
  %380 = vmatprep.subr.mxu0 0.0
  %381 = vmatpush1.msra.mxu0 %v320
  %382 = vmatprep.subr.mxu0 0.0
  %383 = vmatpush1.msra.mxu0 %v321
  %384 = vmatprep.subr.mxu0 0.0
  %385 = vmatpush1.msra.mxu0 %v322
  %386 = vmatprep.subr.mxu0 0.0
  %387 = vmatpush1.msra.mxu0 0.0
  %388 = vmatprep.subr.mxu0 0.0
  %389 = vmatpush1.msra.mxu0 0.0
  %390 = vmatprep.subr.mxu0 0.0
  %391 = vmatpush1.msra.mxu0 0.0
  %392 = vmatprep.subr.mxu0 0.0
  %393 = vmatpush1.msra.mxu0 0.0
  %394 = vmatprep.subr.mxu0 0.0
  %395 = vmatpush1.msra.mxu0 0.0
  %396 = vmatprep.subr.mxu0 0.0
  %397 = vmatpush1.msra.mxu0 0.0
  %398 = vmatprep.subr.mxu0 0.0
  %399 = vmatpush1.msra.mxu0 0.0
  %400 = vmatprep.subr.mxu0 0.0
  %401 = vmatpush1.msra.mxu0 0.0
  %402 = vmatprep.subr.mxu0 0.0
  %403 = vmatpush1.msra.mxu0 0.0
  %404 = vmatprep.subr.mxu0 0.0
  %405 = vmatpush1.msra.mxu0 0.0
  %406 = vmatprep.subr.mxu0 0.0
  %407 = vmatpush1.msra.mxu0 0.0
  %408 = vmatprep.subr.mxu0 0.0
  %409 = vmatpush1.msra.mxu0 0.0
  %410 = vmatprep.subr.mxu0 0.0
  %411 = vmatpush1.msra.mxu0 0.0
  %412 = vmatprep.subr.mxu0 0.0
  %413 = vmatpush1.msra.mxu0 0.0
  %414 = vmatprep.subr.mxu0 0.0
  %415 = vmatpush1.msra.mxu0 0.0
  %416 = vmatprep.subr.mxu0 0.0
  %417 = vmatpush1.msra.mxu0 0.0
  %418 = vmatprep.subr.mxu0 0.0
  %419 = vmatpush1.msra.mxu0 0.0
  %420 = vmatprep.subr.mxu0 0.0
  %421 = vmatpush1.msra.mxu0 0.0
  %422 = vmatprep.subr.mxu0 0.0
  %423 = vmatpush1.msra.mxu0 0.0
  %424 = vmatprep.subr.mxu0 0.0
  %425 = vmatpush1.msra.mxu0 0.0
  %426 = vmatprep.subr.mxu0 0.0
  %427 = vmatpush1.msra.mxu0 0.0
  %428 = vmatprep.subr.mxu0 0.0
  %429 = vmatpush1.msra.mxu0 0.0
  %430 = vmatprep.subr.mxu0 0.0
  %431 = vmatpush1.msra.mxu0 0.0
  %432 = vmatprep.subr.mxu0 0.0
  %433 = vmatpush1.msra.mxu0 0.0
  %434 = vmatprep.subr.mxu0 0.0
  %435 = vmatpush1.msra.mxu0 0.0
  %436 = vmatprep.subr.mxu0 0.0
  %437 = vmatpush1.msra.mxu0 0.0
  %438 = vmatprep.subr.mxu0 0.0
  %439 = vmatpush1.msra.mxu0 0.0
  %440 = vmatprep.subr.mxu0 0.0
  %441 = vmatpush1.msra.mxu0 0.0
  %442 = vmatprep.mubr.f32.mxu0 0.0
  %443 = vmatmul.mubr.f32.gmra.mrb[0].mxu0 %v331
  %v444 = vpop.f32.mrb[0].mxu0
  %v445 = vadd.f32 %v328, %v444
  %v446 = vpop.f32.mrb[0].mxu0
  %447 = vmatprep.mubr.f32.mxu0 0.0
  %448 = vmatmul.mubr.f32.gmra.mrb[0].mxu0 %v334
  %v449 = vpop.f32.mrb[0].mxu0
  %v450 = vadd.f32 %v328, %v449
  %v451 = vpop.f32.mrb[0].mxu0
  %452 = vmatprep.mubr.f32.mxu0 0.0
  %453 = vmatmul.mubr.f32.gmra.mrb[0].mxu0 %v337
  %v454 = vpop.f32.mrb[0].mxu0
  %v455 = vadd.f32 %v328, %v454
  %v456 = vpop.f32.mrb[0].mxu0
  %457 = vmatprep.mubr.f32.mxu0 0.0
  %458 = vmatmul.mubr.f32.gmra.mrb[0].mxu0 %v340
  %v459 = vpop.f32.mrb[0].mxu0
  %v460 = vadd.f32 %v328, %v459
  %v461 = vpop.f32.mrb[0].mxu0
  %462 = vmatprep.mubr.f32.mxu0 0.0
  %463 = vmatmul.mubr.f32.gmra.mrb[0].mxu0 %v343
  %v464 = vpop.f32.mrb[0].mxu0
  %v465 = vadd.f32 %v328, %v464
  %v466 = vpop.f32.mrb[0].mxu0
  %467 = vmatprep.mubr.f32.mxu0 0.0
  %468 = vmatmul.mubr.f32.gmra.mrb[0].mxu0 %v346
  %v469 = vpop.f32.mrb[0].mxu0
  %v470 = vadd.f32 %v328, %v469
  %v471 = vpop.f32.mrb[0].mxu0
  %472 = vmatprep.mubr.f32.mxu0 0.0
  %473 = vmatmul.mubr.f32.gmra.mrb[0].mxu0 %v349
  %v474 = vpop.f32.mrb[0].mxu0
  %v475 = vadd.f32 %v328, %v474
  %v476 = vpop.f32.mrb[0].mxu0
  %477 = vmatprep.mubr.f32.mxu0 0.0
  %478 = vmatmul.mubr.f32.gmra.mrb[0].mxu0 %v352
  %v479 = vpop.f32.mrb[0].mxu0
  %v480 = vadd.f32 %v328, %v479
  %v481 = vpop.f32.mrb[0].mxu0
  %482 = vmatprep.mubr.f32.mxu0 0.0
  %483 = vmatmul.mubr.f32.gmra.mrb[0].mxu0 %v355
  %v484 = vpop.f32.mrb[0].mxu0
  %v485 = vadd.f32 %v328, %v484
  %v486 = vpop.f32.mrb[0].mxu0
  %487 = vmatprep.mubr.f32.mxu0 0.0
  %488 = vmatmul.mubr.f32.gmra.mrb[0].mxu0 %v358
  %v489 = vpop.f32.mrb[0].mxu0
  %v490 = vadd.f32 %v328, %v489
  %v491 = vpop.f32.mrb[0].mxu0
  %492 = vmatprep.mubr.f32.mxu0 0.0
  %493 = vmatmul.mubr.f32.gmra.mrb[0].mxu0 %v361
  %v494 = vpop.f32.mrb[0].mxu0
  %v495 = vadd.f32 %v328, %v494
  %v496 = vpop.f32.mrb[0].mxu0
  %497 = vmatprep.mubr.f32.mxu0 0.0
  %498 = vmatmul.mubr.f32.gmra.mrb[0].mxu0 %v364
  %v499 = vpop.f32.mrb[0].mxu0
  %v500 = vadd.f32 %v328, %v499
  %v501 = vpop.f32.mrb[0].mxu0
  %502 = vmatprep.mubr.f32.mxu0 0.0
  %503 = vmatmul.mubr.f32.gmra.mrb[0].mxu0 %v367
  %v504 = vpop.f32.mrb[0].mxu0
  %v505 = vadd.f32 %v328, %v504
  %v506 = vpop.f32.mrb[0].mxu0
  %507 = vmatprep.mubr.f32.mxu0 0.0
  %508 = vmatmul.mubr.f32.gmra.mrb[0].mxu0 %v370
  %v509 = vpop.f32.mrb[0].mxu0
  %v510 = vadd.f32 %v328, %v509
  %v511 = vpop.f32.mrb[0].mxu0
  %512 = vmatprep.mubr.f32.mxu0 0.0
  %513 = vmatmul.mubr.f32.gmra.mrb[0].mxu0 %v373
  %v514 = vpop.f32.mrb[0].mxu0
  %v515 = vadd.f32 %v328, %v514
  %v516 = vpop.f32.mrb[0].mxu0
  %517 = vmatprep.mubr.f32.mxu0 0.0
  %518 = vmatmul.mubr.f32.gmra.mrb[0].mxu0 %v376
  %v519 = vpop.f32.mrb[0].mxu0
  %v520 = vadd.f32 %v328, %v519
  %v521 = vpop.f32.mrb[0].mxu0
  %522 = vdwg.mxu0
  %v523 = vld [vmem:[%s5] sm:$0xff]
  %v524 = vld [vmem:[%s5 + $0x8] sm:$0xff]
  %v525 = vld [vmem:[%s5 + $0x10] sm:$0xff]
  %v526 = vld [vmem:[%s5 + $0x18] sm:$0xff]
  %v527 = vld [vmem:[%s5 + $0x20] sm:$0xff]
  %v528 = vld [vmem:[%s5 + $0x28] sm:$0xff]
  %v529 = vld [vmem:[%s5 + $0x30] sm:$0xff]
  %v530 = vld [vmem:[%s5 + $0x38] sm:$0xff]
  %v531 = vld [vmem:[%s5 + $0x40] sm:$0xff]
  %v532 = vld [vmem:[%s5 + $0x48] sm:$0xff]
  %v533 = vld [vmem:[%s5 + $0x50] sm:$0xff]
  %v534 = vld [vmem:[%s5 + $0x58] sm:$0xff]
  %v535 = vld [vmem:[%s5 + $0x60] sm:$0xff]
  %v536 = vld [vmem:[%s5 + $0x68] sm:$0xff]
  %v537 = vld [vmem:[%s5 + $0x70] sm:$0xff]
  %v538 = vld [vmem:[%s5 + $0x78] sm:$0xff]
  %555 = vrot.lane.b32.xlu0 %v445, 96
  %v556 = vpop.permute.xlu0 %555
  %557 = vrot.lane.b32.xlu0 %v450, 96
  %v558 = vpop.permute.xlu0 %557
  %559 = vrot.lane.b32.xlu0 %v455, 96
  %v560 = vpop.permute.xlu0 %559
  %561 = vrot.lane.b32.xlu0 %v460, 96
  %v562 = vpop.permute.xlu0 %561
  %563 = vrot.lane.b32.xlu0 %v465, 96
  %v564 = vpop.permute.xlu0 %563
  %565 = vrot.lane.b32.xlu0 %v470, 96
  %v566 = vpop.permute.xlu0 %565
  %567 = vrot.lane.b32.xlu0 %v475, 96
  %v568 = vpop.permute.xlu0 %567
  %569 = vrot.lane.b32.xlu0 %v480, 96
  %v570 = vpop.permute.xlu0 %569
  %571 = vrot.lane.b32.xlu0 %v485, 96
  %v572 = vpop.permute.xlu0 %571
  %573 = vrot.lane.b32.xlu0 %v490, 96
  %v574 = vpop.permute.xlu0 %573
  %575 = vrot.lane.b32.xlu0 %v495, 96
  %v576 = vpop.permute.xlu0 %575
  %577 = vrot.lane.b32.xlu0 %v500, 96
  %v578 = vpop.permute.xlu0 %577
  %579 = vrot.lane.b32.xlu0 %v505, 96
  %v580 = vpop.permute.xlu0 %579
  %581 = vrot.lane.b32.xlu0 %v510, 96
  %v582 = vpop.permute.xlu0 %581
  %583 = vrot.lane.b32.xlu0 %v515, 96
  %v584 = vpop.permute.xlu0 %583
  %585 = vrot.lane.b32.xlu0 %v520, 96
  %v586 = vpop.permute.xlu0 %585
  %vm587 = vcmask 64512
  %v588 = vsel %vm587, %v445, 0
  %v590 = vsel %vm587, %v450, 0
  %v592 = vsel %vm587, %v455, 0
  %v594 = vsel %vm587, %v460, 0
  %v596 = vsel %vm587, %v465, 0
  %v598 = vsel %vm587, %v470, 0
  %v600 = vsel %vm587, %v475, 0
  %v602 = vsel %vm587, %v480, 0
  %v604 = vsel %vm587, %v485, 0
  %v606 = vsel %vm587, %v490, 0
  %v608 = vsel %vm587, %v495, 0
  %v610 = vsel %vm587, %v500, 0
  %v612 = vsel %vm587, %v505, 0
  %v614 = vsel %vm587, %v510, 0
  %v616 = vsel %vm587, %v515, 0
  %v618 = vsel %vm587, %v520, 0
  %v620 = vsel %vm587, %v556, 0
  %v622 = vsel %vm587, %v558, 0
  %v624 = vsel %vm587, %v560, 0
  %v626 = vsel %vm587, %v562, 0
  %v628 = vsel %vm587, %v564, 0
  %v630 = vsel %vm587, %v566, 0
  %v632 = vsel %vm587, %v568, 0
  %v634 = vsel %vm587, %v570, 0
  %v636 = vsel %vm587, %v572, 0
  %v638 = vsel %vm587, %v574, 0
  %v640 = vsel %vm587, %v576, 0
  %v642 = vsel %vm587, %v578, 0
  %v644 = vsel %vm587, %v580, 0
  %v646 = vsel %vm587, %v582, 0
  %v648 = vsel %vm587, %v584, 0
  %v650 = vsel %vm587, %v586, 0
  %652 = vmatprep.subr.mxu0 0.0
  %653 = vmatpush1.xpose.msra.mxu0 %v620
  %654 = vmatprep.subr.mxu0 0.0
  %655 = vmatpush1.xpose.msra.mxu0 %v622
  %656 = vmatprep.subr.mxu0 0.0
  %657 = vmatpush1.xpose.msra.mxu0 %v624
  %658 = vmatprep.subr.mxu0 0.0
  %659 = vmatpush1.xpose.msra.mxu0 %v626
  %660 = vmatprep.subr.mxu0 0.0
  %661 = vmatpush1.xpose.msra.mxu0 %v628
  %662 = vmatprep.subr.mxu0 0.0
  %663 = vmatpush1.xpose.msra.mxu0 %v630
  %664 = vmatprep.subr.mxu0 0.0
  %665 = vmatpush1.xpose.msra.mxu0 %v632
  %666 = vmatprep.subr.mxu0 0.0
  %667 = vmatpush1.xpose.msra.mxu0 %v634
  %668 = vmatprep.subr.mxu0 0.0
  %669 = vmatpush1.xpose.msra.mxu0 %v636
  %670 = vmatprep.subr.mxu0 0.0
  %671 = vmatpush1.xpose.msra.mxu0 %v638
  %672 = vmatprep.subr.mxu0 0.0
  %673 = vmatpush1.xpose.msra.mxu0 %v640
  %674 = vmatprep.subr.mxu0 0.0
  %675 = vmatpush1.xpose.msra.mxu0 %v642
  %676 = vmatprep.subr.mxu0 0.0
  %677 = vmatpush1.xpose.msra.mxu0 %v644
  %678 = vmatprep.subr.mxu0 0.0
  %679 = vmatpush1.xpose.msra.mxu0 %v646
  %680 = vmatprep.subr.mxu0 0.0
  %681 = vmatpush1.xpose.msra.mxu0 %v648
  %682 = vmatprep.subr.mxu0 0.0
  %683 = vmatpush1.xpose.msra.mxu0 %v650
  %684 = vmatprep.subr.mxu0 0.0
  %685 = vmatpush1.xpose.msra.mxu0 0.0
  %686 = vmatprep.subr.mxu0 0.0
  %687 = vmatpush1.xpose.msra.mxu0 0.0
  %688 = vmatprep.subr.mxu0 0.0
  %689 = vmatpush1.xpose.msra.mxu0 0.0
  %690 = vmatprep.subr.mxu0 0.0
  %691 = vmatpush1.xpose.msra.mxu0 0.0
  %692 = vmatprep.subr.mxu0 0.0
  %693 = vmatpush1.xpose.msra.mxu0 0.0
  %694 = vmatprep.subr.mxu0 0.0
  %695 = vmatpush1.xpose.msra.mxu0 0.0
  %696 = vmatprep.subr.mxu0 0.0
  %697 = vmatpush1.xpose.msra.mxu0 0.0
  %698 = vmatprep.subr.mxu0 0.0
  %699 = vmatpush1.xpose.msra.mxu0 0.0
  %700 = vmatprep.subr.mxu0 0.0
  %701 = vmatpush1.xpose.msra.mxu0 0.0
  %702 = vmatprep.subr.mxu0 0.0
  %703 = vmatpush1.xpose.msra.mxu0 0.0
  %704 = vmatprep.subr.mxu0 0.0
  %705 = vmatpush1.xpose.msra.mxu0 0.0
  %706 = vmatprep.subr.mxu0 0.0
  %707 = vmatpush1.xpose.msra.mxu0 0.0
  %708 = vmatprep.subr.mxu0 0.0
  %709 = vmatpush1.xpose.msra.mxu0 0.0
  %710 = vmatprep.subr.mxu0 0.0
  %711 = vmatpush1.xpose.msra.mxu0 0.0
  %712 = vmatprep.subr.mxu0 0.0
  %713 = vmatpush1.xpose.msra.mxu0 0.0
  %714 = vmatprep.subr.mxu0 0.0
  %715 = vmatpush1.xpose.msra.mxu0 0.0
  %716 = vmatprep.mubr.f32.mxu0 0.0
  %717 = vmatmul.mubr.f32.gmra.mrb[0].mxu0 %v588
  %v718 = vpop.f32.mrb[0].mxu0
  %v719 = vadd.f32 %v523, %v718
  %v720 = vpop.f32.mrb[0].mxu0
  %721 = vmatprep.mubr.f32.mxu0 0.0
  %722 = vmatmul.mubr.f32.gmra.mrb[0].mxu0 %v590
  %v723 = vpop.f32.mrb[0].mxu0
  %v724 = vadd.f32 %v524, %v723
  %v725 = vpop.f32.mrb[0].mxu0
  %726 = vmatprep.mubr.f32.mxu0 0.0
  %727 = vmatmul.mubr.f32.gmra.mrb[0].mxu0 %v592
  %v728 = vpop.f32.mrb[0].mxu0
  %v729 = vadd.f32 %v525, %v728
  %v730 = vpop.f32.mrb[0].mxu0
  %731 = vmatprep.mubr.f32.mxu0 0.0
  %732 = vmatmul.mubr.f32.gmra.mrb[0].mxu0 %v594
  %v733 = vpop.f32.mrb[0].mxu0
  %v734 = vadd.f32 %v526, %v733
  %v735 = vpop.f32.mrb[0].mxu0
  %736 = vmatprep.mubr.f32.mxu0 0.0
  %737 = vmatmul.mubr.f32.gmra.mrb[0].mxu0 %v596
  %v738 = vpop.f32.mrb[0].mxu0
  %v739 = vadd.f32 %v527, %v738
  %v740 = vpop.f32.mrb[0].mxu0
  %741 = vmatprep.mubr.f32.mxu0 0.0
  %742 = vmatmul.mubr.f32.gmra.mrb[0].mxu0 %v598
  %v743 = vpop.f32.mrb[0].mxu0
  %v744 = vadd.f32 %v528, %v743
  %v745 = vpop.f32.mrb[0].mxu0
  %746 = vmatprep.mubr.f32.mxu0 0.0
  %747 = vmatmul.mubr.f32.gmra.mrb[0].mxu0 %v600
  %v748 = vpop.f32.mrb[0].mxu0
  %v749 = vadd.f32 %v529, %v748
  %v750 = vpop.f32.mrb[0].mxu0
  %751 = vmatprep.mubr.f32.mxu0 0.0
  %752 = vmatmul.mubr.f32.gmra.mrb[0].mxu0 %v602
  %v753 = vpop.f32.mrb[0].mxu0
  %v754 = vadd.f32 %v530, %v753
  %v755 = vpop.f32.mrb[0].mxu0
  %756 = vmatprep.mubr.f32.mxu0 0.0
  %757 = vmatmul.mubr.f32.gmra.mrb[0].mxu0 %v604
  %v758 = vpop.f32.mrb[0].mxu0
  %v759 = vadd.f32 %v531, %v758
  %v760 = vpop.f32.mrb[0].mxu0
  %761 = vmatprep.mubr.f32.mxu0 0.0
  %762 = vmatmul.mubr.f32.gmra.mrb[0].mxu0 %v606
  %v763 = vpop.f32.mrb[0].mxu0
  %v764 = vadd.f32 %v532, %v763
  %v765 = vpop.f32.mrb[0].mxu0
  %766 = vmatprep.mubr.f32.mxu0 0.0
  %767 = vmatmul.mubr.f32.gmra.mrb[0].mxu0 %v608
  %v768 = vpop.f32.mrb[0].mxu0
  %v769 = vadd.f32 %v533, %v768
  %v770 = vpop.f32.mrb[0].mxu0
  %771 = vmatprep.mubr.f32.mxu0 0.0
  %772 = vmatmul.mubr.f32.gmra.mrb[0].mxu0 %v610
  %v773 = vpop.f32.mrb[0].mxu0
  %v774 = vadd.f32 %v534, %v773
  %v775 = vpop.f32.mrb[0].mxu0
  %776 = vmatprep.mubr.f32.mxu0 0.0
  %777 = vmatmul.mubr.f32.gmra.mrb[0].mxu0 %v612
  %v778 = vpop.f32.mrb[0].mxu0
  %v779 = vadd.f32 %v535, %v778
  %v780 = vpop.f32.mrb[0].mxu0
  %781 = vmatprep.mubr.f32.mxu0 0.0
  %782 = vmatmul.mubr.f32.gmra.mrb[0].mxu0 %v614
  %v783 = vpop.f32.mrb[0].mxu0
  %v784 = vadd.f32 %v536, %v783
  %v785 = vpop.f32.mrb[0].mxu0
  %786 = vmatprep.mubr.f32.mxu0 0.0
  %787 = vmatmul.mubr.f32.gmra.mrb[0].mxu0 %v616
  %v788 = vpop.f32.mrb[0].mxu0
  %v789 = vadd.f32 %v537, %v788
  %v790 = vpop.f32.mrb[0].mxu0
  %791 = vmatprep.mubr.f32.mxu0 0.0
  %792 = vmatmul.mubr.f32.gmra.mrb[0].mxu0 %v618
  %v793 = vpop.f32.mrb[0].mxu0
  %v794 = vadd.f32 %v538, %v793
  %v795 = vpop.f32.mrb[0].mxu0
  %796 = vdwg.mxu0
  %797 = vmax.xlane.f32.xlu0 %v719
  %v798 = vpop.xlane.xlu0 %797
  %799 = vmax.xlane.f32.xlu0 %v724
  %v800 = vpop.xlane.xlu0 %799
  %801 = vmax.xlane.f32.xlu0 %v729
  %v802 = vpop.xlane.xlu0 %801
  %803 = vmax.xlane.f32.xlu0 %v734
  %v804 = vpop.xlane.xlu0 %803
  %805 = vmax.xlane.f32.xlu0 %v739
  %v806 = vpop.xlane.xlu0 %805
  %807 = vmax.xlane.f32.xlu0 %v744
  %v808 = vpop.xlane.xlu0 %807
  %809 = vmax.xlane.f32.xlu0 %v749
  %v810 = vpop.xlane.xlu0 %809
  %811 = vmax.xlane.f32.xlu0 %v754
  %v812 = vpop.xlane.xlu0 %811
  %813 = vmax.xlane.f32.xlu0 %v759
  %v814 = vpop.xlane.xlu0 %813
  %815 = vmax.xlane.f32.xlu0 %v764
  %v816 = vpop.xlane.xlu0 %815
  %817 = vmax.xlane.f32.xlu0 %v769
  %v818 = vpop.xlane.xlu0 %817
  %819 = vmax.xlane.f32.xlu0 %v774
  %v820 = vpop.xlane.xlu0 %819
  %821 = vmax.xlane.f32.xlu0 %v779
  %v822 = vpop.xlane.xlu0 %821
  %823 = vmax.xlane.f32.xlu0 %v784
  %v824 = vpop.xlane.xlu0 %823
  %825 = vmax.xlane.f32.xlu0 %v789
  %v826 = vpop.xlane.xlu0 %825
  %827 = vmax.xlane.f32.xlu0 %v794
  %v828 = vpop.xlane.xlu0 %827
  %v829 = vsub.f32 %v719, %v798
  %v830 = vsub.f32 %v724, %v800
  %v831 = vsub.f32 %v729, %v802
  %v832 = vsub.f32 %v734, %v804
  %v833 = vsub.f32 %v739, %v806
  %v834 = vsub.f32 %v744, %v808
  %v835 = vsub.f32 %v749, %v810
  %v836 = vsub.f32 %v754, %v812
  %v837 = vsub.f32 %v759, %v814
  %v838 = vsub.f32 %v764, %v816
  %v839 = vsub.f32 %v769, %v818
  %v840 = vsub.f32 %v774, %v820
  %v841 = vsub.f32 %v779, %v822
  %v842 = vsub.f32 %v784, %v824
  %v843 = vsub.f32 %v789, %v826
  %v844 = vsub.f32 %v794, %v828
  %v845 = vmul.f32 %v829, 1.442695
  %v846 = vpow.pop %v845
  %v847 = vmul.f32 %v830, 1.442695
  %v848 = vpow.pop %v847
  %v849 = vmul.f32 %v831, 1.442695
  %v850 = vpow.pop %v849
  %v851 = vmul.f32 %v832, 1.442695
  %v852 = vpow.pop %v851
  %v853 = vmul.f32 %v833, 1.442695
  %v854 = vpow.pop %v853
  %v855 = vmul.f32 %v834, 1.442695
  %v856 = vpow.pop %v855
  %v857 = vmul.f32 %v835, 1.442695
  %v858 = vpow.pop %v857
  %v859 = vmul.f32 %v836, 1.442695
  %v860 = vpow.pop %v859
  %v861 = vmul.f32 %v837, 1.442695
  %v862 = vpow.pop %v861
  %v863 = vmul.f32 %v838, 1.442695
  %v864 = vpow.pop %v863
  %v865 = vmul.f32 %v839, 1.442695
  %v866 = vpow.pop %v865
  %v867 = vmul.f32 %v840, 1.442695
  %v868 = vpow.pop %v867
  %v869 = vmul.f32 %v841, 1.442695
  %v870 = vpow.pop %v869
  %v871 = vmul.f32 %v842, 1.442695
  %v872 = vpow.pop %v871
  %v873 = vmul.f32 %v843, 1.442695
  %v874 = vpow.pop %v873
  %v875 = vmul.f32 %v844, 1.442695
  %v876 = vpow.pop %v875
  %877 = vadd.xlane.f32.xlu0 %v846
  %v878 = vpop.xlane.xlu0 %877
  %879 = vadd.xlane.f32.xlu0 %v848
  %v880 = vpop.xlane.xlu0 %879
  %881 = vadd.xlane.f32.xlu0 %v850
  %v882 = vpop.xlane.xlu0 %881
  %883 = vadd.xlane.f32.xlu0 %v852
  %v884 = vpop.xlane.xlu0 %883
  %885 = vadd.xlane.f32.xlu0 %v854
  %v886 = vpop.xlane.xlu0 %885
  %887 = vadd.xlane.f32.xlu0 %v856
  %v888 = vpop.xlane.xlu0 %887
  %889 = vadd.xlane.f32.xlu0 %v858
  %v890 = vpop.xlane.xlu0 %889
  %891 = vadd.xlane.f32.xlu0 %v860
  %v892 = vpop.xlane.xlu0 %891
  %893 = vadd.xlane.f32.xlu0 %v862
  %v894 = vpop.xlane.xlu0 %893
  %895 = vadd.xlane.f32.xlu0 %v864
  %v896 = vpop.xlane.xlu0 %895
  %897 = vadd.xlane.f32.xlu0 %v866
  %v898 = vpop.xlane.xlu0 %897
  %899 = vadd.xlane.f32.xlu0 %v868
  %v900 = vpop.xlane.xlu0 %899
  %901 = vadd.xlane.f32.xlu0 %v870
  %v902 = vpop.xlane.xlu0 %901
  %903 = vadd.xlane.f32.xlu0 %v872
  %v904 = vpop.xlane.xlu0 %903
  %905 = vadd.xlane.f32.xlu0 %v874
  %v906 = vpop.xlane.xlu0 %905
  %907 = vadd.xlane.f32.xlu0 %v876
  %v908 = vpop.xlane.xlu0 %907
  %v909 = vrcp.pop %v878
  %v910 = vrcp.pop %v880
  %v911 = vrcp.pop %v882
  %v912 = vrcp.pop %v884
  %v913 = vrcp.pop %v886
  %v914 = vrcp.pop %v888
  %v915 = vrcp.pop %v890
  %v916 = vrcp.pop %v892
  %v917 = vrcp.pop %v894
  %v918 = vrcp.pop %v896
  %v919 = vrcp.pop %v898
  %v920 = vrcp.pop %v900
  %v921 = vrcp.pop %v902
  %v922 = vrcp.pop %v904
  %v923 = vrcp.pop %v906
  %v924 = vrcp.pop %v908
  %v925 = vmul.f32 %v846, %v909
  %v926 = vmul.f32 %v848, %v910
  %v927 = vmul.f32 %v850, %v911
  %v928 = vmul.f32 %v852, %v912
  %v929 = vmul.f32 %v854, %v913
  %v930 = vmul.f32 %v856, %v914
  %v931 = vmul.f32 %v858, %v915
  %v932 = vmul.f32 %v860, %v916
  %v933 = vmul.f32 %v862, %v917
  %v934 = vmul.f32 %v864, %v918
  %v935 = vmul.f32 %v866, %v919
  %v936 = vmul.f32 %v868, %v920
  %v937 = vmul.f32 %v870, %v921
  %v938 = vmul.f32 %v872, %v922
  %v939 = vmul.f32 %v874, %v923
  %v940 = vmul.f32 %v876, %v924
  %941 = vrot.lane.b32.xlu0 %v445, 64
  %v942 = vpop.permute.xlu0 %941
  %943 = vrot.lane.b32.xlu0 %v450, 64
  %v944 = vpop.permute.xlu0 %943
  %945 = vrot.lane.b32.xlu0 %v455, 64
  %v946 = vpop.permute.xlu0 %945
  %947 = vrot.lane.b32.xlu0 %v460, 64
  %v948 = vpop.permute.xlu0 %947
  %949 = vrot.lane.b32.xlu0 %v465, 64
  %v950 = vpop.permute.xlu0 %949
  %951 = vrot.lane.b32.xlu0 %v470, 64
  %v952 = vpop.permute.xlu0 %951
  %953 = vrot.lane.b32.xlu0 %v475, 64
  %v954 = vpop.permute.xlu0 %953
  %955 = vrot.lane.b32.xlu0 %v480, 64
  %v956 = vpop.permute.xlu0 %955
  %957 = vrot.lane.b32.xlu0 %v485, 64
  %v958 = vpop.permute.xlu0 %957
  %959 = vrot.lane.b32.xlu0 %v490, 64
  %v960 = vpop.permute.xlu0 %959
  %961 = vrot.lane.b32.xlu0 %v495, 64
  %v962 = vpop.permute.xlu0 %961
  %963 = vrot.lane.b32.xlu0 %v500, 64
  %v964 = vpop.permute.xlu0 %963
  %965 = vrot.lane.b32.xlu0 %v505, 64
  %v966 = vpop.permute.xlu0 %965
  %967 = vrot.lane.b32.xlu0 %v510, 64
  %v968 = vpop.permute.xlu0 %967
  %969 = vrot.lane.b32.xlu0 %v515, 64
  %v970 = vpop.permute.xlu0 %969
  %971 = vrot.lane.b32.xlu0 %v520, 64
  %v972 = vpop.permute.xlu0 %971
  %989 = vmatprep.subr.mxu0 0.0
  %990 = vmatpush1.msra.mxu0 %v942
  %991 = vmatprep.subr.mxu0 0.0
  %992 = vmatpush1.msra.mxu0 %v944
  %993 = vmatprep.subr.mxu0 0.0
  %994 = vmatpush1.msra.mxu0 %v946
  %995 = vmatprep.subr.mxu0 0.0
  %996 = vmatpush1.msra.mxu0 %v948
  %997 = vmatprep.subr.mxu0 0.0
  %998 = vmatpush1.msra.mxu0 %v950
  %999 = vmatprep.subr.mxu0 0.0
  %1000 = vmatpush1.msra.mxu0 %v952
  %1001 = vmatprep.subr.mxu0 0.0
  %1002 = vmatpush1.msra.mxu0 %v954
  %1003 = vmatprep.subr.mxu0 0.0
  %1004 = vmatpush1.msra.mxu0 %v956
  %1005 = vmatprep.subr.mxu0 0.0
  %1006 = vmatpush1.msra.mxu0 %v958
  %1007 = vmatprep.subr.mxu0 0.0
  %1008 = vmatpush1.msra.mxu0 %v960
  %1009 = vmatprep.subr.mxu0 0.0
  %1010 = vmatpush1.msra.mxu0 %v962
  %1011 = vmatprep.subr.mxu0 0.0
  %1012 = vmatpush1.msra.mxu0 %v964
  %1013 = vmatprep.subr.mxu0 0.0
  %1014 = vmatpush1.msra.mxu0 %v966
  %1015 = vmatprep.subr.mxu0 0.0
  %1016 = vmatpush1.msra.mxu0 %v968
  %1017 = vmatprep.subr.mxu0 0.0
  %1018 = vmatpush1.msra.mxu0 %v970
  %1019 = vmatprep.subr.mxu0 0.0
  %1020 = vmatpush1.msra.mxu0 %v972
  %1021 = vmatprep.subr.mxu0 0.0
  %1022 = vmatpush1.msra.mxu0 0.0
  %1023 = vmatprep.subr.mxu0 0.0
  %1024 = vmatpush1.msra.mxu0 0.0
  %1025 = vmatprep.subr.mxu0 0.0
  %1026 = vmatpush1.msra.mxu0 0.0
  %1027 = vmatprep.subr.mxu0 0.0
  %1028 = vmatpush1.msra.mxu0 0.0
  %1029 = vmatprep.subr.mxu0 0.0
  %1030 = vmatpush1.msra.mxu0 0.0
  %1031 = vmatprep.subr.mxu0 0.0
  %1032 = vmatpush1.msra.mxu0 0.0
  %1033 = vmatprep.subr.mxu0 0.0
  %1034 = vmatpush1.msra.mxu0 0.0
  %1035 = vmatprep.subr.mxu0 0.0
  %1036 = vmatpush1.msra.mxu0 0.0
  %1037 = vmatprep.subr.mxu0 0.0
  %1038 = vmatpush1.msra.mxu0 0.0
  %1039 = vmatprep.subr.mxu0 0.0
  %1040 = vmatpush1.msra.mxu0 0.0
  %1041 = vmatprep.subr.mxu0 0.0
  %1042 = vmatpush1.msra.mxu0 0.0
  %1043 = vmatprep.subr.mxu0 0.0
  %1044 = vmatpush1.msra.mxu0 0.0
  %1045 = vmatprep.subr.mxu0 0.0
  %1046 = vmatpush1.msra.mxu0 0.0
  %1047 = vmatprep.subr.mxu0 0.0
  %1048 = vmatpush1.msra.mxu0 0.0
  %1049 = vmatprep.subr.mxu0 0.0
  %1050 = vmatpush1.msra.mxu0 0.0
  %1051 = vmatprep.subr.mxu0 0.0
  %1052 = vmatpush1.msra.mxu0 0.0
  %1053 = vmatprep.mubr.f32.mxu0 0.0
  %1054 = vmatmul.mubr.f32.gmra.mrb[0].mxu0 %v925
  %v1055 = vpop.f32.mrb[0].mxu0
  %v1056 = vadd.f32 0.0, %v1055
  %v1057 = vpop.f32.mrb[0].mxu0
  %1058 = vmatprep.mubr.f32.mxu0 0.0
  %1059 = vmatmul.mubr.f32.gmra.mrb[0].mxu0 %v926
  %v1060 = vpop.f32.mrb[0].mxu0
  %v1061 = vadd.f32 0.0, %v1060
  %v1062 = vpop.f32.mrb[0].mxu0
  %1063 = vmatprep.mubr.f32.mxu0 0.0
  %1064 = vmatmul.mubr.f32.gmra.mrb[0].mxu0 %v927
  %v1065 = vpop.f32.mrb[0].mxu0
  %v1066 = vadd.f32 0.0, %v1065
  %v1067 = vpop.f32.mrb[0].mxu0
  %1068 = vmatprep.mubr.f32.mxu0 0.0
  %1069 = vmatmul.mubr.f32.gmra.mrb[0].mxu0 %v928
  %v1070 = vpop.f32.mrb[0].mxu0
  %v1071 = vadd.f32 0.0, %v1070
  %v1072 = vpop.f32.mrb[0].mxu0
  %1073 = vmatprep.mubr.f32.mxu0 0.0
  %1074 = vmatmul.mubr.f32.gmra.mrb[0].mxu0 %v929
  %v1075 = vpop.f32.mrb[0].mxu0
  %v1076 = vadd.f32 0.0, %v1075
  %v1077 = vpop.f32.mrb[0].mxu0
  %1078 = vmatprep.mubr.f32.mxu0 0.0
  %1079 = vmatmul.mubr.f32.gmra.mrb[0].mxu0 %v930
  %v1080 = vpop.f32.mrb[0].mxu0
  %v1081 = vadd.f32 0.0, %v1080
  %v1082 = vpop.f32.mrb[0].mxu0
  %1083 = vmatprep.mubr.f32.mxu0 0.0
  %1084 = vmatmul.mubr.f32.gmra.mrb[0].mxu0 %v931
  %v1085 = vpop.f32.mrb[0].mxu0
  %v1086 = vadd.f32 0.0, %v1085
  %v1087 = vpop.f32.mrb[0].mxu0
  %1088 = vmatprep.mubr.f32.mxu0 0.0
  %1089 = vmatmul.mubr.f32.gmra.mrb[0].mxu0 %v932
  %v1090 = vpop.f32.mrb[0].mxu0
  %v1091 = vadd.f32 0.0, %v1090
  %v1092 = vpop.f32.mrb[0].mxu0
  %1093 = vmatprep.mubr.f32.mxu0 0.0
  %1094 = vmatmul.mubr.f32.gmra.mrb[0].mxu0 %v933
  %v1095 = vpop.f32.mrb[0].mxu0
  %v1096 = vadd.f32 0.0, %v1095
  %v1097 = vpop.f32.mrb[0].mxu0
  %1098 = vmatprep.mubr.f32.mxu0 0.0
  %1099 = vmatmul.mubr.f32.gmra.mrb[0].mxu0 %v934
  %v1100 = vpop.f32.mrb[0].mxu0
  %v1101 = vadd.f32 0.0, %v1100
  %v1102 = vpop.f32.mrb[0].mxu0
  %1103 = vmatprep.mubr.f32.mxu0 0.0
  %1104 = vmatmul.mubr.f32.gmra.mrb[0].mxu0 %v935
  %v1105 = vpop.f32.mrb[0].mxu0
  %v1106 = vadd.f32 0.0, %v1105
  %v1107 = vpop.f32.mrb[0].mxu0
  %1108 = vmatprep.mubr.f32.mxu0 0.0
  %1109 = vmatmul.mubr.f32.gmra.mrb[0].mxu0 %v936
  %v1110 = vpop.f32.mrb[0].mxu0
  %v1111 = vadd.f32 0.0, %v1110
  %v1112 = vpop.f32.mrb[0].mxu0
  %1113 = vmatprep.mubr.f32.mxu0 0.0
  %1114 = vmatmul.mubr.f32.gmra.mrb[0].mxu0 %v937
  %v1115 = vpop.f32.mrb[0].mxu0
  %v1116 = vadd.f32 0.0, %v1115
  %v1117 = vpop.f32.mrb[0].mxu0
  %1118 = vmatprep.mubr.f32.mxu0 0.0
  %1119 = vmatmul.mubr.f32.gmra.mrb[0].mxu0 %v938
  %v1120 = vpop.f32.mrb[0].mxu0
  %v1121 = vadd.f32 0.0, %v1120
  %v1122 = vpop.f32.mrb[0].mxu0
  %1123 = vmatprep.mubr.f32.mxu0 0.0
  %1124 = vmatmul.mubr.f32.gmra.mrb[0].mxu0 %v939
  %v1125 = vpop.f32.mrb[0].mxu0
  %v1126 = vadd.f32 0.0, %v1125
  %v1127 = vpop.f32.mrb[0].mxu0
  %1128 = vmatprep.mubr.f32.mxu0 0.0
  %1129 = vmatmul.mubr.f32.gmra.mrb[0].mxu0 %v940
  %v1130 = vpop.f32.mrb[0].mxu0
  %v1131 = vadd.f32 0.0, %v1130
  %v1132 = vpop.f32.mrb[0].mxu0
  %1133 = vdwg.mxu0
  %v1134 = vld [vmem:[%s6] sm:$0xff]
  %s1135 = scalar_lea.vmem %s5, 128
  %v1136 = vld [vmem:[%s1135] sm:$0xff]
  %v1137 = vld [vmem:[%s1135 + $0x8] sm:$0xff]
  %v1138 = vld [vmem:[%s1135 + $0x10] sm:$0xff]
  %v1139 = vld [vmem:[%s1135 + $0x18] sm:$0xff]
  %v1140 = vld [vmem:[%s1135 + $0x20] sm:$0xff]
  %v1141 = vld [vmem:[%s1135 + $0x28] sm:$0xff]
  %v1142 = vld [vmem:[%s1135 + $0x30] sm:$0xff]
  %v1143 = vld [vmem:[%s1135 + $0x38] sm:$0xff]
  %v1144 = vld [vmem:[%s1135 + $0x40] sm:$0xff]
  %v1145 = vld [vmem:[%s1135 + $0x48] sm:$0xff]
  %v1146 = vld [vmem:[%s1135 + $0x50] sm:$0xff]
  %v1147 = vld [vmem:[%s1135 + $0x58] sm:$0xff]
  %v1148 = vld [vmem:[%s1135 + $0x60] sm:$0xff]
  %v1149 = vld [vmem:[%s1135 + $0x68] sm:$0xff]
  %v1150 = vld [vmem:[%s1135 + $0x70] sm:$0xff]
  %v1151 = vld [vmem:[%s1135 + $0x78] sm:$0xff]
  %1152 = vrot.lane.b32.xlu0 %v445, 120
  %v1153 = vpop.permute.xlu0 %1152
  %1154 = vrot.lane.b32.xlu0 %v450, 120
  %v1155 = vpop.permute.xlu0 %1154
  %1156 = vrot.lane.b32.xlu0 %v455, 120
  %v1157 = vpop.permute.xlu0 %1156
  %1158 = vrot.lane.b32.xlu0 %v460, 120
  %v1159 = vpop.permute.xlu0 %1158
  %1160 = vrot.lane.b32.xlu0 %v465, 120
  %v1161 = vpop.permute.xlu0 %1160
  %1162 = vrot.lane.b32.xlu0 %v470, 120
  %v1163 = vpop.permute.xlu0 %1162
  %1164 = vrot.lane.b32.xlu0 %v475, 120
  %v1165 = vpop.permute.xlu0 %1164
  %1166 = vrot.lane.b32.xlu0 %v480, 120
  %v1167 = vpop.permute.xlu0 %1166
  %1168 = vrot.lane.b32.xlu0 %v485, 120
  %v1169 = vpop.permute.xlu0 %1168
  %1170 = vrot.lane.b32.xlu0 %v490, 120
  %v1171 = vpop.permute.xlu0 %1170
  %1172 = vrot.lane.b32.xlu0 %v495, 120
  %v1173 = vpop.permute.xlu0 %1172
  %1174 = vrot.lane.b32.xlu0 %v500, 120
  %v1175 = vpop.permute.xlu0 %1174
  %1176 = vrot.lane.b32.xlu0 %v505, 120
  %v1177 = vpop.permute.xlu0 %1176
  %1178 = vrot.lane.b32.xlu0 %v510, 120
  %v1179 = vpop.permute.xlu0 %1178
  %1180 = vrot.lane.b32.xlu0 %v515, 120
  %v1181 = vpop.permute.xlu0 %1180
  %1182 = vrot.lane.b32.xlu0 %v520, 120
  %v1183 = vpop.permute.xlu0 %1182
  %1184 = vrot.lane.b32.xlu0 %v445, 88
  %v1185 = vpop.permute.xlu0 %1184
  %1186 = vrot.lane.b32.xlu0 %v450, 88
  %v1187 = vpop.permute.xlu0 %1186
  %1188 = vrot.lane.b32.xlu0 %v455, 88
  %v1189 = vpop.permute.xlu0 %1188
  %1190 = vrot.lane.b32.xlu0 %v460, 88
  %v1191 = vpop.permute.xlu0 %1190
  %1192 = vrot.lane.b32.xlu0 %v465, 88
  %v1193 = vpop.permute.xlu0 %1192
  %1194 = vrot.lane.b32.xlu0 %v470, 88
  %v1195 = vpop.permute.xlu0 %1194
  %1196 = vrot.lane.b32.xlu0 %v475, 88
  %v1197 = vpop.permute.xlu0 %1196
  %1198 = vrot.lane.b32.xlu0 %v480, 88
  %v1199 = vpop.permute.xlu0 %1198
  %1200 = vrot.lane.b32.xlu0 %v485, 88
  %v1201 = vpop.permute.xlu0 %1200
  %1202 = vrot.lane.b32.xlu0 %v490, 88
  %v1203 = vpop.permute.xlu0 %1202
  %1204 = vrot.lane.b32.xlu0 %v495, 88
  %v1205 = vpop.permute.xlu0 %1204
  %1206 = vrot.lane.b32.xlu0 %v500, 88
  %v1207 = vpop.permute.xlu0 %1206
  %1208 = vrot.lane.b32.xlu0 %v505, 88
  %v1209 = vpop.permute.xlu0 %1208
  %1210 = vrot.lane.b32.xlu0 %v510, 88
  %v1211 = vpop.permute.xlu0 %1210
  %1212 = vrot.lane.b32.xlu0 %v515, 88
  %v1213 = vpop.permute.xlu0 %1212
  %1214 = vrot.lane.b32.xlu0 %v520, 88
  %v1215 = vpop.permute.xlu0 %1214
  %v1216 = vsel %vm587, %v1153, 0
  %v1218 = vsel %vm587, %v1155, 0
  %v1220 = vsel %vm587, %v1157, 0
  %v1222 = vsel %vm587, %v1159, 0
  %v1224 = vsel %vm587, %v1161, 0
  %v1226 = vsel %vm587, %v1163, 0
  %v1228 = vsel %vm587, %v1165, 0
  %v1230 = vsel %vm587, %v1167, 0
  %v1232 = vsel %vm587, %v1169, 0
  %v1234 = vsel %vm587, %v1171, 0
  %v1236 = vsel %vm587, %v1173, 0
  %v1238 = vsel %vm587, %v1175, 0
  %v1240 = vsel %vm587, %v1177, 0
  %v1242 = vsel %vm587, %v1179, 0
  %v1244 = vsel %vm587, %v1181, 0
  %v1246 = vsel %vm587, %v1183, 0
  %v1248 = vsel %vm587, %v1185, 0
  %v1250 = vsel %vm587, %v1187, 0
  %v1252 = vsel %vm587, %v1189, 0
  %v1254 = vsel %vm587, %v1191, 0
  %v1256 = vsel %vm587, %v1193, 0
  %v1258 = vsel %vm587, %v1195, 0
  %v1260 = vsel %vm587, %v1197, 0
  %v1262 = vsel %vm587, %v1199, 0
  %v1264 = vsel %vm587, %v1201, 0
  %v1266 = vsel %vm587, %v1203, 0
  %v1268 = vsel %vm587, %v1205, 0
  %v1270 = vsel %vm587, %v1207, 0
  %v1272 = vsel %vm587, %v1209, 0
  %v1274 = vsel %vm587, %v1211, 0
  %v1276 = vsel %vm587, %v1213, 0
  %v1278 = vsel %vm587, %v1215, 0
  %1280 = vmatprep.subr.mxu0 0.0
  %1281 = vmatpush1.xpose.msra.mxu0 %v1248
  %1282 = vmatprep.subr.mxu0 0.0
  %1283 = vmatpush1.xpose.msra.mxu0 %v1250
  %1284 = vmatprep.subr.mxu0 0.0
  %1285 = vmatpush1.xpose.msra.mxu0 %v1252
  %1286 = vmatprep.subr.mxu0 0.0
  %1287 = vmatpush1.xpose.msra.mxu0 %v1254
  %1288 = vmatprep.subr.mxu0 0.0
  %1289 = vmatpush1.xpose.msra.mxu0 %v1256
  %1290 = vmatprep.subr.mxu0 0.0
  %1291 = vmatpush1.xpose.msra.mxu0 %v1258
  %1292 = vmatprep.subr.mxu0 0.0
  %1293 = vmatpush1.xpose.msra.mxu0 %v1260
  %1294 = vmatprep.subr.mxu0 0.0
  %1295 = vmatpush1.xpose.msra.mxu0 %v1262
  %1296 = vmatprep.subr.mxu0 0.0
  %1297 = vmatpush1.xpose.msra.mxu0 %v1264
  %1298 = vmatprep.subr.mxu0 0.0
  %1299 = vmatpush1.xpose.msra.mxu0 %v1266
  %1300 = vmatprep.subr.mxu0 0.0
  %1301 = vmatpush1.xpose.msra.mxu0 %v1268
  %1302 = vmatprep.subr.mxu0 0.0
  %1303 = vmatpush1.xpose.msra.mxu0 %v1270
  %1304 = vmatprep.subr.mxu0 0.0
  %1305 = vmatpush1.xpose.msra.mxu0 %v1272
  %1306 = vmatprep.subr.mxu0 0.0
  %1307 = vmatpush1.xpose.msra.mxu0 %v1274
  %1308 = vmatprep.subr.mxu0 0.0
  %1309 = vmatpush1.xpose.msra.mxu0 %v1276
  %1310 = vmatprep.subr.mxu0 0.0
  %1311 = vmatpush1.xpose.msra.mxu0 %v1278
  %1312 = vmatprep.subr.mxu0 0.0
  %1313 = vmatpush1.xpose.msra.mxu0 0.0
  %1314 = vmatprep.subr.mxu0 0.0
  %1315 = vmatpush1.xpose.msra.mxu0 0.0
  %1316 = vmatprep.subr.mxu0 0.0
  %1317 = vmatpush1.xpose.msra.mxu0 0.0
  %1318 = vmatprep.subr.mxu0 0.0
  %1319 = vmatpush1.xpose.msra.mxu0 0.0
  %1320 = vmatprep.subr.mxu0 0.0
  %1321 = vmatpush1.xpose.msra.mxu0 0.0
  %1322 = vmatprep.subr.mxu0 0.0
  %1323 = vmatpush1.xpose.msra.mxu0 0.0
  %1324 = vmatprep.subr.mxu0 0.0
  %1325 = vmatpush1.xpose.msra.mxu0 0.0
  %1326 = vmatprep.subr.mxu0 0.0
  %1327 = vmatpush1.xpose.msra.mxu0 0.0
  %1328 = vmatprep.subr.mxu0 0.0
  %1329 = vmatpush1.xpose.msra.mxu0 0.0
  %1330 = vmatprep.subr.mxu0 0.0
  %1331 = vmatpush1.xpose.msra.mxu0 0.0
  %1332 = vmatprep.subr.mxu0 0.0
  %1333 = vmatpush1.xpose.msra.mxu0 0.0
  %1334 = vmatprep.subr.mxu0 0.0
  %1335 = vmatpush1.xpose.msra.mxu0 0.0
  %1336 = vmatprep.subr.mxu0 0.0
  %1337 = vmatpush1.xpose.msra.mxu0 0.0
  %1338 = vmatprep.subr.mxu0 0.0
  %1339 = vmatpush1.xpose.msra.mxu0 0.0
  %1340 = vmatprep.subr.mxu0 0.0
  %1341 = vmatpush1.xpose.msra.mxu0 0.0
  %1342 = vmatprep.subr.mxu0 0.0
  %1343 = vmatpush1.xpose.msra.mxu0 0.0
  %1344 = vmatprep.mubr.f32.mxu0 0.0
  %1345 = vmatmul.mubr.f32.gmra.mrb[0].mxu0 %v1216
  %v1346 = vpop.f32.mrb[0].mxu0
  %v1347 = vadd.f32 %v1136, %v1346
  %v1348 = vpop.f32.mrb[0].mxu0
  %1349 = vmatprep.mubr.f32.mxu0 0.0
  %1350 = vmatmul.mubr.f32.gmra.mrb[0].mxu0 %v1218
  %v1351 = vpop.f32.mrb[0].mxu0
  %v1352 = vadd.f32 %v1137, %v1351
  %v1353 = vpop.f32.mrb[0].mxu0
  %1354 = vmatprep.mubr.f32.mxu0 0.0
  %1355 = vmatmul.mubr.f32.gmra.mrb[0].mxu0 %v1220
  %v1356 = vpop.f32.mrb[0].mxu0
  %v1357 = vadd.f32 %v1138, %v1356
  %v1358 = vpop.f32.mrb[0].mxu0
  %1359 = vmatprep.mubr.f32.mxu0 0.0
  %1360 = vmatmul.mubr.f32.gmra.mrb[0].mxu0 %v1222
  %v1361 = vpop.f32.mrb[0].mxu0
  %v1362 = vadd.f32 %v1139, %v1361
  %v1363 = vpop.f32.mrb[0].mxu0
  %1364 = vmatprep.mubr.f32.mxu0 0.0
  %1365 = vmatmul.mubr.f32.gmra.mrb[0].mxu0 %v1224
  %v1366 = vpop.f32.mrb[0].mxu0
  %v1367 = vadd.f32 %v1140, %v1366
  %v1368 = vpop.f32.mrb[0].mxu0
  %1369 = vmatprep.mubr.f32.mxu0 0.0
  %1370 = vmatmul.mubr.f32.gmra.mrb[0].mxu0 %v1226
  %v1371 = vpop.f32.mrb[0].mxu0
  %v1372 = vadd.f32 %v1141, %v1371
  %v1373 = vpop.f32.mrb[0].mxu0
  %1374 = vmatprep.mubr.f32.mxu0 0.0
  %1375 = vmatmul.mubr.f32.gmra.mrb[0].mxu0 %v1228
  %v1376 = vpop.f32.mrb[0].mxu0
  %v1377 = vadd.f32 %v1142, %v1376
  %v1378 = vpop.f32.mrb[0].mxu0
  %1379 = vmatprep.mubr.f32.mxu0 0.0
  %1380 = vmatmul.mubr.f32.gmra.mrb[0].mxu0 %v1230
  %v1381 = vpop.f32.mrb[0].mxu0
  %v1382 = vadd.f32 %v1143, %v1381
  %v1383 = vpop.f32.mrb[0].mxu0
  %1384 = vmatprep.mubr.f32.mxu0 0.0
  %1385 = vmatmul.mubr.f32.gmra.mrb[0].mxu0 %v1232
  %v1386 = vpop.f32.mrb[0].mxu0
  %v1387 = vadd.f32 %v1144, %v1386
  %v1388 = vpop.f32.mrb[0].mxu0
  %1389 = vmatprep.mubr.f32.mxu0 0.0
  %1390 = vmatmul.mubr.f32.gmra.mrb[0].mxu0 %v1234
  %v1391 = vpop.f32.mrb[0].mxu0
  %v1392 = vadd.f32 %v1145, %v1391
  %v1393 = vpop.f32.mrb[0].mxu0
  %1394 = vmatprep.mubr.f32.mxu0 0.0
  %1395 = vmatmul.mubr.f32.gmra.mrb[0].mxu0 %v1236
  %v1396 = vpop.f32.mrb[0].mxu0
  %v1397 = vadd.f32 %v1146, %v1396
  %v1398 = vpop.f32.mrb[0].mxu0
  %1399 = vmatprep.mubr.f32.mxu0 0.0
  %1400 = vmatmul.mubr.f32.gmra.mrb[0].mxu0 %v1238
  %v1401 = vpop.f32.mrb[0].mxu0
  %v1402 = vadd.f32 %v1147, %v1401
  %v1403 = vpop.f32.mrb[0].mxu0
  %1404 = vmatprep.mubr.f32.mxu0 0.0
  %1405 = vmatmul.mubr.f32.gmra.mrb[0].mxu0 %v1240
  %v1406 = vpop.f32.mrb[0].mxu0
  %v1407 = vadd.f32 %v1148, %v1406
  %v1408 = vpop.f32.mrb[0].mxu0
  %1409 = vmatprep.mubr.f32.mxu0 0.0
  %1410 = vmatmul.mubr.f32.gmra.mrb[0].mxu0 %v1242
  %v1411 = vpop.f32.mrb[0].mxu0
  %v1412 = vadd.f32 %v1149, %v1411
  %v1413 = vpop.f32.mrb[0].mxu0
  %1414 = vmatprep.mubr.f32.mxu0 0.0
  %1415 = vmatmul.mubr.f32.gmra.mrb[0].mxu0 %v1244
  %v1416 = vpop.f32.mrb[0].mxu0
  %v1417 = vadd.f32 %v1150, %v1416
  %v1418 = vpop.f32.mrb[0].mxu0
  %1419 = vmatprep.mubr.f32.mxu0 0.0
  %1420 = vmatmul.mubr.f32.gmra.mrb[0].mxu0 %v1246
  %v1421 = vpop.f32.mrb[0].mxu0
  %v1422 = vadd.f32 %v1151, %v1421
  %v1423 = vpop.f32.mrb[0].mxu0
  %1424 = vdwg.mxu0
  %1425 = vmax.xlane.f32.xlu0 %v1347
  %v1426 = vpop.xlane.xlu0 %1425
  %1427 = vmax.xlane.f32.xlu0 %v1352
  %v1428 = vpop.xlane.xlu0 %1427
  %1429 = vmax.xlane.f32.xlu0 %v1357
  %v1430 = vpop.xlane.xlu0 %1429
  %1431 = vmax.xlane.f32.xlu0 %v1362
  %v1432 = vpop.xlane.xlu0 %1431
  %1433 = vmax.xlane.f32.xlu0 %v1367
  %v1434 = vpop.xlane.xlu0 %1433
  %1435 = vmax.xlane.f32.xlu0 %v1372
  %v1436 = vpop.xlane.xlu0 %1435
  %1437 = vmax.xlane.f32.xlu0 %v1377
  %v1438 = vpop.xlane.xlu0 %1437
  %1439 = vmax.xlane.f32.xlu0 %v1382
  %v1440 = vpop.xlane.xlu0 %1439
  %1441 = vmax.xlane.f32.xlu0 %v1387
  %v1442 = vpop.xlane.xlu0 %1441
  %1443 = vmax.xlane.f32.xlu0 %v1392
  %v1444 = vpop.xlane.xlu0 %1443
  %1445 = vmax.xlane.f32.xlu0 %v1397
  %v1446 = vpop.xlane.xlu0 %1445
  %1447 = vmax.xlane.f32.xlu0 %v1402
  %v1448 = vpop.xlane.xlu0 %1447
  %1449 = vmax.xlane.f32.xlu0 %v1407
  %v1450 = vpop.xlane.xlu0 %1449
  %1451 = vmax.xlane.f32.xlu0 %v1412
  %v1452 = vpop.xlane.xlu0 %1451
  %1453 = vmax.xlane.f32.xlu0 %v1417
  %v1454 = vpop.xlane.xlu0 %1453
  %1455 = vmax.xlane.f32.xlu0 %v1422
  %v1456 = vpop.xlane.xlu0 %1455
  %v1457 = vsub.f32 %v1347, %v1426
  %v1458 = vsub.f32 %v1352, %v1428
  %v1459 = vsub.f32 %v1357, %v1430
  %v1460 = vsub.f32 %v1362, %v1432
  %v1461 = vsub.f32 %v1367, %v1434
  %v1462 = vsub.f32 %v1372, %v1436
  %v1463 = vsub.f32 %v1377, %v1438
  %v1464 = vsub.f32 %v1382, %v1440
  %v1465 = vsub.f32 %v1387, %v1442
  %v1466 = vsub.f32 %v1392, %v1444
  %v1467 = vsub.f32 %v1397, %v1446
  %v1468 = vsub.f32 %v1402, %v1448
  %v1469 = vsub.f32 %v1407, %v1450
  %v1470 = vsub.f32 %v1412, %v1452
  %v1471 = vsub.f32 %v1417, %v1454
  %v1472 = vsub.f32 %v1422, %v1456
  %v1473 = vmul.f32 %v1457, 1.442695
  %v1474 = vpow.pop %v1473
  %v1475 = vmul.f32 %v1458, 1.442695
  %v1476 = vpow.pop %v1475
  %v1477 = vmul.f32 %v1459, 1.442695
  %v1478 = vpow.pop %v1477
  %v1479 = vmul.f32 %v1460, 1.442695
  %v1480 = vpow.pop %v1479
  %v1481 = vmul.f32 %v1461, 1.442695
  %v1482 = vpow.pop %v1481
  %v1483 = vmul.f32 %v1462, 1.442695
  %v1484 = vpow.pop %v1483
  %v1485 = vmul.f32 %v1463, 1.442695
  %v1486 = vpow.pop %v1485
  %v1487 = vmul.f32 %v1464, 1.442695
  %v1488 = vpow.pop %v1487
  %v1489 = vmul.f32 %v1465, 1.442695
  %v1490 = vpow.pop %v1489
  %v1491 = vmul.f32 %v1466, 1.442695
  %v1492 = vpow.pop %v1491
  %v1493 = vmul.f32 %v1467, 1.442695
  %v1494 = vpow.pop %v1493
  %v1495 = vmul.f32 %v1468, 1.442695
  %v1496 = vpow.pop %v1495
  %v1497 = vmul.f32 %v1469, 1.442695
  %v1498 = vpow.pop %v1497
  %v1499 = vmul.f32 %v1470, 1.442695
  %v1500 = vpow.pop %v1499
  %v1501 = vmul.f32 %v1471, 1.442695
  %v1502 = vpow.pop %v1501
  %v1503 = vmul.f32 %v1472, 1.442695
  %v1504 = vpow.pop %v1503
  %1505 = vadd.xlane.f32.xlu0 %v1474
  %v1506 = vpop.xlane.xlu0 %1505
  %1507 = vadd.xlane.f32.xlu0 %v1476
  %v1508 = vpop.xlane.xlu0 %1507
  %1509 = vadd.xlane.f32.xlu0 %v1478
  %v1510 = vpop.xlane.xlu0 %1509
  %1511 = vadd.xlane.f32.xlu0 %v1480
  %v1512 = vpop.xlane.xlu0 %1511
  %1513 = vadd.xlane.f32.xlu0 %v1482
  %v1514 = vpop.xlane.xlu0 %1513
  %1515 = vadd.xlane.f32.xlu0 %v1484
  %v1516 = vpop.xlane.xlu0 %1515
  %1517 = vadd.xlane.f32.xlu0 %v1486
  %v1518 = vpop.xlane.xlu0 %1517
  %1519 = vadd.xlane.f32.xlu0 %v1488
  %v1520 = vpop.xlane.xlu0 %1519
  %1521 = vadd.xlane.f32.xlu0 %v1490
  %v1522 = vpop.xlane.xlu0 %1521
  %1523 = vadd.xlane.f32.xlu0 %v1492
  %v1524 = vpop.xlane.xlu0 %1523
  %1525 = vadd.xlane.f32.xlu0 %v1494
  %v1526 = vpop.xlane.xlu0 %1525
  %1527 = vadd.xlane.f32.xlu0 %v1496
  %v1528 = vpop.xlane.xlu0 %1527
  %1529 = vadd.xlane.f32.xlu0 %v1498
  %v1530 = vpop.xlane.xlu0 %1529
  %1531 = vadd.xlane.f32.xlu0 %v1500
  %v1532 = vpop.xlane.xlu0 %1531
  %1533 = vadd.xlane.f32.xlu0 %v1502
  %v1534 = vpop.xlane.xlu0 %1533
  %1535 = vadd.xlane.f32.xlu0 %v1504
  %v1536 = vpop.xlane.xlu0 %1535
  %v1537 = vrcp.pop %v1506
  %v1538 = vrcp.pop %v1508
  %v1539 = vrcp.pop %v1510
  %v1540 = vrcp.pop %v1512
  %v1541 = vrcp.pop %v1514
  %v1542 = vrcp.pop %v1516
  %v1543 = vrcp.pop %v1518
  %v1544 = vrcp.pop %v1520
  %v1545 = vrcp.pop %v1522
  %v1546 = vrcp.pop %v1524
  %v1547 = vrcp.pop %v1526
  %v1548 = vrcp.pop %v1528
  %v1549 = vrcp.pop %v1530
  %v1550 = vrcp.pop %v1532
  %v1551 = vrcp.pop %v1534
  %v1552 = vrcp.pop %v1536
  %v1553 = vmul.f32 %v1474, %v1537
  %v1554 = vmul.f32 %v1476, %v1538
  %v1555 = vmul.f32 %v1478, %v1539
  %v1556 = vmul.f32 %v1480, %v1540
  %v1557 = vmul.f32 %v1482, %v1541
  %v1558 = vmul.f32 %v1484, %v1542
  %v1559 = vmul.f32 %v1486, %v1543
  %v1560 = vmul.f32 %v1488, %v1544
  %v1561 = vmul.f32 %v1490, %v1545
  %v1562 = vmul.f32 %v1492, %v1546
  %v1563 = vmul.f32 %v1494, %v1547
  %v1564 = vmul.f32 %v1496, %v1548
  %v1565 = vmul.f32 %v1498, %v1549
  %v1566 = vmul.f32 %v1500, %v1550
  %v1567 = vmul.f32 %v1502, %v1551
  %v1568 = vmul.f32 %v1504, %v1552
  %1569 = vrot.lane.b32.xlu0 %v445, 56
  %v1570 = vpop.permute.xlu0 %1569
  %1571 = vrot.lane.b32.xlu0 %v450, 56
  %v1572 = vpop.permute.xlu0 %1571
  %1573 = vrot.lane.b32.xlu0 %v455, 56
  %v1574 = vpop.permute.xlu0 %1573
  %1575 = vrot.lane.b32.xlu0 %v460, 56
  %v1576 = vpop.permute.xlu0 %1575
  %1577 = vrot.lane.b32.xlu0 %v465, 56
  %v1578 = vpop.permute.xlu0 %1577
  %1579 = vrot.lane.b32.xlu0 %v470, 56
  %v1580 = vpop.permute.xlu0 %1579
  %1581 = vrot.lane.b32.xlu0 %v475, 56
  %v1582 = vpop.permute.xlu0 %1581
  %1583 = vrot.lane.b32.xlu0 %v480, 56
  %v1584 = vpop.permute.xlu0 %1583
  %1585 = vrot.lane.b32.xlu0 %v485, 56
  %v1586 = vpop.permute.xlu0 %1585
  %1587 = vrot.lane.b32.xlu0 %v490, 56
  %v1588 = vpop.permute.xlu0 %1587
  %1589 = vrot.lane.b32.xlu0 %v495, 56
  %v1590 = vpop.permute.xlu0 %1589
  %1591 = vrot.lane.b32.xlu0 %v500, 56
  %v1592 = vpop.permute.xlu0 %1591
  %1593 = vrot.lane.b32.xlu0 %v505, 56
  %v1594 = vpop.permute.xlu0 %1593
  %1595 = vrot.lane.b32.xlu0 %v510, 56
  %v1596 = vpop.permute.xlu0 %1595
  %1597 = vrot.lane.b32.xlu0 %v515, 56
  %v1598 = vpop.permute.xlu0 %1597
  %1599 = vrot.lane.b32.xlu0 %v520, 56
  %v1600 = vpop.permute.xlu0 %1599
  %1617 = vmatprep.subr.mxu0 0.0
  %1618 = vmatpush1.msra.mxu0 %v1570
  %1619 = vmatprep.subr.mxu0 0.0
  %1620 = vmatpush1.msra.mxu0 %v1572
  %1621 = vmatprep.subr.mxu0 0.0
  %1622 = vmatpush1.msra.mxu0 %v1574
  %1623 = vmatprep.subr.mxu0 0.0
  %1624 = vmatpush1.msra.mxu0 %v1576
  %1625 = vmatprep.subr.mxu0 0.0
  %1626 = vmatpush1.msra.mxu0 %v1578
  %1627 = vmatprep.subr.mxu0 0.0
  %1628 = vmatpush1.msra.mxu0 %v1580
  %1629 = vmatprep.subr.mxu0 0.0
  %1630 = vmatpush1.msra.mxu0 %v1582
  %1631 = vmatprep.subr.mxu0 0.0
  %1632 = vmatpush1.msra.mxu0 %v1584
  %1633 = vmatprep.subr.mxu0 0.0
  %1634 = vmatpush1.msra.mxu0 %v1586
  %1635 = vmatprep.subr.mxu0 0.0
  %1636 = vmatpush1.msra.mxu0 %v1588
  %1637 = vmatprep.subr.mxu0 0.0
  %1638 = vmatpush1.msra.mxu0 %v1590
  %1639 = vmatprep.subr.mxu0 0.0
  %1640 = vmatpush1.msra.mxu0 %v1592
  %1641 = vmatprep.subr.mxu0 0.0
  %1642 = vmatpush1.msra.mxu0 %v1594
  %1643 = vmatprep.subr.mxu0 0.0
  %1644 = vmatpush1.msra.mxu0 %v1596
  %1645 = vmatprep.subr.mxu0 0.0
  %1646 = vmatpush1.msra.mxu0 %v1598
  %1647 = vmatprep.subr.mxu0 0.0
  %1648 = vmatpush1.msra.mxu0 %v1600
  %1649 = vmatprep.subr.mxu0 0.0
  %1650 = vmatpush1.msra.mxu0 0.0
  %1651 = vmatprep.subr.mxu0 0.0
  %1652 = vmatpush1.msra.mxu0 0.0
  %1653 = vmatprep.subr.mxu0 0.0
  %1654 = vmatpush1.msra.mxu0 0.0
  %1655 = vmatprep.subr.mxu0 0.0
  %1656 = vmatpush1.msra.mxu0 0.0
  %1657 = vmatprep.subr.mxu0 0.0
  %1658 = vmatpush1.msra.mxu0 0.0
  %1659 = vmatprep.subr.mxu0 0.0
  %1660 = vmatpush1.msra.mxu0 0.0
  %1661 = vmatprep.subr.mxu0 0.0
  %1662 = vmatpush1.msra.mxu0 0.0
  %1663 = vmatprep.subr.mxu0 0.0
  %1664 = vmatpush1.msra.mxu0 0.0
  %1665 = vmatprep.subr.mxu0 0.0
  %1666 = vmatpush1.msra.mxu0 0.0
  %1667 = vmatprep.subr.mxu0 0.0
  %1668 = vmatpush1.msra.mxu0 0.0
  %1669 = vmatprep.subr.mxu0 0.0
  %1670 = vmatpush1.msra.mxu0 0.0
  %1671 = vmatprep.subr.mxu0 0.0
  %1672 = vmatpush1.msra.mxu0 0.0
  %1673 = vmatprep.subr.mxu0 0.0
  %1674 = vmatpush1.msra.mxu0 0.0
  %1675 = vmatprep.subr.mxu0 0.0
  %1676 = vmatpush1.msra.mxu0 0.0
  %1677 = vmatprep.subr.mxu0 0.0
  %1678 = vmatpush1.msra.mxu0 0.0
  %1679 = vmatprep.subr.mxu0 0.0
  %1680 = vmatpush1.msra.mxu0 0.0
  %1681 = vmatprep.mubr.f32.mxu0 0.0
  %1682 = vmatmul.mubr.f32.gmra.mrb[0].mxu0 %v1553
  %v1683 = vpop.f32.mrb[0].mxu0
  %v1684 = vadd.f32 0.0, %v1683
  %v1685 = vpop.f32.mrb[0].mxu0
  %1686 = vmatprep.mubr.f32.mxu0 0.0
  %1687 = vmatmul.mubr.f32.gmra.mrb[0].mxu0 %v1554
  %v1688 = vpop.f32.mrb[0].mxu0
  %v1689 = vadd.f32 0.0, %v1688
  %v1690 = vpop.f32.mrb[0].mxu0
  %1691 = vmatprep.mubr.f32.mxu0 0.0
  %1692 = vmatmul.mubr.f32.gmra.mrb[0].mxu0 %v1555
  %v1693 = vpop.f32.mrb[0].mxu0
  %v1694 = vadd.f32 0.0, %v1693
  %v1695 = vpop.f32.mrb[0].mxu0
  %1696 = vmatprep.mubr.f32.mxu0 0.0
  %1697 = vmatmul.mubr.f32.gmra.mrb[0].mxu0 %v1556
  %v1698 = vpop.f32.mrb[0].mxu0
  %v1699 = vadd.f32 0.0, %v1698
  %v1700 = vpop.f32.mrb[0].mxu0
  %1701 = vmatprep.mubr.f32.mxu0 0.0
  %1702 = vmatmul.mubr.f32.gmra.mrb[0].mxu0 %v1557
  %v1703 = vpop.f32.mrb[0].mxu0
  %v1704 = vadd.f32 0.0, %v1703
  %v1705 = vpop.f32.mrb[0].mxu0
  %1706 = vmatprep.mubr.f32.mxu0 0.0
  %1707 = vmatmul.mubr.f32.gmra.mrb[0].mxu0 %v1558
  %v1708 = vpop.f32.mrb[0].mxu0
  %v1709 = vadd.f32 0.0, %v1708
  %v1710 = vpop.f32.mrb[0].mxu0
  %1711 = vmatprep.mubr.f32.mxu0 0.0
  %1712 = vmatmul.mubr.f32.gmra.mrb[0].mxu0 %v1559
  %v1713 = vpop.f32.mrb[0].mxu0
  %v1714 = vadd.f32 0.0, %v1713
  %v1715 = vpop.f32.mrb[0].mxu0
  %1716 = vmatprep.mubr.f32.mxu0 0.0
  %1717 = vmatmul.mubr.f32.gmra.mrb[0].mxu0 %v1560
  %v1718 = vpop.f32.mrb[0].mxu0
  %v1719 = vadd.f32 0.0, %v1718
  %v1720 = vpop.f32.mrb[0].mxu0
  %1721 = vmatprep.mubr.f32.mxu0 0.0
  %1722 = vmatmul.mubr.f32.gmra.mrb[0].mxu0 %v1561
  %v1723 = vpop.f32.mrb[0].mxu0
  %v1724 = vadd.f32 0.0, %v1723
  %v1725 = vpop.f32.mrb[0].mxu0
  %1726 = vmatprep.mubr.f32.mxu0 0.0
  %1727 = vmatmul.mubr.f32.gmra.mrb[0].mxu0 %v1562
  %v1728 = vpop.f32.mrb[0].mxu0
  %v1729 = vadd.f32 0.0, %v1728
  %v1730 = vpop.f32.mrb[0].mxu0
  %1731 = vmatprep.mubr.f32.mxu0 0.0
  %1732 = vmatmul.mubr.f32.gmra.mrb[0].mxu0 %v1563
  %v1733 = vpop.f32.mrb[0].mxu0
  %v1734 = vadd.f32 0.0, %v1733
  %v1735 = vpop.f32.mrb[0].mxu0
  %1736 = vmatprep.mubr.f32.mxu0 0.0
  %1737 = vmatmul.mubr.f32.gmra.mrb[0].mxu0 %v1564
  %v1738 = vpop.f32.mrb[0].mxu0
  %v1739 = vadd.f32 0.0, %v1738
  %v1740 = vpop.f32.mrb[0].mxu0
  %1741 = vmatprep.mubr.f32.mxu0 0.0
  %1742 = vmatmul.mubr.f32.gmra.mrb[0].mxu0 %v1565
  %v1743 = vpop.f32.mrb[0].mxu0
  %v1744 = vadd.f32 0.0, %v1743
  %v1745 = vpop.f32.mrb[0].mxu0
  %1746 = vmatprep.mubr.f32.mxu0 0.0
  %1747 = vmatmul.mubr.f32.gmra.mrb[0].mxu0 %v1566
  %v1748 = vpop.f32.mrb[0].mxu0
  %v1749 = vadd.f32 0.0, %v1748
  %v1750 = vpop.f32.mrb[0].mxu0
  %1751 = vmatprep.mubr.f32.mxu0 0.0
  %1752 = vmatmul.mubr.f32.gmra.mrb[0].mxu0 %v1567
  %v1753 = vpop.f32.mrb[0].mxu0
  %v1754 = vadd.f32 0.0, %v1753
  %v1755 = vpop.f32.mrb[0].mxu0
  %1756 = vmatprep.mubr.f32.mxu0 0.0
  %1757 = vmatmul.mubr.f32.gmra.mrb[0].mxu0 %v1568
  %v1758 = vpop.f32.mrb[0].mxu0
  %v1759 = vadd.f32 0.0, %v1758
  %v1760 = vpop.f32.mrb[0].mxu0
  %1761 = vdwg.mxu0
  %v1762 = vld [vmem:[%s6 + $0x8] sm:$0xff]
  %v1764 = vsel %vm587, %v1684, 0
  %v1767 = vsel %vm587, %v1689, 0
  %v1770 = vsel %vm587, %v1694, 0
  %v1773 = vsel %vm587, %v1699, 0
  %v1776 = vsel %vm587, %v1704, 0
  %v1779 = vsel %vm587, %v1709, 0
  %v1782 = vsel %vm587, %v1714, 0
  %v1785 = vsel %vm587, %v1719, 0
  %v1788 = vsel %vm587, %v1724, 0
  %v1791 = vsel %vm587, %v1729, 0
  %v1794 = vsel %vm587, %v1734, 0
  %v1797 = vsel %vm587, %v1739, 0
  %v1800 = vsel %vm587, %v1744, 0
  %v1803 = vsel %vm587, %v1749, 0
  %v1806 = vsel %vm587, %v1754, 0
  %v1809 = vsel %vm587, %v1759, 0
  %1811 = vmatprep.subr.mxu0 0.0
  %1812 = vmatpush1.msra.mxu0 %v1762
  %1813 = vmatprep.subr.mxu0 0.0
  %1814 = vmatpush1.msra.mxu0 0.0
  %1815 = vmatprep.subr.mxu0 0.0
  %1816 = vmatpush1.msra.mxu0 0.0
  %1817 = vmatprep.subr.mxu0 0.0
  %1818 = vmatpush1.msra.mxu0 0.0
  %1819 = vmatprep.subr.mxu0 0.0
  %1820 = vmatpush1.msra.mxu0 0.0
  %1821 = vmatprep.subr.mxu0 0.0
  %1822 = vmatpush1.msra.mxu0 0.0
  %1823 = vmatprep.subr.mxu0 0.0
  %1824 = vmatpush1.msra.mxu0 0.0
  %1825 = vmatprep.subr.mxu0 0.0
  %1826 = vmatpush1.msra.mxu0 0.0
  %1827 = vmatprep.subr.mxu0 0.0
  %1828 = vmatpush1.msra.mxu0 0.0
  %1829 = vmatprep.subr.mxu0 0.0
  %1830 = vmatpush1.msra.mxu0 0.0
  %1831 = vmatprep.subr.mxu0 0.0
  %1832 = vmatpush1.msra.mxu0 0.0
  %1833 = vmatprep.subr.mxu0 0.0
  %1834 = vmatpush1.msra.mxu0 0.0
  %1835 = vmatprep.subr.mxu0 0.0
  %1836 = vmatpush1.msra.mxu0 0.0
  %1837 = vmatprep.subr.mxu0 0.0
  %1838 = vmatpush1.msra.mxu0 0.0
  %1839 = vmatprep.subr.mxu0 0.0
  %1840 = vmatpush1.msra.mxu0 0.0
  %1841 = vmatprep.subr.mxu0 0.0
  %1842 = vmatpush1.msra.mxu0 0.0
  %1843 = vmatprep.subr.mxu0 0.0
  %1844 = vmatpush1.msra.mxu0 0.0
  %1845 = vmatprep.subr.mxu0 0.0
  %1846 = vmatpush1.msra.mxu0 0.0
  %1847 = vmatprep.subr.mxu0 0.0
  %1848 = vmatpush1.msra.mxu0 0.0
  %1849 = vmatprep.subr.mxu0 0.0
  %1850 = vmatpush1.msra.mxu0 0.0
  %1851 = vmatprep.subr.mxu0 0.0
  %1852 = vmatpush1.msra.mxu0 0.0
  %1853 = vmatprep.subr.mxu0 0.0
  %1854 = vmatpush1.msra.mxu0 0.0
  %1855 = vmatprep.subr.mxu0 0.0
  %1856 = vmatpush1.msra.mxu0 0.0
  %1857 = vmatprep.subr.mxu0 0.0
  %1858 = vmatpush1.msra.mxu0 0.0
  %1859 = vmatprep.subr.mxu0 0.0
  %1860 = vmatpush1.msra.mxu0 0.0
  %1861 = vmatprep.subr.mxu0 0.0
  %1862 = vmatpush1.msra.mxu0 0.0
  %1863 = vmatprep.subr.mxu0 0.0
  %1864 = vmatpush1.msra.mxu0 0.0
  %1865 = vmatprep.subr.mxu0 0.0
  %1866 = vmatpush1.msra.mxu0 0.0
  %1867 = vmatprep.subr.mxu0 0.0
  %1868 = vmatpush1.msra.mxu0 0.0
  %1869 = vmatprep.subr.mxu0 0.0
  %1870 = vmatpush1.msra.mxu0 0.0
  %1871 = vmatprep.subr.mxu0 0.0
  %1872 = vmatpush1.msra.mxu0 0.0
  %1873 = vmatprep.subr.mxu0 0.0
  %1874 = vmatpush1.msra.mxu0 0.0
  %1875 = vmatprep.mubr.f32.mxu0 0.0
  %1876 = vmatmul.mubr.f32.gmra.mrb[0].mxu0 %v1764
  %v1877 = vpop.f32.mrb[0].mxu0
  %v1878 = vadd.f32 0.0, %v1877
  %v1879 = vpop.f32.mrb[0].mxu0
  %1880 = vmatprep.mubr.f32.mxu0 0.0
  %1881 = vmatmul.mubr.f32.gmra.mrb[0].mxu0 %v1767
  %v1882 = vpop.f32.mrb[0].mxu0
  %v1883 = vadd.f32 0.0, %v1882
  %v1884 = vpop.f32.mrb[0].mxu0
  %1885 = vmatprep.mubr.f32.mxu0 0.0
  %1886 = vmatmul.mubr.f32.gmra.mrb[0].mxu0 %v1770
  %v1887 = vpop.f32.mrb[0].mxu0
  %v1888 = vadd.f32 0.0, %v1887
  %v1889 = vpop.f32.mrb[0].mxu0
  %1890 = vmatprep.mubr.f32.mxu0 0.0
  %1891 = vmatmul.mubr.f32.gmra.mrb[0].mxu0 %v1773
  %v1892 = vpop.f32.mrb[0].mxu0
  %v1893 = vadd.f32 0.0, %v1892
  %v1894 = vpop.f32.mrb[0].mxu0
  %1895 = vmatprep.mubr.f32.mxu0 0.0
  %1896 = vmatmul.mubr.f32.gmra.mrb[0].mxu0 %v1776
  %v1897 = vpop.f32.mrb[0].mxu0
  %v1898 = vadd.f32 0.0, %v1897
  %v1899 = vpop.f32.mrb[0].mxu0
  %1900 = vmatprep.mubr.f32.mxu0 0.0
  %1901 = vmatmul.mubr.f32.gmra.mrb[0].mxu0 %v1779
  %v1902 = vpop.f32.mrb[0].mxu0
  %v1903 = vadd.f32 0.0, %v1902
  %v1904 = vpop.f32.mrb[0].mxu0
  %1905 = vmatprep.mubr.f32.mxu0 0.0
  %1906 = vmatmul.mubr.f32.gmra.mrb[0].mxu0 %v1782
  %v1907 = vpop.f32.mrb[0].mxu0
  %v1908 = vadd.f32 0.0, %v1907
  %v1909 = vpop.f32.mrb[0].mxu0
  %1910 = vmatprep.mubr.f32.mxu0 0.0
  %1911 = vmatmul.mubr.f32.gmra.mrb[0].mxu0 %v1785
  %v1912 = vpop.f32.mrb[0].mxu0
  %v1913 = vadd.f32 0.0, %v1912
  %v1914 = vpop.f32.mrb[0].mxu0
  %1915 = vmatprep.mubr.f32.mxu0 0.0
  %1916 = vmatmul.mubr.f32.gmra.mrb[0].mxu0 %v1788
  %v1917 = vpop.f32.mrb[0].mxu0
  %v1918 = vadd.f32 0.0, %v1917
  %v1919 = vpop.f32.mrb[0].mxu0
  %1920 = vmatprep.mubr.f32.mxu0 0.0
  %1921 = vmatmul.mubr.f32.gmra.mrb[0].mxu0 %v1791
  %v1922 = vpop.f32.mrb[0].mxu0
  %v1923 = vadd.f32 0.0, %v1922
  %v1924 = vpop.f32.mrb[0].mxu0
  %1925 = vmatprep.mubr.f32.mxu0 0.0
  %1926 = vmatmul.mubr.f32.gmra.mrb[0].mxu0 %v1794
  %v1927 = vpop.f32.mrb[0].mxu0
  %v1928 = vadd.f32 0.0, %v1927
  %v1929 = vpop.f32.mrb[0].mxu0
  %1930 = vmatprep.mubr.f32.mxu0 0.0
  %1931 = vmatmul.mubr.f32.gmra.mrb[0].mxu0 %v1797
  %v1932 = vpop.f32.mrb[0].mxu0
  %v1933 = vadd.f32 0.0, %v1932
  %v1934 = vpop.f32.mrb[0].mxu0
  %1935 = vmatprep.mubr.f32.mxu0 0.0
  %1936 = vmatmul.mubr.f32.gmra.mrb[0].mxu0 %v1800
  %v1937 = vpop.f32.mrb[0].mxu0
  %v1938 = vadd.f32 0.0, %v1937
  %v1939 = vpop.f32.mrb[0].mxu0
  %1940 = vmatprep.mubr.f32.mxu0 0.0
  %1941 = vmatmul.mubr.f32.gmra.mrb[0].mxu0 %v1803
  %v1942 = vpop.f32.mrb[0].mxu0
  %v1943 = vadd.f32 0.0, %v1942
  %v1944 = vpop.f32.mrb[0].mxu0
  %1945 = vmatprep.mubr.f32.mxu0 0.0
  %1946 = vmatmul.mubr.f32.gmra.mrb[0].mxu0 %v1806
  %v1947 = vpop.f32.mrb[0].mxu0
  %v1948 = vadd.f32 0.0, %v1947
  %v1949 = vpop.f32.mrb[0].mxu0
  %1950 = vmatprep.mubr.f32.mxu0 0.0
  %1951 = vmatmul.mubr.f32.gmra.mrb[0].mxu0 %v1809
  %v1952 = vpop.f32.mrb[0].mxu0
  %v1953 = vadd.f32 0.0, %v1952
  %v1954 = vpop.f32.mrb[0].mxu0
  %1955 = vdwg.mxu0
  %v1957 = vsel %vm587, %v1056, 0
  %v1960 = vsel %vm587, %v1061, 0
  %v1963 = vsel %vm587, %v1066, 0
  %v1966 = vsel %vm587, %v1071, 0
  %v1969 = vsel %vm587, %v1076, 0
  %v1972 = vsel %vm587, %v1081, 0
  %v1975 = vsel %vm587, %v1086, 0
  %v1978 = vsel %vm587, %v1091, 0
  %v1981 = vsel %vm587, %v1096, 0
  %v1984 = vsel %vm587, %v1101, 0
  %v1987 = vsel %vm587, %v1106, 0
  %v1990 = vsel %vm587, %v1111, 0
  %v1993 = vsel %vm587, %v1116, 0
  %v1996 = vsel %vm587, %v1121, 0
  %v1999 = vsel %vm587, %v1126, 0
  %v2002 = vsel %vm587, %v1131, 0
  %2004 = vmatprep.subr.mxu0 0.0
  %2005 = vmatpush1.msra.mxu0 %v1134
  %2006 = vmatprep.subr.mxu0 0.0
  %2007 = vmatpush1.msra.mxu0 0.0
  %2008 = vmatprep.subr.mxu0 0.0
  %2009 = vmatpush1.msra.mxu0 0.0
  %2010 = vmatprep.subr.mxu0 0.0
  %2011 = vmatpush1.msra.mxu0 0.0
  %2012 = vmatprep.subr.mxu0 0.0
  %2013 = vmatpush1.msra.mxu0 0.0
  %2014 = vmatprep.subr.mxu0 0.0
  %2015 = vmatpush1.msra.mxu0 0.0
  %2016 = vmatprep.subr.mxu0 0.0
  %2017 = vmatpush1.msra.mxu0 0.0
  %2018 = vmatprep.subr.mxu0 0.0
  %2019 = vmatpush1.msra.mxu0 0.0
  %2020 = vmatprep.subr.mxu0 0.0
  %2021 = vmatpush1.msra.mxu0 0.0
  %2022 = vmatprep.subr.mxu0 0.0
  %2023 = vmatpush1.msra.mxu0 0.0
  %2024 = vmatprep.subr.mxu0 0.0
  %2025 = vmatpush1.msra.mxu0 0.0
  %2026 = vmatprep.subr.mxu0 0.0
  %2027 = vmatpush1.msra.mxu0 0.0
  %2028 = vmatprep.subr.mxu0 0.0
  %2029 = vmatpush1.msra.mxu0 0.0
  %2030 = vmatprep.subr.mxu0 0.0
  %2031 = vmatpush1.msra.mxu0 0.0
  %2032 = vmatprep.subr.mxu0 0.0
  %2033 = vmatpush1.msra.mxu0 0.0
  %2034 = vmatprep.subr.mxu0 0.0
  %2035 = vmatpush1.msra.mxu0 0.0
  %2036 = vmatprep.subr.mxu0 0.0
  %2037 = vmatpush1.msra.mxu0 0.0
  %2038 = vmatprep.subr.mxu0 0.0
  %2039 = vmatpush1.msra.mxu0 0.0
  %2040 = vmatprep.subr.mxu0 0.0
  %2041 = vmatpush1.msra.mxu0 0.0
  %2042 = vmatprep.subr.mxu0 0.0
  %2043 = vmatpush1.msra.mxu0 0.0
  %2044 = vmatprep.subr.mxu0 0.0
  %2045 = vmatpush1.msra.mxu0 0.0
  %2046 = vmatprep.subr.mxu0 0.0
  %2047 = vmatpush1.msra.mxu0 0.0
  %2048 = vmatprep.subr.mxu0 0.0
  %2049 = vmatpush1.msra.mxu0 0.0
  %2050 = vmatprep.subr.mxu0 0.0
  %2051 = vmatpush1.msra.mxu0 0.0
  %2052 = vmatprep.subr.mxu0 0.0
  %2053 = vmatpush1.msra.mxu0 0.0
  %2054 = vmatprep.subr.mxu0 0.0
  %2055 = vmatpush1.msra.mxu0 0.0
  %2056 = vmatprep.subr.mxu0 0.0
  %2057 = vmatpush1.msra.mxu0 0.0
  %2058 = vmatprep.subr.mxu0 0.0
  %2059 = vmatpush1.msra.mxu0 0.0
  %2060 = vmatprep.subr.mxu0 0.0
  %2061 = vmatpush1.msra.mxu0 0.0
  %2062 = vmatprep.subr.mxu0 0.0
  %2063 = vmatpush1.msra.mxu0 0.0
  %2064 = vmatprep.subr.mxu0 0.0
  %2065 = vmatpush1.msra.mxu0 0.0
  %2066 = vmatprep.subr.mxu0 0.0
  %2067 = vmatpush1.msra.mxu0 0.0
  %2068 = vmatprep.mubr.f32.mxu0 0.0
  %2069 = vmatmul.mubr.f32.gmra.mrb[0].mxu0 %v1957
  %v2070 = vpop.f32.mrb[0].mxu0
  %v2071 = vadd.f32 %v1878, %v2070
  %v2072 = vpop.f32.mrb[0].mxu0
  %2073 = vmatprep.mubr.f32.mxu0 0.0
  %2074 = vmatmul.mubr.f32.gmra.mrb[0].mxu0 %v1960
  %v2075 = vpop.f32.mrb[0].mxu0
  %v2076 = vadd.f32 %v1883, %v2075
  %v2077 = vpop.f32.mrb[0].mxu0
  %2078 = vmatprep.mubr.f32.mxu0 0.0
  %2079 = vmatmul.mubr.f32.gmra.mrb[0].mxu0 %v1963
  %v2080 = vpop.f32.mrb[0].mxu0
  %v2081 = vadd.f32 %v1888, %v2080
  %v2082 = vpop.f32.mrb[0].mxu0
  %2083 = vmatprep.mubr.f32.mxu0 0.0
  %2084 = vmatmul.mubr.f32.gmra.mrb[0].mxu0 %v1966
  %v2085 = vpop.f32.mrb[0].mxu0
  %v2086 = vadd.f32 %v1893, %v2085
  %v2087 = vpop.f32.mrb[0].mxu0
  %2088 = vmatprep.mubr.f32.mxu0 0.0
  %2089 = vmatmul.mubr.f32.gmra.mrb[0].mxu0 %v1969
  %v2090 = vpop.f32.mrb[0].mxu0
  %v2091 = vadd.f32 %v1898, %v2090
  %v2092 = vpop.f32.mrb[0].mxu0
  %2093 = vmatprep.mubr.f32.mxu0 0.0
  %2094 = vmatmul.mubr.f32.gmra.mrb[0].mxu0 %v1972
  %v2095 = vpop.f32.mrb[0].mxu0
  %v2096 = vadd.f32 %v1903, %v2095
  %v2097 = vpop.f32.mrb[0].mxu0
  %2098 = vmatprep.mubr.f32.mxu0 0.0
  %2099 = vmatmul.mubr.f32.gmra.mrb[0].mxu0 %v1975
  %v2100 = vpop.f32.mrb[0].mxu0
  %v2101 = vadd.f32 %v1908, %v2100
  %v2102 = vpop.f32.mrb[0].mxu0
  %2103 = vmatprep.mubr.f32.mxu0 0.0
  %2104 = vmatmul.mubr.f32.gmra.mrb[0].mxu0 %v1978
  %v2105 = vpop.f32.mrb[0].mxu0
  %v2106 = vadd.f32 %v1913, %v2105
  %v2107 = vpop.f32.mrb[0].mxu0
  %2108 = vmatprep.mubr.f32.mxu0 0.0
  %2109 = vmatmul.mubr.f32.gmra.mrb[0].mxu0 %v1981
  %v2110 = vpop.f32.mrb[0].mxu0
  %v2111 = vadd.f32 %v1918, %v2110
  %v2112 = vpop.f32.mrb[0].mxu0
  %2113 = vmatprep.mubr.f32.mxu0 0.0
  %2114 = vmatmul.mubr.f32.gmra.mrb[0].mxu0 %v1984
  %v2115 = vpop.f32.mrb[0].mxu0
  %v2116 = vadd.f32 %v1923, %v2115
  %v2117 = vpop.f32.mrb[0].mxu0
  %2118 = vmatprep.mubr.f32.mxu0 0.0
  %2119 = vmatmul.mubr.f32.gmra.mrb[0].mxu0 %v1987
  %v2120 = vpop.f32.mrb[0].mxu0
  %v2121 = vadd.f32 %v1928, %v2120
  %v2122 = vpop.f32.mrb[0].mxu0
  %2123 = vmatprep.mubr.f32.mxu0 0.0
  %2124 = vmatmul.mubr.f32.gmra.mrb[0].mxu0 %v1990
  %v2125 = vpop.f32.mrb[0].mxu0
  %v2126 = vadd.f32 %v1933, %v2125
  %v2127 = vpop.f32.mrb[0].mxu0
  %2128 = vmatprep.mubr.f32.mxu0 0.0
  %2129 = vmatmul.mubr.f32.gmra.mrb[0].mxu0 %v1993
  %v2130 = vpop.f32.mrb[0].mxu0
  %v2131 = vadd.f32 %v1938, %v2130
  %v2132 = vpop.f32.mrb[0].mxu0
  %2133 = vmatprep.mubr.f32.mxu0 0.0
  %2134 = vmatmul.mubr.f32.gmra.mrb[0].mxu0 %v1996
  %v2135 = vpop.f32.mrb[0].mxu0
  %v2136 = vadd.f32 %v1943, %v2135
  %v2137 = vpop.f32.mrb[0].mxu0
  %2138 = vmatprep.mubr.f32.mxu0 0.0
  %2139 = vmatmul.mubr.f32.gmra.mrb[0].mxu0 %v1999
  %v2140 = vpop.f32.mrb[0].mxu0
  %v2141 = vadd.f32 %v1948, %v2140
  %v2142 = vpop.f32.mrb[0].mxu0
  %2143 = vmatprep.mubr.f32.mxu0 0.0
  %2144 = vmatmul.mubr.f32.gmra.mrb[0].mxu0 %v2002
  %v2145 = vpop.f32.mrb[0].mxu0
  %v2146 = vadd.f32 %v1953, %v2145
  %v2147 = vpop.f32.mrb[0].mxu0
  %2148 = vdwg.mxu0
  %s2149 = scalar_lea.vmem %s5, 256
  %v2150 = vld [vmem:[%s2149] sm:$0xff]
  %v2151 = vld [vmem:[%s2149 + $0x8] sm:$0xff]
  %v2152 = vld [vmem:[%s2149 + $0x10] sm:$0xff]
  %v2153 = vld [vmem:[%s2149 + $0x18] sm:$0xff]
  %v2154 = vld [vmem:[%s2149 + $0x20] sm:$0xff]
  %v2155 = vld [vmem:[%s2149 + $0x28] sm:$0xff]
  %v2156 = vld [vmem:[%s2149 + $0x30] sm:$0xff]
  %v2157 = vld [vmem:[%s2149 + $0x38] sm:$0xff]
  %v2158 = vld [vmem:[%s2149 + $0x40] sm:$0xff]
  %v2159 = vld [vmem:[%s2149 + $0x48] sm:$0xff]
  %v2160 = vld [vmem:[%s2149 + $0x50] sm:$0xff]
  %v2161 = vld [vmem:[%s2149 + $0x58] sm:$0xff]
  %v2162 = vld [vmem:[%s2149 + $0x60] sm:$0xff]
  %v2163 = vld [vmem:[%s2149 + $0x68] sm:$0xff]
  %v2164 = vld [vmem:[%s2149 + $0x70] sm:$0xff]
  %v2165 = vld [vmem:[%s2149 + $0x78] sm:$0xff]
  %2166 = vrot.lane.b32.xlu0 %v445, 112
  %v2167 = vpop.permute.xlu0 %2166
  %2168 = vrot.lane.b32.xlu0 %v450, 112
  %v2169 = vpop.permute.xlu0 %2168
  %2170 = vrot.lane.b32.xlu0 %v455, 112
  %v2171 = vpop.permute.xlu0 %2170
  %2172 = vrot.lane.b32.xlu0 %v460, 112
  %v2173 = vpop.permute.xlu0 %2172
  %2174 = vrot.lane.b32.xlu0 %v465, 112
  %v2175 = vpop.permute.xlu0 %2174
  %2176 = vrot.lane.b32.xlu0 %v470, 112
  %v2177 = vpop.permute.xlu0 %2176
  %2178 = vrot.lane.b32.xlu0 %v475, 112
  %v2179 = vpop.permute.xlu0 %2178
  %2180 = vrot.lane.b32.xlu0 %v480, 112
  %v2181 = vpop.permute.xlu0 %2180
  %2182 = vrot.lane.b32.xlu0 %v485, 112
  %v2183 = vpop.permute.xlu0 %2182
  %2184 = vrot.lane.b32.xlu0 %v490, 112
  %v2185 = vpop.permute.xlu0 %2184
  %2186 = vrot.lane.b32.xlu0 %v495, 112
  %v2187 = vpop.permute.xlu0 %2186
  %2188 = vrot.lane.b32.xlu0 %v500, 112
  %v2189 = vpop.permute.xlu0 %2188
  %2190 = vrot.lane.b32.xlu0 %v505, 112
  %v2191 = vpop.permute.xlu0 %2190
  %2192 = vrot.lane.b32.xlu0 %v510, 112
  %v2193 = vpop.permute.xlu0 %2192
  %2194 = vrot.lane.b32.xlu0 %v515, 112
  %v2195 = vpop.permute.xlu0 %2194
  %2196 = vrot.lane.b32.xlu0 %v520, 112
  %v2197 = vpop.permute.xlu0 %2196
  %2198 = vrot.lane.b32.xlu0 %v445, 80
  %v2199 = vpop.permute.xlu0 %2198
  %2200 = vrot.lane.b32.xlu0 %v450, 80
  %v2201 = vpop.permute.xlu0 %2200
  %2202 = vrot.lane.b32.xlu0 %v455, 80
  %v2203 = vpop.permute.xlu0 %2202
  %2204 = vrot.lane.b32.xlu0 %v460, 80
  %v2205 = vpop.permute.xlu0 %2204
  %2206 = vrot.lane.b32.xlu0 %v465, 80
  %v2207 = vpop.permute.xlu0 %2206
  %2208 = vrot.lane.b32.xlu0 %v470, 80
  %v2209 = vpop.permute.xlu0 %2208
  %2210 = vrot.lane.b32.xlu0 %v475, 80
  %v2211 = vpop.permute.xlu0 %2210
  %2212 = vrot.lane.b32.xlu0 %v480, 80
  %v2213 = vpop.permute.xlu0 %2212
  %2214 = vrot.lane.b32.xlu0 %v485, 80
  %v2215 = vpop.permute.xlu0 %2214
  %2216 = vrot.lane.b32.xlu0 %v490, 80
  %v2217 = vpop.permute.xlu0 %2216
  %2218 = vrot.lane.b32.xlu0 %v495, 80
  %v2219 = vpop.permute.xlu0 %2218
  %2220 = vrot.lane.b32.xlu0 %v500, 80
  %v2221 = vpop.permute.xlu0 %2220
  %2222 = vrot.lane.b32.xlu0 %v505, 80
  %v2223 = vpop.permute.xlu0 %2222
  %2224 = vrot.lane.b32.xlu0 %v510, 80
  %v2225 = vpop.permute.xlu0 %2224
  %2226 = vrot.lane.b32.xlu0 %v515, 80
  %v2227 = vpop.permute.xlu0 %2226
  %2228 = vrot.lane.b32.xlu0 %v520, 80
  %v2229 = vpop.permute.xlu0 %2228
  %v2230 = vsel %vm587, %v2167, 0
  %v2232 = vsel %vm587, %v2169, 0
  %v2234 = vsel %vm587, %v2171, 0
  %v2236 = vsel %vm587, %v2173, 0
  %v2238 = vsel %vm587, %v2175, 0
  %v2240 = vsel %vm587, %v2177, 0
  %v2242 = vsel %vm587, %v2179, 0
  %v2244 = vsel %vm587, %v2181, 0
  %v2246 = vsel %vm587, %v2183, 0
  %v2248 = vsel %vm587, %v2185, 0
  %v2250 = vsel %vm587, %v2187, 0
  %v2252 = vsel %vm587, %v2189, 0
  %v2254 = vsel %vm587, %v2191, 0
  %v2256 = vsel %vm587, %v2193, 0
  %v2258 = vsel %vm587, %v2195, 0
  %v2260 = vsel %vm587, %v2197, 0
  %v2262 = vsel %vm587, %v2199, 0
  %v2264 = vsel %vm587, %v2201, 0
  %v2266 = vsel %vm587, %v2203, 0
  %v2268 = vsel %vm587, %v2205, 0
  %v2270 = vsel %vm587, %v2207, 0
  %v2272 = vsel %vm587, %v2209, 0
  %v2274 = vsel %vm587, %v2211, 0
  %v2276 = vsel %vm587, %v2213, 0
  %v2278 = vsel %vm587, %v2215, 0
  %v2280 = vsel %vm587, %v2217, 0
  %v2282 = vsel %vm587, %v2219, 0
  %v2284 = vsel %vm587, %v2221, 0
  %v2286 = vsel %vm587, %v2223, 0
  %v2288 = vsel %vm587, %v2225, 0
  %v2290 = vsel %vm587, %v2227, 0
  %v2292 = vsel %vm587, %v2229, 0
  %2294 = vmatprep.subr.mxu0 0.0
  %2295 = vmatpush1.xpose.msra.mxu0 %v2262
  %2296 = vmatprep.subr.mxu0 0.0
  %2297 = vmatpush1.xpose.msra.mxu0 %v2264
  %2298 = vmatprep.subr.mxu0 0.0
  %2299 = vmatpush1.xpose.msra.mxu0 %v2266
  %2300 = vmatprep.subr.mxu0 0.0
  %2301 = vmatpush1.xpose.msra.mxu0 %v2268
  %2302 = vmatprep.subr.mxu0 0.0
  %2303 = vmatpush1.xpose.msra.mxu0 %v2270
  %2304 = vmatprep.subr.mxu0 0.0
  %2305 = vmatpush1.xpose.msra.mxu0 %v2272
  %2306 = vmatprep.subr.mxu0 0.0
  %2307 = vmatpush1.xpose.msra.mxu0 %v2274
  %2308 = vmatprep.subr.mxu0 0.0
  %2309 = vmatpush1.xpose.msra.mxu0 %v2276
  %2310 = vmatprep.subr.mxu0 0.0
  %2311 = vmatpush1.xpose.msra.mxu0 %v2278
  %2312 = vmatprep.subr.mxu0 0.0
  %2313 = vmatpush1.xpose.msra.mxu0 %v2280
  %2314 = vmatprep.subr.mxu0 0.0
  %2315 = vmatpush1.xpose.msra.mxu0 %v2282
  %2316 = vmatprep.subr.mxu0 0.0
  %2317 = vmatpush1.xpose.msra.mxu0 %v2284
  %2318 = vmatprep.subr.mxu0 0.0
  %2319 = vmatpush1.xpose.msra.mxu0 %v2286
  %2320 = vmatprep.subr.mxu0 0.0
  %2321 = vmatpush1.xpose.msra.mxu0 %v2288
  %2322 = vmatprep.subr.mxu0 0.0
  %2323 = vmatpush1.xpose.msra.mxu0 %v2290
  %2324 = vmatprep.subr.mxu0 0.0
  %2325 = vmatpush1.xpose.msra.mxu0 %v2292
  %2326 = vmatprep.subr.mxu0 0.0
  %2327 = vmatpush1.xpose.msra.mxu0 0.0
  %2328 = vmatprep.subr.mxu0 0.0
  %2329 = vmatpush1.xpose.msra.mxu0 0.0
  %2330 = vmatprep.subr.mxu0 0.0
  %2331 = vmatpush1.xpose.msra.mxu0 0.0
  %2332 = vmatprep.subr.mxu0 0.0
  %2333 = vmatpush1.xpose.msra.mxu0 0.0
  %2334 = vmatprep.subr.mxu0 0.0
  %2335 = vmatpush1.xpose.msra.mxu0 0.0
  %2336 = vmatprep.subr.mxu0 0.0
  %2337 = vmatpush1.xpose.msra.mxu0 0.0
  %2338 = vmatprep.subr.mxu0 0.0
  %2339 = vmatpush1.xpose.msra.mxu0 0.0
  %2340 = vmatprep.subr.mxu0 0.0
  %2341 = vmatpush1.xpose.msra.mxu0 0.0
  %2342 = vmatprep.subr.mxu0 0.0
  %2343 = vmatpush1.xpose.msra.mxu0 0.0
  %2344 = vmatprep.subr.mxu0 0.0
  %2345 = vmatpush1.xpose.msra.mxu0 0.0
  %2346 = vmatprep.subr.mxu0 0.0
  %2347 = vmatpush1.xpose.msra.mxu0 0.0
  %2348 = vmatprep.subr.mxu0 0.0
  %2349 = vmatpush1.xpose.msra.mxu0 0.0
  %2350 = vmatprep.subr.mxu0 0.0
  %2351 = vmatpush1.xpose.msra.mxu0 0.0
  %2352 = vmatprep.subr.mxu0 0.0
  %2353 = vmatpush1.xpose.msra.mxu0 0.0
  %2354 = vmatprep.subr.mxu0 0.0
  %2355 = vmatpush1.xpose.msra.mxu0 0.0
  %2356 = vmatprep.subr.mxu0 0.0
  %2357 = vmatpush1.xpose.msra.mxu0 0.0
  %2358 = vmatprep.mubr.f32.mxu0 0.0
  %2359 = vmatmul.mubr.f32.gmra.mrb[0].mxu0 %v2230
  %v2360 = vpop.f32.mrb[0].mxu0
  %v2361 = vadd.f32 %v2150, %v2360
  %v2362 = vpop.f32.mrb[0].mxu0
  %2363 = vmatprep.mubr.f32.mxu0 0.0
  %2364 = vmatmul.mubr.f32.gmra.mrb[0].mxu0 %v2232
  %v2365 = vpop.f32.mrb[0].mxu0
  %v2366 = vadd.f32 %v2151, %v2365
  %v2367 = vpop.f32.mrb[0].mxu0
  %2368 = vmatprep.mubr.f32.mxu0 0.0
  %2369 = vmatmul.mubr.f32.gmra.mrb[0].mxu0 %v2234
  %v2370 = vpop.f32.mrb[0].mxu0
  %v2371 = vadd.f32 %v2152, %v2370
  %v2372 = vpop.f32.mrb[0].mxu0
  %2373 = vmatprep.mubr.f32.mxu0 0.0
  %2374 = vmatmul.mubr.f32.gmra.mrb[0].mxu0 %v2236
  %v2375 = vpop.f32.mrb[0].mxu0
  %v2376 = vadd.f32 %v2153, %v2375
  %v2377 = vpop.f32.mrb[0].mxu0
  %2378 = vmatprep.mubr.f32.mxu0 0.0
  %2379 = vmatmul.mubr.f32.gmra.mrb[0].mxu0 %v2238
  %v2380 = vpop.f32.mrb[0].mxu0
  %v2381 = vadd.f32 %v2154, %v2380
  %v2382 = vpop.f32.mrb[0].mxu0
  %2383 = vmatprep.mubr.f32.mxu0 0.0
  %2384 = vmatmul.mubr.f32.gmra.mrb[0].mxu0 %v2240
  %v2385 = vpop.f32.mrb[0].mxu0
  %v2386 = vadd.f32 %v2155, %v2385
  %v2387 = vpop.f32.mrb[0].mxu0
  %2388 = vmatprep.mubr.f32.mxu0 0.0
  %2389 = vmatmul.mubr.f32.gmra.mrb[0].mxu0 %v2242
  %v2390 = vpop.f32.mrb[0].mxu0
  %v2391 = vadd.f32 %v2156, %v2390
  %v2392 = vpop.f32.mrb[0].mxu0
  %2393 = vmatprep.mubr.f32.mxu0 0.0
  %2394 = vmatmul.mubr.f32.gmra.mrb[0].mxu0 %v2244
  %v2395 = vpop.f32.mrb[0].mxu0
  %v2396 = vadd.f32 %v2157, %v2395
  %v2397 = vpop.f32.mrb[0].mxu0
  %2398 = vmatprep.mubr.f32.mxu0 0.0
  %2399 = vmatmul.mubr.f32.gmra.mrb[0].mxu0 %v2246
  %v2400 = vpop.f32.mrb[0].mxu0
  %v2401 = vadd.f32 %v2158, %v2400
  %v2402 = vpop.f32.mrb[0].mxu0
  %2403 = vmatprep.mubr.f32.mxu0 0.0
  %2404 = vmatmul.mubr.f32.gmra.mrb[0].mxu0 %v2248
  %v2405 = vpop.f32.mrb[0].mxu0
  %v2406 = vadd.f32 %v2159, %v2405
  %v2407 = vpop.f32.mrb[0].mxu0
  %2408 = vmatprep.mubr.f32.mxu0 0.0
  %2409 = vmatmul.mubr.f32.gmra.mrb[0].mxu0 %v2250
  %v2410 = vpop.f32.mrb[0].mxu0
  %v2411 = vadd.f32 %v2160, %v2410
  %v2412 = vpop.f32.mrb[0].mxu0
  %2413 = vmatprep.mubr.f32.mxu0 0.0
  %2414 = vmatmul.mubr.f32.gmra.mrb[0].mxu0 %v2252
  %v2415 = vpop.f32.mrb[0].mxu0
  %v2416 = vadd.f32 %v2161, %v2415
  %v2417 = vpop.f32.mrb[0].mxu0
  %2418 = vmatprep.mubr.f32.mxu0 0.0
  %2419 = vmatmul.mubr.f32.gmra.mrb[0].mxu0 %v2254
  %v2420 = vpop.f32.mrb[0].mxu0
  %v2421 = vadd.f32 %v2162, %v2420
  %v2422 = vpop.f32.mrb[0].mxu0
  %2423 = vmatprep.mubr.f32.mxu0 0.0
  %2424 = vmatmul.mubr.f32.gmra.mrb[0].mxu0 %v2256
  %v2425 = vpop.f32.mrb[0].mxu0
  %v2426 = vadd.f32 %v2163, %v2425
  %v2427 = vpop.f32.mrb[0].mxu0
  %2428 = vmatprep.mubr.f32.mxu0 0.0
  %2429 = vmatmul.mubr.f32.gmra.mrb[0].mxu0 %v2258
  %v2430 = vpop.f32.mrb[0].mxu0
  %v2431 = vadd.f32 %v2164, %v2430
  %v2432 = vpop.f32.mrb[0].mxu0
  %2433 = vmatprep.mubr.f32.mxu0 0.0
  %2434 = vmatmul.mubr.f32.gmra.mrb[0].mxu0 %v2260
  %v2435 = vpop.f32.mrb[0].mxu0
  %v2436 = vadd.f32 %v2165, %v2435
  %v2437 = vpop.f32.mrb[0].mxu0
  %2438 = vdwg.mxu0
  %2439 = vmax.xlane.f32.xlu0 %v2361
  %v2440 = vpop.xlane.xlu0 %2439
  %2441 = vmax.xlane.f32.xlu0 %v2366
  %v2442 = vpop.xlane.xlu0 %2441
  %2443 = vmax.xlane.f32.xlu0 %v2371
  %v2444 = vpop.xlane.xlu0 %2443
  %2445 = vmax.xlane.f32.xlu0 %v2376
  %v2446 = vpop.xlane.xlu0 %2445
  %2447 = vmax.xlane.f32.xlu0 %v2381
  %v2448 = vpop.xlane.xlu0 %2447
  %2449 = vmax.xlane.f32.xlu0 %v2386
  %v2450 = vpop.xlane.xlu0 %2449
  %2451 = vmax.xlane.f32.xlu0 %v2391
  %v2452 = vpop.xlane.xlu0 %2451
  %2453 = vmax.xlane.f32.xlu0 %v2396
  %v2454 = vpop.xlane.xlu0 %2453
  %2455 = vmax.xlane.f32.xlu0 %v2401
  %v2456 = vpop.xlane.xlu0 %2455
  %2457 = vmax.xlane.f32.xlu0 %v2406
  %v2458 = vpop.xlane.xlu0 %2457
  %2459 = vmax.xlane.f32.xlu0 %v2411
  %v2460 = vpop.xlane.xlu0 %2459
  %2461 = vmax.xlane.f32.xlu0 %v2416
  %v2462 = vpop.xlane.xlu0 %2461
  %2463 = vmax.xlane.f32.xlu0 %v2421
  %v2464 = vpop.xlane.xlu0 %2463
  %2465 = vmax.xlane.f32.xlu0 %v2426
  %v2466 = vpop.xlane.xlu0 %2465
  %2467 = vmax.xlane.f32.xlu0 %v2431
  %v2468 = vpop.xlane.xlu0 %2467
  %2469 = vmax.xlane.f32.xlu0 %v2436
  %v2470 = vpop.xlane.xlu0 %2469
  %v2471 = vsub.f32 %v2361, %v2440
  %v2472 = vsub.f32 %v2366, %v2442
  %v2473 = vsub.f32 %v2371, %v2444
  %v2474 = vsub.f32 %v2376, %v2446
  %v2475 = vsub.f32 %v2381, %v2448
  %v2476 = vsub.f32 %v2386, %v2450
  %v2477 = vsub.f32 %v2391, %v2452
  %v2478 = vsub.f32 %v2396, %v2454
  %v2479 = vsub.f32 %v2401, %v2456
  %v2480 = vsub.f32 %v2406, %v2458
  %v2481 = vsub.f32 %v2411, %v2460
  %v2482 = vsub.f32 %v2416, %v2462
  %v2483 = vsub.f32 %v2421, %v2464
  %v2484 = vsub.f32 %v2426, %v2466
  %v2485 = vsub.f32 %v2431, %v2468
  %v2486 = vsub.f32 %v2436, %v2470
  %v2487 = vmul.f32 %v2471, 1.442695
  %v2488 = vpow.pop %v2487
  %v2489 = vmul.f32 %v2472, 1.442695
  %v2490 = vpow.pop %v2489
  %v2491 = vmul.f32 %v2473, 1.442695
  %v2492 = vpow.pop %v2491
  %v2493 = vmul.f32 %v2474, 1.442695
  %v2494 = vpow.pop %v2493
  %v2495 = vmul.f32 %v2475, 1.442695
  %v2496 = vpow.pop %v2495
  %v2497 = vmul.f32 %v2476, 1.442695
  %v2498 = vpow.pop %v2497
  %v2499 = vmul.f32 %v2477, 1.442695
  %v2500 = vpow.pop %v2499
  %v2501 = vmul.f32 %v2478, 1.442695
  %v2502 = vpow.pop %v2501
  %v2503 = vmul.f32 %v2479, 1.442695
  %v2504 = vpow.pop %v2503
  %v2505 = vmul.f32 %v2480, 1.442695
  %v2506 = vpow.pop %v2505
  %v2507 = vmul.f32 %v2481, 1.442695
  %v2508 = vpow.pop %v2507
  %v2509 = vmul.f32 %v2482, 1.442695
  %v2510 = vpow.pop %v2509
  %v2511 = vmul.f32 %v2483, 1.442695
  %v2512 = vpow.pop %v2511
  %v2513 = vmul.f32 %v2484, 1.442695
  %v2514 = vpow.pop %v2513
  %v2515 = vmul.f32 %v2485, 1.442695
  %v2516 = vpow.pop %v2515
  %v2517 = vmul.f32 %v2486, 1.442695
  %v2518 = vpow.pop %v2517
  %2519 = vadd.xlane.f32.xlu0 %v2488
  %v2520 = vpop.xlane.xlu0 %2519
  %2521 = vadd.xlane.f32.xlu0 %v2490
  %v2522 = vpop.xlane.xlu0 %2521
  %2523 = vadd.xlane.f32.xlu0 %v2492
  %v2524 = vpop.xlane.xlu0 %2523
  %2525 = vadd.xlane.f32.xlu0 %v2494
  %v2526 = vpop.xlane.xlu0 %2525
  %2527 = vadd.xlane.f32.xlu0 %v2496
  %v2528 = vpop.xlane.xlu0 %2527
  %2529 = vadd.xlane.f32.xlu0 %v2498
  %v2530 = vpop.xlane.xlu0 %2529
  %2531 = vadd.xlane.f32.xlu0 %v2500
  %v2532 = vpop.xlane.xlu0 %2531
  %2533 = vadd.xlane.f32.xlu0 %v2502
  %v2534 = vpop.xlane.xlu0 %2533
  %2535 = vadd.xlane.f32.xlu0 %v2504
  %v2536 = vpop.xlane.xlu0 %2535
  %2537 = vadd.xlane.f32.xlu0 %v2506
  %v2538 = vpop.xlane.xlu0 %2537
  %2539 = vadd.xlane.f32.xlu0 %v2508
  %v2540 = vpop.xlane.xlu0 %2539
  %2541 = vadd.xlane.f32.xlu0 %v2510
  %v2542 = vpop.xlane.xlu0 %2541
  %2543 = vadd.xlane.f32.xlu0 %v2512
  %v2544 = vpop.xlane.xlu0 %2543
  %2545 = vadd.xlane.f32.xlu0 %v2514
  %v2546 = vpop.xlane.xlu0 %2545
  %2547 = vadd.xlane.f32.xlu0 %v2516
  %v2548 = vpop.xlane.xlu0 %2547
  %2549 = vadd.xlane.f32.xlu0 %v2518
  %v2550 = vpop.xlane.xlu0 %2549
  %v2551 = vrcp.pop %v2520
  %v2552 = vrcp.pop %v2522
  %v2553 = vrcp.pop %v2524
  %v2554 = vrcp.pop %v2526
  %v2555 = vrcp.pop %v2528
  %v2556 = vrcp.pop %v2530
  %v2557 = vrcp.pop %v2532
  %v2558 = vrcp.pop %v2534
  %v2559 = vrcp.pop %v2536
  %v2560 = vrcp.pop %v2538
  %v2561 = vrcp.pop %v2540
  %v2562 = vrcp.pop %v2542
  %v2563 = vrcp.pop %v2544
  %v2564 = vrcp.pop %v2546
  %v2565 = vrcp.pop %v2548
  %v2566 = vrcp.pop %v2550
  %v2567 = vmul.f32 %v2488, %v2551
  %v2568 = vmul.f32 %v2490, %v2552
  %v2569 = vmul.f32 %v2492, %v2553
  %v2570 = vmul.f32 %v2494, %v2554
  %v2571 = vmul.f32 %v2496, %v2555
  %v2572 = vmul.f32 %v2498, %v2556
  %v2573 = vmul.f32 %v2500, %v2557
  %v2574 = vmul.f32 %v2502, %v2558
  %v2575 = vmul.f32 %v2504, %v2559
  %v2576 = vmul.f32 %v2506, %v2560
  %v2577 = vmul.f32 %v2508, %v2561
  %v2578 = vmul.f32 %v2510, %v2562
  %v2579 = vmul.f32 %v2512, %v2563
  %v2580 = vmul.f32 %v2514, %v2564
  %v2581 = vmul.f32 %v2516, %v2565
  %v2582 = vmul.f32 %v2518, %v2566
  %2583 = vrot.lane.b32.xlu0 %v445, 48
  %v2584 = vpop.permute.xlu0 %2583
  %2585 = vrot.lane.b32.xlu0 %v450, 48
  %v2586 = vpop.permute.xlu0 %2585
  %2587 = vrot.lane.b32.xlu0 %v455, 48
  %v2588 = vpop.permute.xlu0 %2587
  %2589 = vrot.lane.b32.xlu0 %v460, 48
  %v2590 = vpop.permute.xlu0 %2589
  %2591 = vrot.lane.b32.xlu0 %v465, 48
  %v2592 = vpop.permute.xlu0 %2591
  %2593 = vrot.lane.b32.xlu0 %v470, 48
  %v2594 = vpop.permute.xlu0 %2593
  %2595 = vrot.lane.b32.xlu0 %v475, 48
  %v2596 = vpop.permute.xlu0 %2595
  %2597 = vrot.lane.b32.xlu0 %v480, 48
  %v2598 = vpop.permute.xlu0 %2597
  %2599 = vrot.lane.b32.xlu0 %v485, 48
  %v2600 = vpop.permute.xlu0 %2599
  %2601 = vrot.lane.b32.xlu0 %v490, 48
  %v2602 = vpop.permute.xlu0 %2601
  %2603 = vrot.lane.b32.xlu0 %v495, 48
  %v2604 = vpop.permute.xlu0 %2603
  %2605 = vrot.lane.b32.xlu0 %v500, 48
  %v2606 = vpop.permute.xlu0 %2605
  %2607 = vrot.lane.b32.xlu0 %v505, 48
  %v2608 = vpop.permute.xlu0 %2607
  %2609 = vrot.lane.b32.xlu0 %v510, 48
  %v2610 = vpop.permute.xlu0 %2609
  %2611 = vrot.lane.b32.xlu0 %v515, 48
  %v2612 = vpop.permute.xlu0 %2611
  %2613 = vrot.lane.b32.xlu0 %v520, 48
  %v2614 = vpop.permute.xlu0 %2613
  %2631 = vmatprep.subr.mxu0 0.0
  %2632 = vmatpush1.msra.mxu0 %v2584
  %2633 = vmatprep.subr.mxu0 0.0
  %2634 = vmatpush1.msra.mxu0 %v2586
  %2635 = vmatprep.subr.mxu0 0.0
  %2636 = vmatpush1.msra.mxu0 %v2588
  %2637 = vmatprep.subr.mxu0 0.0
  %2638 = vmatpush1.msra.mxu0 %v2590
  %2639 = vmatprep.subr.mxu0 0.0
  %2640 = vmatpush1.msra.mxu0 %v2592
  %2641 = vmatprep.subr.mxu0 0.0
  %2642 = vmatpush1.msra.mxu0 %v2594
  %2643 = vmatprep.subr.mxu0 0.0
  %2644 = vmatpush1.msra.mxu0 %v2596
  %2645 = vmatprep.subr.mxu0 0.0
  %2646 = vmatpush1.msra.mxu0 %v2598
  %2647 = vmatprep.subr.mxu0 0.0
  %2648 = vmatpush1.msra.mxu0 %v2600
  %2649 = vmatprep.subr.mxu0 0.0
  %2650 = vmatpush1.msra.mxu0 %v2602
  %2651 = vmatprep.subr.mxu0 0.0
  %2652 = vmatpush1.msra.mxu0 %v2604
  %2653 = vmatprep.subr.mxu0 0.0
  %2654 = vmatpush1.msra.mxu0 %v2606
  %2655 = vmatprep.subr.mxu0 0.0
  %2656 = vmatpush1.msra.mxu0 %v2608
  %2657 = vmatprep.subr.mxu0 0.0
  %2658 = vmatpush1.msra.mxu0 %v2610
  %2659 = vmatprep.subr.mxu0 0.0
  %2660 = vmatpush1.msra.mxu0 %v2612
  %2661 = vmatprep.subr.mxu0 0.0
  %2662 = vmatpush1.msra.mxu0 %v2614
  %2663 = vmatprep.subr.mxu0 0.0
  %2664 = vmatpush1.msra.mxu0 0.0
  %2665 = vmatprep.subr.mxu0 0.0
  %2666 = vmatpush1.msra.mxu0 0.0
  %2667 = vmatprep.subr.mxu0 0.0
  %2668 = vmatpush1.msra.mxu0 0.0
  %2669 = vmatprep.subr.mxu0 0.0
  %2670 = vmatpush1.msra.mxu0 0.0
  %2671 = vmatprep.subr.mxu0 0.0
  %2672 = vmatpush1.msra.mxu0 0.0
  %2673 = vmatprep.subr.mxu0 0.0
  %2674 = vmatpush1.msra.mxu0 0.0
  %2675 = vmatprep.subr.mxu0 0.0
  %2676 = vmatpush1.msra.mxu0 0.0
  %2677 = vmatprep.subr.mxu0 0.0
  %2678 = vmatpush1.msra.mxu0 0.0
  %2679 = vmatprep.subr.mxu0 0.0
  %2680 = vmatpush1.msra.mxu0 0.0
  %2681 = vmatprep.subr.mxu0 0.0
  %2682 = vmatpush1.msra.mxu0 0.0
  %2683 = vmatprep.subr.mxu0 0.0
  %2684 = vmatpush1.msra.mxu0 0.0
  %2685 = vmatprep.subr.mxu0 0.0
  %2686 = vmatpush1.msra.mxu0 0.0
  %2687 = vmatprep.subr.mxu0 0.0
  %2688 = vmatpush1.msra.mxu0 0.0
  %2689 = vmatprep.subr.mxu0 0.0
  %2690 = vmatpush1.msra.mxu0 0.0
  %2691 = vmatprep.subr.mxu0 0.0
  %2692 = vmatpush1.msra.mxu0 0.0
  %2693 = vmatprep.subr.mxu0 0.0
  %2694 = vmatpush1.msra.mxu0 0.0
  %2695 = vmatprep.mubr.f32.mxu0 0.0
  %2696 = vmatmul.mubr.f32.gmra.mrb[0].mxu0 %v2567
  %v2697 = vpop.f32.mrb[0].mxu0
  %v2698 = vadd.f32 0.0, %v2697
  %v2699 = vpop.f32.mrb[0].mxu0
  %2700 = vmatprep.mubr.f32.mxu0 0.0
  %2701 = vmatmul.mubr.f32.gmra.mrb[0].mxu0 %v2568
  %v2702 = vpop.f32.mrb[0].mxu0
  %v2703 = vadd.f32 0.0, %v2702
  %v2704 = vpop.f32.mrb[0].mxu0
  %2705 = vmatprep.mubr.f32.mxu0 0.0
  %2706 = vmatmul.mubr.f32.gmra.mrb[0].mxu0 %v2569
  %v2707 = vpop.f32.mrb[0].mxu0
  %v2708 = vadd.f32 0.0, %v2707
  %v2709 = vpop.f32.mrb[0].mxu0
  %2710 = vmatprep.mubr.f32.mxu0 0.0
  %2711 = vmatmul.mubr.f32.gmra.mrb[0].mxu0 %v2570
  %v2712 = vpop.f32.mrb[0].mxu0
  %v2713 = vadd.f32 0.0, %v2712
  %v2714 = vpop.f32.mrb[0].mxu0
  %2715 = vmatprep.mubr.f32.mxu0 0.0
  %2716 = vmatmul.mubr.f32.gmra.mrb[0].mxu0 %v2571
  %v2717 = vpop.f32.mrb[0].mxu0
  %v2718 = vadd.f32 0.0, %v2717
  %v2719 = vpop.f32.mrb[0].mxu0
  %2720 = vmatprep.mubr.f32.mxu0 0.0
  %2721 = vmatmul.mubr.f32.gmra.mrb[0].mxu0 %v2572
  %v2722 = vpop.f32.mrb[0].mxu0
  %v2723 = vadd.f32 0.0, %v2722
  %v2724 = vpop.f32.mrb[0].mxu0
  %2725 = vmatprep.mubr.f32.mxu0 0.0
  %2726 = vmatmul.mubr.f32.gmra.mrb[0].mxu0 %v2573
  %v2727 = vpop.f32.mrb[0].mxu0
  %v2728 = vadd.f32 0.0, %v2727
  %v2729 = vpop.f32.mrb[0].mxu0
  %2730 = vmatprep.mubr.f32.mxu0 0.0
  %2731 = vmatmul.mubr.f32.gmra.mrb[0].mxu0 %v2574
  %v2732 = vpop.f32.mrb[0].mxu0
  %v2733 = vadd.f32 0.0, %v2732
  %v2734 = vpop.f32.mrb[0].mxu0
  %2735 = vmatprep.mubr.f32.mxu0 0.0
  %2736 = vmatmul.mubr.f32.gmra.mrb[0].mxu0 %v2575
  %v2737 = vpop.f32.mrb[0].mxu0
  %v2738 = vadd.f32 0.0, %v2737
  %v2739 = vpop.f32.mrb[0].mxu0
  %2740 = vmatprep.mubr.f32.mxu0 0.0
  %2741 = vmatmul.mubr.f32.gmra.mrb[0].mxu0 %v2576
  %v2742 = vpop.f32.mrb[0].mxu0
  %v2743 = vadd.f32 0.0, %v2742
  %v2744 = vpop.f32.mrb[0].mxu0
  %2745 = vmatprep.mubr.f32.mxu0 0.0
  %2746 = vmatmul.mubr.f32.gmra.mrb[0].mxu0 %v2577
  %v2747 = vpop.f32.mrb[0].mxu0
  %v2748 = vadd.f32 0.0, %v2747
  %v2749 = vpop.f32.mrb[0].mxu0
  %2750 = vmatprep.mubr.f32.mxu0 0.0
  %2751 = vmatmul.mubr.f32.gmra.mrb[0].mxu0 %v2578
  %v2752 = vpop.f32.mrb[0].mxu0
  %v2753 = vadd.f32 0.0, %v2752
  %v2754 = vpop.f32.mrb[0].mxu0
  %2755 = vmatprep.mubr.f32.mxu0 0.0
  %2756 = vmatmul.mubr.f32.gmra.mrb[0].mxu0 %v2579
  %v2757 = vpop.f32.mrb[0].mxu0
  %v2758 = vadd.f32 0.0, %v2757
  %v2759 = vpop.f32.mrb[0].mxu0
  %2760 = vmatprep.mubr.f32.mxu0 0.0
  %2761 = vmatmul.mubr.f32.gmra.mrb[0].mxu0 %v2580
  %v2762 = vpop.f32.mrb[0].mxu0
  %v2763 = vadd.f32 0.0, %v2762
  %v2764 = vpop.f32.mrb[0].mxu0
  %2765 = vmatprep.mubr.f32.mxu0 0.0
  %2766 = vmatmul.mubr.f32.gmra.mrb[0].mxu0 %v2581
  %v2767 = vpop.f32.mrb[0].mxu0
  %v2768 = vadd.f32 0.0, %v2767
  %v2769 = vpop.f32.mrb[0].mxu0
  %2770 = vmatprep.mubr.f32.mxu0 0.0
  %2771 = vmatmul.mubr.f32.gmra.mrb[0].mxu0 %v2582
  %v2772 = vpop.f32.mrb[0].mxu0
  %v2773 = vadd.f32 0.0, %v2772
  %v2774 = vpop.f32.mrb[0].mxu0
  %2775 = vdwg.mxu0
  %v2776 = vld [vmem:[%s6 + $0x10] sm:$0xff]
  %v2778 = vsel %vm587, %v2698, 0
  %v2781 = vsel %vm587, %v2703, 0
  %v2784 = vsel %vm587, %v2708, 0
  %v2787 = vsel %vm587, %v2713, 0
  %v2790 = vsel %vm587, %v2718, 0
  %v2793 = vsel %vm587, %v2723, 0
  %v2796 = vsel %vm587, %v2728, 0
  %v2799 = vsel %vm587, %v2733, 0
  %v2802 = vsel %vm587, %v2738, 0
  %v2805 = vsel %vm587, %v2743, 0
  %v2808 = vsel %vm587, %v2748, 0
  %v2811 = vsel %vm587, %v2753, 0
  %v2814 = vsel %vm587, %v2758, 0
  %v2817 = vsel %vm587, %v2763, 0
  %v2820 = vsel %vm587, %v2768, 0
  %v2823 = vsel %vm587, %v2773, 0
  %2825 = vmatprep.subr.mxu0 0.0
  %2826 = vmatpush1.msra.mxu0 %v2776
  %2827 = vmatprep.subr.mxu0 0.0
  %2828 = vmatpush1.msra.mxu0 0.0
  %2829 = vmatprep.subr.mxu0 0.0
  %2830 = vmatpush1.msra.mxu0 0.0
  %2831 = vmatprep.subr.mxu0 0.0
  %2832 = vmatpush1.msra.mxu0 0.0
  %2833 = vmatprep.subr.mxu0 0.0
  %2834 = vmatpush1.msra.mxu0 0.0
  %2835 = vmatprep.subr.mxu0 0.0
  %2836 = vmatpush1.msra.mxu0 0.0
  %2837 = vmatprep.subr.mxu0 0.0
  %2838 = vmatpush1.msra.mxu0 0.0
  %2839 = vmatprep.subr.mxu0 0.0
  %2840 = vmatpush1.msra.mxu0 0.0
  %2841 = vmatprep.subr.mxu0 0.0
  %2842 = vmatpush1.msra.mxu0 0.0
  %2843 = vmatprep.subr.mxu0 0.0
  %2844 = vmatpush1.msra.mxu0 0.0
  %2845 = vmatprep.subr.mxu0 0.0
  %2846 = vmatpush1.msra.mxu0 0.0
  %2847 = vmatprep.subr.mxu0 0.0
  %2848 = vmatpush1.msra.mxu0 0.0
  %2849 = vmatprep.subr.mxu0 0.0
  %2850 = vmatpush1.msra.mxu0 0.0
  %2851 = vmatprep.subr.mxu0 0.0
  %2852 = vmatpush1.msra.mxu0 0.0
  %2853 = vmatprep.subr.mxu0 0.0
  %2854 = vmatpush1.msra.mxu0 0.0
  %2855 = vmatprep.subr.mxu0 0.0
  %2856 = vmatpush1.msra.mxu0 0.0
  %2857 = vmatprep.subr.mxu0 0.0
  %2858 = vmatpush1.msra.mxu0 0.0
  %2859 = vmatprep.subr.mxu0 0.0
  %2860 = vmatpush1.msra.mxu0 0.0
  %2861 = vmatprep.subr.mxu0 0.0
  %2862 = vmatpush1.msra.mxu0 0.0
  %2863 = vmatprep.subr.mxu0 0.0
  %2864 = vmatpush1.msra.mxu0 0.0
  %2865 = vmatprep.subr.mxu0 0.0
  %2866 = vmatpush1.msra.mxu0 0.0
  %2867 = vmatprep.subr.mxu0 0.0
  %2868 = vmatpush1.msra.mxu0 0.0
  %2869 = vmatprep.subr.mxu0 0.0
  %2870 = vmatpush1.msra.mxu0 0.0
  %2871 = vmatprep.subr.mxu0 0.0
  %2872 = vmatpush1.msra.mxu0 0.0
  %2873 = vmatprep.subr.mxu0 0.0
  %2874 = vmatpush1.msra.mxu0 0.0
  %2875 = vmatprep.subr.mxu0 0.0
  %2876 = vmatpush1.msra.mxu0 0.0
  %2877 = vmatprep.subr.mxu0 0.0
  %2878 = vmatpush1.msra.mxu0 0.0
  %2879 = vmatprep.subr.mxu0 0.0
  %2880 = vmatpush1.msra.mxu0 0.0
  %2881 = vmatprep.subr.mxu0 0.0
  %2882 = vmatpush1.msra.mxu0 0.0
  %2883 = vmatprep.subr.mxu0 0.0
  %2884 = vmatpush1.msra.mxu0 0.0
  %2885 = vmatprep.subr.mxu0 0.0
  %2886 = vmatpush1.msra.mxu0 0.0
  %2887 = vmatprep.subr.mxu0 0.0
  %2888 = vmatpush1.msra.mxu0 0.0
  %2889 = vmatprep.mubr.f32.mxu0 0.0
  %2890 = vmatmul.mubr.f32.gmra.mrb[0].mxu0 %v2778
  %v2891 = vpop.f32.mrb[0].mxu0
  %v2892 = vadd.f32 0.0, %v2891
  %v2893 = vpop.f32.mrb[0].mxu0
  %2894 = vmatprep.mubr.f32.mxu0 0.0
  %2895 = vmatmul.mubr.f32.gmra.mrb[0].mxu0 %v2781
  %v2896 = vpop.f32.mrb[0].mxu0
  %v2897 = vadd.f32 0.0, %v2896
  %v2898 = vpop.f32.mrb[0].mxu0
  %2899 = vmatprep.mubr.f32.mxu0 0.0
  %2900 = vmatmul.mubr.f32.gmra.mrb[0].mxu0 %v2784
  %v2901 = vpop.f32.mrb[0].mxu0
  %v2902 = vadd.f32 0.0, %v2901
  %v2903 = vpop.f32.mrb[0].mxu0
  %2904 = vmatprep.mubr.f32.mxu0 0.0
  %2905 = vmatmul.mubr.f32.gmra.mrb[0].mxu0 %v2787
  %v2906 = vpop.f32.mrb[0].mxu0
  %v2907 = vadd.f32 0.0, %v2906
  %v2908 = vpop.f32.mrb[0].mxu0
  %2909 = vmatprep.mubr.f32.mxu0 0.0
  %2910 = vmatmul.mubr.f32.gmra.mrb[0].mxu0 %v2790
  %v2911 = vpop.f32.mrb[0].mxu0
  %v2912 = vadd.f32 0.0, %v2911
  %v2913 = vpop.f32.mrb[0].mxu0
  %2914 = vmatprep.mubr.f32.mxu0 0.0
  %2915 = vmatmul.mubr.f32.gmra.mrb[0].mxu0 %v2793
  %v2916 = vpop.f32.mrb[0].mxu0
  %v2917 = vadd.f32 0.0, %v2916
  %v2918 = vpop.f32.mrb[0].mxu0
  %2919 = vmatprep.mubr.f32.mxu0 0.0
  %2920 = vmatmul.mubr.f32.gmra.mrb[0].mxu0 %v2796
  %v2921 = vpop.f32.mrb[0].mxu0
  %v2922 = vadd.f32 0.0, %v2921
  %v2923 = vpop.f32.mrb[0].mxu0
  %2924 = vmatprep.mubr.f32.mxu0 0.0
  %2925 = vmatmul.mubr.f32.gmra.mrb[0].mxu0 %v2799
  %v2926 = vpop.f32.mrb[0].mxu0
  %v2927 = vadd.f32 0.0, %v2926
  %v2928 = vpop.f32.mrb[0].mxu0
  %2929 = vmatprep.mubr.f32.mxu0 0.0
  %2930 = vmatmul.mubr.f32.gmra.mrb[0].mxu0 %v2802
  %v2931 = vpop.f32.mrb[0].mxu0
  %v2932 = vadd.f32 0.0, %v2931
  %v2933 = vpop.f32.mrb[0].mxu0
  %2934 = vmatprep.mubr.f32.mxu0 0.0
  %2935 = vmatmul.mubr.f32.gmra.mrb[0].mxu0 %v2805
  %v2936 = vpop.f32.mrb[0].mxu0
  %v2937 = vadd.f32 0.0, %v2936
  %v2938 = vpop.f32.mrb[0].mxu0
  %2939 = vmatprep.mubr.f32.mxu0 0.0
  %2940 = vmatmul.mubr.f32.gmra.mrb[0].mxu0 %v2808
  %v2941 = vpop.f32.mrb[0].mxu0
  %v2942 = vadd.f32 0.0, %v2941
  %v2943 = vpop.f32.mrb[0].mxu0
  %2944 = vmatprep.mubr.f32.mxu0 0.0
  %2945 = vmatmul.mubr.f32.gmra.mrb[0].mxu0 %v2811
  %v2946 = vpop.f32.mrb[0].mxu0
  %v2947 = vadd.f32 0.0, %v2946
  %v2948 = vpop.f32.mrb[0].mxu0
  %2949 = vmatprep.mubr.f32.mxu0 0.0
  %2950 = vmatmul.mubr.f32.gmra.mrb[0].mxu0 %v2814
  %v2951 = vpop.f32.mrb[0].mxu0
  %v2952 = vadd.f32 0.0, %v2951
  %v2953 = vpop.f32.mrb[0].mxu0
  %2954 = vmatprep.mubr.f32.mxu0 0.0
  %2955 = vmatmul.mubr.f32.gmra.mrb[0].mxu0 %v2817
  %v2956 = vpop.f32.mrb[0].mxu0
  %v2957 = vadd.f32 0.0, %v2956
  %v2958 = vpop.f32.mrb[0].mxu0
  %2959 = vmatprep.mubr.f32.mxu0 0.0
  %2960 = vmatmul.mubr.f32.gmra.mrb[0].mxu0 %v2820
  %v2961 = vpop.f32.mrb[0].mxu0
  %v2962 = vadd.f32 0.0, %v2961
  %v2963 = vpop.f32.mrb[0].mxu0
  %2964 = vmatprep.mubr.f32.mxu0 0.0
  %2965 = vmatmul.mubr.f32.gmra.mrb[0].mxu0 %v2823
  %v2966 = vpop.f32.mrb[0].mxu0
  %v2967 = vadd.f32 0.0, %v2966
  %v2968 = vpop.f32.mrb[0].mxu0
  %2969 = vdwg.mxu0
  %v2970 = vadd.f32 %v2071, %v2892
  %v2971 = vadd.f32 %v2076, %v2897
  %v2972 = vadd.f32 %v2081, %v2902
  %v2973 = vadd.f32 %v2086, %v2907
  %v2974 = vadd.f32 %v2091, %v2912
  %v2975 = vadd.f32 %v2096, %v2917
  %v2976 = vadd.f32 %v2101, %v2922
  %v2977 = vadd.f32 %v2106, %v2927
  %v2978 = vadd.f32 %v2111, %v2932
  %v2979 = vadd.f32 %v2116, %v2937
  %v2980 = vadd.f32 %v2121, %v2942
  %v2981 = vadd.f32 %v2126, %v2947
  %v2982 = vadd.f32 %v2131, %v2952
  %v2983 = vadd.f32 %v2136, %v2957
  %v2984 = vadd.f32 %v2141, %v2962
  %v2985 = vadd.f32 %v2146, %v2967
  %s2986 = scalar_lea.vmem %s5, 384
  %v2987 = vld [vmem:[%s2986] sm:$0xff]
  %v2988 = vld [vmem:[%s2986 + $0x8] sm:$0xff]
  %v2989 = vld [vmem:[%s2986 + $0x10] sm:$0xff]
  %v2990 = vld [vmem:[%s2986 + $0x18] sm:$0xff]
  %v2991 = vld [vmem:[%s2986 + $0x20] sm:$0xff]
  %v2992 = vld [vmem:[%s2986 + $0x28] sm:$0xff]
  %v2993 = vld [vmem:[%s2986 + $0x30] sm:$0xff]
  %v2994 = vld [vmem:[%s2986 + $0x38] sm:$0xff]
  %v2995 = vld [vmem:[%s2986 + $0x40] sm:$0xff]
  %v2996 = vld [vmem:[%s2986 + $0x48] sm:$0xff]
  %v2997 = vld [vmem:[%s2986 + $0x50] sm:$0xff]
  %v2998 = vld [vmem:[%s2986 + $0x58] sm:$0xff]
  %v2999 = vld [vmem:[%s2986 + $0x60] sm:$0xff]
  %v3000 = vld [vmem:[%s2986 + $0x68] sm:$0xff]
  %v3001 = vld [vmem:[%s2986 + $0x70] sm:$0xff]
  %v3002 = vld [vmem:[%s2986 + $0x78] sm:$0xff]
  %3003 = vrot.lane.b32.xlu0 %v445, 104
  %v3004 = vpop.permute.xlu0 %3003
  %3005 = vrot.lane.b32.xlu0 %v450, 104
  %v3006 = vpop.permute.xlu0 %3005
  %3007 = vrot.lane.b32.xlu0 %v455, 104
  %v3008 = vpop.permute.xlu0 %3007
  %3009 = vrot.lane.b32.xlu0 %v460, 104
  %v3010 = vpop.permute.xlu0 %3009
  %3011 = vrot.lane.b32.xlu0 %v465, 104
  %v3012 = vpop.permute.xlu0 %3011
  %3013 = vrot.lane.b32.xlu0 %v470, 104
  %v3014 = vpop.permute.xlu0 %3013
  %3015 = vrot.lane.b32.xlu0 %v475, 104
  %v3016 = vpop.permute.xlu0 %3015
  %3017 = vrot.lane.b32.xlu0 %v480, 104
  %v3018 = vpop.permute.xlu0 %3017
  %3019 = vrot.lane.b32.xlu0 %v485, 104
  %v3020 = vpop.permute.xlu0 %3019
  %3021 = vrot.lane.b32.xlu0 %v490, 104
  %v3022 = vpop.permute.xlu0 %3021
  %3023 = vrot.lane.b32.xlu0 %v495, 104
  %v3024 = vpop.permute.xlu0 %3023
  %3025 = vrot.lane.b32.xlu0 %v500, 104
  %v3026 = vpop.permute.xlu0 %3025
  %3027 = vrot.lane.b32.xlu0 %v505, 104
  %v3028 = vpop.permute.xlu0 %3027
  %3029 = vrot.lane.b32.xlu0 %v510, 104
  %v3030 = vpop.permute.xlu0 %3029
  %3031 = vrot.lane.b32.xlu0 %v515, 104
  %v3032 = vpop.permute.xlu0 %3031
  %3033 = vrot.lane.b32.xlu0 %v520, 104
  %v3034 = vpop.permute.xlu0 %3033
  %3035 = vrot.lane.b32.xlu0 %v445, 72
  %v3036 = vpop.permute.xlu0 %3035
  %3037 = vrot.lane.b32.xlu0 %v450, 72
  %v3038 = vpop.permute.xlu0 %3037
  %3039 = vrot.lane.b32.xlu0 %v455, 72
  %v3040 = vpop.permute.xlu0 %3039
  %3041 = vrot.lane.b32.xlu0 %v460, 72
  %v3042 = vpop.permute.xlu0 %3041
  %3043 = vrot.lane.b32.xlu0 %v465, 72
  %v3044 = vpop.permute.xlu0 %3043
  %3045 = vrot.lane.b32.xlu0 %v470, 72
  %v3046 = vpop.permute.xlu0 %3045
  %3047 = vrot.lane.b32.xlu0 %v475, 72
  %v3048 = vpop.permute.xlu0 %3047
  %3049 = vrot.lane.b32.xlu0 %v480, 72
  %v3050 = vpop.permute.xlu0 %3049
  %3051 = vrot.lane.b32.xlu0 %v485, 72
  %v3052 = vpop.permute.xlu0 %3051
  %3053 = vrot.lane.b32.xlu0 %v490, 72
  %v3054 = vpop.permute.xlu0 %3053
  %3055 = vrot.lane.b32.xlu0 %v495, 72
  %v3056 = vpop.permute.xlu0 %3055
  %3057 = vrot.lane.b32.xlu0 %v500, 72
  %v3058 = vpop.permute.xlu0 %3057
  %3059 = vrot.lane.b32.xlu0 %v505, 72
  %v3060 = vpop.permute.xlu0 %3059
  %3061 = vrot.lane.b32.xlu0 %v510, 72
  %v3062 = vpop.permute.xlu0 %3061
  %3063 = vrot.lane.b32.xlu0 %v515, 72
  %v3064 = vpop.permute.xlu0 %3063
  %3065 = vrot.lane.b32.xlu0 %v520, 72
  %v3066 = vpop.permute.xlu0 %3065
  %v3067 = vsel %vm587, %v3004, 0
  %v3069 = vsel %vm587, %v3006, 0
  %v3071 = vsel %vm587, %v3008, 0
  %v3073 = vsel %vm587, %v3010, 0
  %v3075 = vsel %vm587, %v3012, 0
  %v3077 = vsel %vm587, %v3014, 0
  %v3079 = vsel %vm587, %v3016, 0
  %v3081 = vsel %vm587, %v3018, 0
  %v3083 = vsel %vm587, %v3020, 0
  %v3085 = vsel %vm587, %v3022, 0
  %v3087 = vsel %vm587, %v3024, 0
  %v3089 = vsel %vm587, %v3026, 0
  %v3091 = vsel %vm587, %v3028, 0
  %v3093 = vsel %vm587, %v3030, 0
  %v3095 = vsel %vm587, %v3032, 0
  %v3097 = vsel %vm587, %v3034, 0
  %v3099 = vsel %vm587, %v3036, 0
  %v3101 = vsel %vm587, %v3038, 0
  %v3103 = vsel %vm587, %v3040, 0
  %v3105 = vsel %vm587, %v3042, 0
  %v3107 = vsel %vm587, %v3044, 0
  %v3109 = vsel %vm587, %v3046, 0
  %v3111 = vsel %vm587, %v3048, 0
  %v3113 = vsel %vm587, %v3050, 0
  %v3115 = vsel %vm587, %v3052, 0
  %v3117 = vsel %vm587, %v3054, 0
  %v3119 = vsel %vm587, %v3056, 0
  %v3121 = vsel %vm587, %v3058, 0
  %v3123 = vsel %vm587, %v3060, 0
  %v3125 = vsel %vm587, %v3062, 0
  %v3127 = vsel %vm587, %v3064, 0
  %v3129 = vsel %vm587, %v3066, 0
  %3131 = vmatprep.subr.mxu0 0.0
  %3132 = vmatpush1.xpose.msra.mxu0 %v3099
  %3133 = vmatprep.subr.mxu0 0.0
  %3134 = vmatpush1.xpose.msra.mxu0 %v3101
  %3135 = vmatprep.subr.mxu0 0.0
  %3136 = vmatpush1.xpose.msra.mxu0 %v3103
  %3137 = vmatprep.subr.mxu0 0.0
  %3138 = vmatpush1.xpose.msra.mxu0 %v3105
  %3139 = vmatprep.subr.mxu0 0.0
  %3140 = vmatpush1.xpose.msra.mxu0 %v3107
  %3141 = vmatprep.subr.mxu0 0.0
  %3142 = vmatpush1.xpose.msra.mxu0 %v3109
  %3143 = vmatprep.subr.mxu0 0.0
  %3144 = vmatpush1.xpose.msra.mxu0 %v3111
  %3145 = vmatprep.subr.mxu0 0.0
  %3146 = vmatpush1.xpose.msra.mxu0 %v3113
  %3147 = vmatprep.subr.mxu0 0.0
  %3148 = vmatpush1.xpose.msra.mxu0 %v3115
  %3149 = vmatprep.subr.mxu0 0.0
  %3150 = vmatpush1.xpose.msra.mxu0 %v3117
  %3151 = vmatprep.subr.mxu0 0.0
  %3152 = vmatpush1.xpose.msra.mxu0 %v3119
  %3153 = vmatprep.subr.mxu0 0.0
  %3154 = vmatpush1.xpose.msra.mxu0 %v3121
  %3155 = vmatprep.subr.mxu0 0.0
  %3156 = vmatpush1.xpose.msra.mxu0 %v3123
  %3157 = vmatprep.subr.mxu0 0.0
  %3158 = vmatpush1.xpose.msra.mxu0 %v3125
  %3159 = vmatprep.subr.mxu0 0.0
  %3160 = vmatpush1.xpose.msra.mxu0 %v3127
  %3161 = vmatprep.subr.mxu0 0.0
  %3162 = vmatpush1.xpose.msra.mxu0 %v3129
  %3163 = vmatprep.subr.mxu0 0.0
  %3164 = vmatpush1.xpose.msra.mxu0 0.0
  %3165 = vmatprep.subr.mxu0 0.0
  %3166 = vmatpush1.xpose.msra.mxu0 0.0
  %3167 = vmatprep.subr.mxu0 0.0
  %3168 = vmatpush1.xpose.msra.mxu0 0.0
  %3169 = vmatprep.subr.mxu0 0.0
  %3170 = vmatpush1.xpose.msra.mxu0 0.0
  %3171 = vmatprep.subr.mxu0 0.0
  %3172 = vmatpush1.xpose.msra.mxu0 0.0
  %3173 = vmatprep.subr.mxu0 0.0
  %3174 = vmatpush1.xpose.msra.mxu0 0.0
  %3175 = vmatprep.subr.mxu0 0.0
  %3176 = vmatpush1.xpose.msra.mxu0 0.0
  %3177 = vmatprep.subr.mxu0 0.0
  %3178 = vmatpush1.xpose.msra.mxu0 0.0
  %3179 = vmatprep.subr.mxu0 0.0
  %3180 = vmatpush1.xpose.msra.mxu0 0.0
  %3181 = vmatprep.subr.mxu0 0.0
  %3182 = vmatpush1.xpose.msra.mxu0 0.0
  %3183 = vmatprep.subr.mxu0 0.0
  %3184 = vmatpush1.xpose.msra.mxu0 0.0
  %3185 = vmatprep.subr.mxu0 0.0
  %3186 = vmatpush1.xpose.msra.mxu0 0.0
  %3187 = vmatprep.subr.mxu0 0.0
  %3188 = vmatpush1.xpose.msra.mxu0 0.0
  %3189 = vmatprep.subr.mxu0 0.0
  %3190 = vmatpush1.xpose.msra.mxu0 0.0
  %3191 = vmatprep.subr.mxu0 0.0
  %3192 = vmatpush1.xpose.msra.mxu0 0.0
  %3193 = vmatprep.subr.mxu0 0.0
  %3194 = vmatpush1.xpose.msra.mxu0 0.0
  %3195 = vmatprep.mubr.f32.mxu0 0.0
  %3196 = vmatmul.mubr.f32.gmra.mrb[0].mxu0 %v3067
  %v3197 = vpop.f32.mrb[0].mxu0
  %v3198 = vadd.f32 %v2987, %v3197
  %v3199 = vpop.f32.mrb[0].mxu0
  %3200 = vmatprep.mubr.f32.mxu0 0.0
  %3201 = vmatmul.mubr.f32.gmra.mrb[0].mxu0 %v3069
  %v3202 = vpop.f32.mrb[0].mxu0
  %v3203 = vadd.f32 %v2988, %v3202
  %v3204 = vpop.f32.mrb[0].mxu0
  %3205 = vmatprep.mubr.f32.mxu0 0.0
  %3206 = vmatmul.mubr.f32.gmra.mrb[0].mxu0 %v3071
  %v3207 = vpop.f32.mrb[0].mxu0
  %v3208 = vadd.f32 %v2989, %v3207
  %v3209 = vpop.f32.mrb[0].mxu0
  %3210 = vmatprep.mubr.f32.mxu0 0.0
  %3211 = vmatmul.mubr.f32.gmra.mrb[0].mxu0 %v3073
  %v3212 = vpop.f32.mrb[0].mxu0
  %v3213 = vadd.f32 %v2990, %v3212
  %v3214 = vpop.f32.mrb[0].mxu0
  %3215 = vmatprep.mubr.f32.mxu0 0.0
  %3216 = vmatmul.mubr.f32.gmra.mrb[0].mxu0 %v3075
  %v3217 = vpop.f32.mrb[0].mxu0
  %v3218 = vadd.f32 %v2991, %v3217
  %v3219 = vpop.f32.mrb[0].mxu0
  %3220 = vmatprep.mubr.f32.mxu0 0.0
  %3221 = vmatmul.mubr.f32.gmra.mrb[0].mxu0 %v3077
  %v3222 = vpop.f32.mrb[0].mxu0
  %v3223 = vadd.f32 %v2992, %v3222
  %v3224 = vpop.f32.mrb[0].mxu0
  %3225 = vmatprep.mubr.f32.mxu0 0.0
  %3226 = vmatmul.mubr.f32.gmra.mrb[0].mxu0 %v3079
  %v3227 = vpop.f32.mrb[0].mxu0
  %v3228 = vadd.f32 %v2993, %v3227
  %v3229 = vpop.f32.mrb[0].mxu0
  %3230 = vmatprep.mubr.f32.mxu0 0.0
  %3231 = vmatmul.mubr.f32.gmra.mrb[0].mxu0 %v3081
  %v3232 = vpop.f32.mrb[0].mxu0
  %v3233 = vadd.f32 %v2994, %v3232
  %v3234 = vpop.f32.mrb[0].mxu0
  %3235 = vmatprep.mubr.f32.mxu0 0.0
  %3236 = vmatmul.mubr.f32.gmra.mrb[0].mxu0 %v3083
  %v3237 = vpop.f32.mrb[0].mxu0
  %v3238 = vadd.f32 %v2995, %v3237
  %v3239 = vpop.f32.mrb[0].mxu0
  %3240 = vmatprep.mubr.f32.mxu0 0.0
  %3241 = vmatmul.mubr.f32.gmra.mrb[0].mxu0 %v3085
  %v3242 = vpop.f32.mrb[0].mxu0
  %v3243 = vadd.f32 %v2996, %v3242
  %v3244 = vpop.f32.mrb[0].mxu0
  %3245 = vmatprep.mubr.f32.mxu0 0.0
  %3246 = vmatmul.mubr.f32.gmra.mrb[0].mxu0 %v3087
  %v3247 = vpop.f32.mrb[0].mxu0
  %v3248 = vadd.f32 %v2997, %v3247
  %v3249 = vpop.f32.mrb[0].mxu0
  %3250 = vmatprep.mubr.f32.mxu0 0.0
  %3251 = vmatmul.mubr.f32.gmra.mrb[0].mxu0 %v3089
  %v3252 = vpop.f32.mrb[0].mxu0
  %v3253 = vadd.f32 %v2998, %v3252
  %v3254 = vpop.f32.mrb[0].mxu0
  %3255 = vmatprep.mubr.f32.mxu0 0.0
  %3256 = vmatmul.mubr.f32.gmra.mrb[0].mxu0 %v3091
  %v3257 = vpop.f32.mrb[0].mxu0
  %v3258 = vadd.f32 %v2999, %v3257
  %v3259 = vpop.f32.mrb[0].mxu0
  %3260 = vmatprep.mubr.f32.mxu0 0.0
  %3261 = vmatmul.mubr.f32.gmra.mrb[0].mxu0 %v3093
  %v3262 = vpop.f32.mrb[0].mxu0
  %v3263 = vadd.f32 %v3000, %v3262
  %v3264 = vpop.f32.mrb[0].mxu0
  %3265 = vmatprep.mubr.f32.mxu0 0.0
  %3266 = vmatmul.mubr.f32.gmra.mrb[0].mxu0 %v3095
  %v3267 = vpop.f32.mrb[0].mxu0
  %v3268 = vadd.f32 %v3001, %v3267
  %v3269 = vpop.f32.mrb[0].mxu0
  %3270 = vmatprep.mubr.f32.mxu0 0.0
  %3271 = vmatmul.mubr.f32.gmra.mrb[0].mxu0 %v3097
  %v3272 = vpop.f32.mrb[0].mxu0
  %v3273 = vadd.f32 %v3002, %v3272
  %v3274 = vpop.f32.mrb[0].mxu0
  %3275 = vdwg.mxu0
  %3276 = vmax.xlane.f32.xlu0 %v3198
  %v3277 = vpop.xlane.xlu0 %3276
  %3278 = vmax.xlane.f32.xlu0 %v3203
  %v3279 = vpop.xlane.xlu0 %3278
  %3280 = vmax.xlane.f32.xlu0 %v3208
  %v3281 = vpop.xlane.xlu0 %3280
  %3282 = vmax.xlane.f32.xlu0 %v3213
  %v3283 = vpop.xlane.xlu0 %3282
  %3284 = vmax.xlane.f32.xlu0 %v3218
  %v3285 = vpop.xlane.xlu0 %3284
  %3286 = vmax.xlane.f32.xlu0 %v3223
  %v3287 = vpop.xlane.xlu0 %3286
  %3288 = vmax.xlane.f32.xlu0 %v3228
  %v3289 = vpop.xlane.xlu0 %3288
  %3290 = vmax.xlane.f32.xlu0 %v3233
  %v3291 = vpop.xlane.xlu0 %3290
  %3292 = vmax.xlane.f32.xlu0 %v3238
  %v3293 = vpop.xlane.xlu0 %3292
  %3294 = vmax.xlane.f32.xlu0 %v3243
  %v3295 = vpop.xlane.xlu0 %3294
  %3296 = vmax.xlane.f32.xlu0 %v3248
  %v3297 = vpop.xlane.xlu0 %3296
  %3298 = vmax.xlane.f32.xlu0 %v3253
  %v3299 = vpop.xlane.xlu0 %3298
  %3300 = vmax.xlane.f32.xlu0 %v3258
  %v3301 = vpop.xlane.xlu0 %3300
  %3302 = vmax.xlane.f32.xlu0 %v3263
  %v3303 = vpop.xlane.xlu0 %3302
  %3304 = vmax.xlane.f32.xlu0 %v3268
  %v3305 = vpop.xlane.xlu0 %3304
  %3306 = vmax.xlane.f32.xlu0 %v3273
  %v3307 = vpop.xlane.xlu0 %3306
  %v3308 = vsub.f32 %v3198, %v3277
  %v3309 = vsub.f32 %v3203, %v3279
  %v3310 = vsub.f32 %v3208, %v3281
  %v3311 = vsub.f32 %v3213, %v3283
  %v3312 = vsub.f32 %v3218, %v3285
  %v3313 = vsub.f32 %v3223, %v3287
  %v3314 = vsub.f32 %v3228, %v3289
  %v3315 = vsub.f32 %v3233, %v3291
  %v3316 = vsub.f32 %v3238, %v3293
  %v3317 = vsub.f32 %v3243, %v3295
  %v3318 = vsub.f32 %v3248, %v3297
  %v3319 = vsub.f32 %v3253, %v3299
  %v3320 = vsub.f32 %v3258, %v3301
  %v3321 = vsub.f32 %v3263, %v3303
  %v3322 = vsub.f32 %v3268, %v3305
  %v3323 = vsub.f32 %v3273, %v3307
  %v3324 = vmul.f32 %v3308, 1.442695
  %v3325 = vpow.pop %v3324
  %v3326 = vmul.f32 %v3309, 1.442695
  %v3327 = vpow.pop %v3326
  %v3328 = vmul.f32 %v3310, 1.442695
  %v3329 = vpow.pop %v3328
  %v3330 = vmul.f32 %v3311, 1.442695
  %v3331 = vpow.pop %v3330
  %v3332 = vmul.f32 %v3312, 1.442695
  %v3333 = vpow.pop %v3332
  %v3334 = vmul.f32 %v3313, 1.442695
  %v3335 = vpow.pop %v3334
  %v3336 = vmul.f32 %v3314, 1.442695
  %v3337 = vpow.pop %v3336
  %v3338 = vmul.f32 %v3315, 1.442695
  %v3339 = vpow.pop %v3338
  %v3340 = vmul.f32 %v3316, 1.442695
  %v3341 = vpow.pop %v3340
  %v3342 = vmul.f32 %v3317, 1.442695
  %v3343 = vpow.pop %v3342
  %v3344 = vmul.f32 %v3318, 1.442695
  %v3345 = vpow.pop %v3344
  %v3346 = vmul.f32 %v3319, 1.442695
  %v3347 = vpow.pop %v3346
  %v3348 = vmul.f32 %v3320, 1.442695
  %v3349 = vpow.pop %v3348
  %v3350 = vmul.f32 %v3321, 1.442695
  %v3351 = vpow.pop %v3350
  %v3352 = vmul.f32 %v3322, 1.442695
  %v3353 = vpow.pop %v3352
  %v3354 = vmul.f32 %v3323, 1.442695
  %v3355 = vpow.pop %v3354
  %3356 = vadd.xlane.f32.xlu0 %v3325
  %v3357 = vpop.xlane.xlu0 %3356
  %3358 = vadd.xlane.f32.xlu0 %v3327
  %v3359 = vpop.xlane.xlu0 %3358
  %3360 = vadd.xlane.f32.xlu0 %v3329
  %v3361 = vpop.xlane.xlu0 %3360
  %3362 = vadd.xlane.f32.xlu0 %v3331
  %v3363 = vpop.xlane.xlu0 %3362
  %3364 = vadd.xlane.f32.xlu0 %v3333
  %v3365 = vpop.xlane.xlu0 %3364
  %3366 = vadd.xlane.f32.xlu0 %v3335
  %v3367 = vpop.xlane.xlu0 %3366
  %3368 = vadd.xlane.f32.xlu0 %v3337
  %v3369 = vpop.xlane.xlu0 %3368
  %3370 = vadd.xlane.f32.xlu0 %v3339
  %v3371 = vpop.xlane.xlu0 %3370
  %3372 = vadd.xlane.f32.xlu0 %v3341
  %v3373 = vpop.xlane.xlu0 %3372
  %3374 = vadd.xlane.f32.xlu0 %v3343
  %v3375 = vpop.xlane.xlu0 %3374
  %3376 = vadd.xlane.f32.xlu0 %v3345
  %v3377 = vpop.xlane.xlu0 %3376
  %3378 = vadd.xlane.f32.xlu0 %v3347
  %v3379 = vpop.xlane.xlu0 %3378
  %3380 = vadd.xlane.f32.xlu0 %v3349
  %v3381 = vpop.xlane.xlu0 %3380
  %3382 = vadd.xlane.f32.xlu0 %v3351
  %v3383 = vpop.xlane.xlu0 %3382
  %3384 = vadd.xlane.f32.xlu0 %v3353
  %v3385 = vpop.xlane.xlu0 %3384
  %3386 = vadd.xlane.f32.xlu0 %v3355
  %v3387 = vpop.xlane.xlu0 %3386
  %v3388 = vrcp.pop %v3357
  %v3389 = vrcp.pop %v3359
  %v3390 = vrcp.pop %v3361
  %v3391 = vrcp.pop %v3363
  %v3392 = vrcp.pop %v3365
  %v3393 = vrcp.pop %v3367
  %v3394 = vrcp.pop %v3369
  %v3395 = vrcp.pop %v3371
  %v3396 = vrcp.pop %v3373
  %v3397 = vrcp.pop %v3375
  %v3398 = vrcp.pop %v3377
  %v3399 = vrcp.pop %v3379
  %v3400 = vrcp.pop %v3381
  %v3401 = vrcp.pop %v3383
  %v3402 = vrcp.pop %v3385
  %v3403 = vrcp.pop %v3387
  %v3404 = vmul.f32 %v3325, %v3388
  %v3405 = vmul.f32 %v3327, %v3389
  %v3406 = vmul.f32 %v3329, %v3390
  %v3407 = vmul.f32 %v3331, %v3391
  %v3408 = vmul.f32 %v3333, %v3392
  %v3409 = vmul.f32 %v3335, %v3393
  %v3410 = vmul.f32 %v3337, %v3394
  %v3411 = vmul.f32 %v3339, %v3395
  %v3412 = vmul.f32 %v3341, %v3396
  %v3413 = vmul.f32 %v3343, %v3397
  %v3414 = vmul.f32 %v3345, %v3398
  %v3415 = vmul.f32 %v3347, %v3399
  %v3416 = vmul.f32 %v3349, %v3400
  %v3417 = vmul.f32 %v3351, %v3401
  %v3418 = vmul.f32 %v3353, %v3402
  %v3419 = vmul.f32 %v3355, %v3403
  %3420 = vrot.lane.b32.xlu0 %v445, 40
  %v3421 = vpop.permute.xlu0 %3420
  %3422 = vrot.lane.b32.xlu0 %v450, 40
  %v3423 = vpop.permute.xlu0 %3422
  %3424 = vrot.lane.b32.xlu0 %v455, 40
  %v3425 = vpop.permute.xlu0 %3424
  %3426 = vrot.lane.b32.xlu0 %v460, 40
  %v3427 = vpop.permute.xlu0 %3426
  %3428 = vrot.lane.b32.xlu0 %v465, 40
  %v3429 = vpop.permute.xlu0 %3428
  %3430 = vrot.lane.b32.xlu0 %v470, 40
  %v3431 = vpop.permute.xlu0 %3430
  %3432 = vrot.lane.b32.xlu0 %v475, 40
  %v3433 = vpop.permute.xlu0 %3432
  %3434 = vrot.lane.b32.xlu0 %v480, 40
  %v3435 = vpop.permute.xlu0 %3434
  %3436 = vrot.lane.b32.xlu0 %v485, 40
  %v3437 = vpop.permute.xlu0 %3436
  %3438 = vrot.lane.b32.xlu0 %v490, 40
  %v3439 = vpop.permute.xlu0 %3438
  %3440 = vrot.lane.b32.xlu0 %v495, 40
  %v3441 = vpop.permute.xlu0 %3440
  %3442 = vrot.lane.b32.xlu0 %v500, 40
  %v3443 = vpop.permute.xlu0 %3442
  %3444 = vrot.lane.b32.xlu0 %v505, 40
  %v3445 = vpop.permute.xlu0 %3444
  %3446 = vrot.lane.b32.xlu0 %v510, 40
  %v3447 = vpop.permute.xlu0 %3446
  %3448 = vrot.lane.b32.xlu0 %v515, 40
  %v3449 = vpop.permute.xlu0 %3448
  %3450 = vrot.lane.b32.xlu0 %v520, 40
  %v3451 = vpop.permute.xlu0 %3450
  %3468 = vmatprep.subr.mxu0 0.0
  %3469 = vmatpush1.msra.mxu0 %v3421
  %3470 = vmatprep.subr.mxu0 0.0
  %3471 = vmatpush1.msra.mxu0 %v3423
  %3472 = vmatprep.subr.mxu0 0.0
  %3473 = vmatpush1.msra.mxu0 %v3425
  %3474 = vmatprep.subr.mxu0 0.0
  %3475 = vmatpush1.msra.mxu0 %v3427
  %3476 = vmatprep.subr.mxu0 0.0
  %3477 = vmatpush1.msra.mxu0 %v3429
  %3478 = vmatprep.subr.mxu0 0.0
  %3479 = vmatpush1.msra.mxu0 %v3431
  %3480 = vmatprep.subr.mxu0 0.0
  %3481 = vmatpush1.msra.mxu0 %v3433
  %3482 = vmatprep.subr.mxu0 0.0
  %3483 = vmatpush1.msra.mxu0 %v3435
  %3484 = vmatprep.subr.mxu0 0.0
  %3485 = vmatpush1.msra.mxu0 %v3437
  %3486 = vmatprep.subr.mxu0 0.0
  %3487 = vmatpush1.msra.mxu0 %v3439
  %3488 = vmatprep.subr.mxu0 0.0
  %3489 = vmatpush1.msra.mxu0 %v3441
  %3490 = vmatprep.subr.mxu0 0.0
  %3491 = vmatpush1.msra.mxu0 %v3443
  %3492 = vmatprep.subr.mxu0 0.0
  %3493 = vmatpush1.msra.mxu0 %v3445
  %3494 = vmatprep.subr.mxu0 0.0
  %3495 = vmatpush1.msra.mxu0 %v3447
  %3496 = vmatprep.subr.mxu0 0.0
  %3497 = vmatpush1.msra.mxu0 %v3449
  %3498 = vmatprep.subr.mxu0 0.0
  %3499 = vmatpush1.msra.mxu0 %v3451
  %3500 = vmatprep.subr.mxu0 0.0
  %3501 = vmatpush1.msra.mxu0 0.0
  %3502 = vmatprep.subr.mxu0 0.0
  %3503 = vmatpush1.msra.mxu0 0.0
  %3504 = vmatprep.subr.mxu0 0.0
  %3505 = vmatpush1.msra.mxu0 0.0
  %3506 = vmatprep.subr.mxu0 0.0
  %3507 = vmatpush1.msra.mxu0 0.0
  %3508 = vmatprep.subr.mxu0 0.0
  %3509 = vmatpush1.msra.mxu0 0.0
  %3510 = vmatprep.subr.mxu0 0.0
  %3511 = vmatpush1.msra.mxu0 0.0
  %3512 = vmatprep.subr.mxu0 0.0
  %3513 = vmatpush1.msra.mxu0 0.0
  %3514 = vmatprep.subr.mxu0 0.0
  %3515 = vmatpush1.msra.mxu0 0.0
  %3516 = vmatprep.subr.mxu0 0.0
  %3517 = vmatpush1.msra.mxu0 0.0
  %3518 = vmatprep.subr.mxu0 0.0
  %3519 = vmatpush1.msra.mxu0 0.0
  %3520 = vmatprep.subr.mxu0 0.0
  %3521 = vmatpush1.msra.mxu0 0.0
  %3522 = vmatprep.subr.mxu0 0.0
  %3523 = vmatpush1.msra.mxu0 0.0
  %3524 = vmatprep.subr.mxu0 0.0
  %3525 = vmatpush1.msra.mxu0 0.0
  %3526 = vmatprep.subr.mxu0 0.0
  %3527 = vmatpush1.msra.mxu0 0.0
  %3528 = vmatprep.subr.mxu0 0.0
  %3529 = vmatpush1.msra.mxu0 0.0
  %3530 = vmatprep.subr.mxu0 0.0
  %3531 = vmatpush1.msra.mxu0 0.0
  %3532 = vmatprep.mubr.f32.mxu0 0.0
  %3533 = vmatmul.mubr.f32.gmra.mrb[0].mxu0 %v3404
  %v3534 = vpop.f32.mrb[0].mxu0
  %v3535 = vadd.f32 0.0, %v3534
  %v3536 = vpop.f32.mrb[0].mxu0
  %3537 = vmatprep.mubr.f32.mxu0 0.0
  %3538 = vmatmul.mubr.f32.gmra.mrb[0].mxu0 %v3405
  %v3539 = vpop.f32.mrb[0].mxu0
  %v3540 = vadd.f32 0.0, %v3539
  %v3541 = vpop.f32.mrb[0].mxu0
  %3542 = vmatprep.mubr.f32.mxu0 0.0
  %3543 = vmatmul.mubr.f32.gmra.mrb[0].mxu0 %v3406
  %v3544 = vpop.f32.mrb[0].mxu0
  %v3545 = vadd.f32 0.0, %v3544
  %v3546 = vpop.f32.mrb[0].mxu0
  %3547 = vmatprep.mubr.f32.mxu0 0.0
  %3548 = vmatmul.mubr.f32.gmra.mrb[0].mxu0 %v3407
  %v3549 = vpop.f32.mrb[0].mxu0
  %v3550 = vadd.f32 0.0, %v3549
  %v3551 = vpop.f32.mrb[0].mxu0
  %3552 = vmatprep.mubr.f32.mxu0 0.0
  %3553 = vmatmul.mubr.f32.gmra.mrb[0].mxu0 %v3408
  %v3554 = vpop.f32.mrb[0].mxu0
  %v3555 = vadd.f32 0.0, %v3554
  %v3556 = vpop.f32.mrb[0].mxu0
  %3557 = vmatprep.mubr.f32.mxu0 0.0
  %3558 = vmatmul.mubr.f32.gmra.mrb[0].mxu0 %v3409
  %v3559 = vpop.f32.mrb[0].mxu0
  %v3560 = vadd.f32 0.0, %v3559
  %v3561 = vpop.f32.mrb[0].mxu0
  %3562 = vmatprep.mubr.f32.mxu0 0.0
  %3563 = vmatmul.mubr.f32.gmra.mrb[0].mxu0 %v3410
  %v3564 = vpop.f32.mrb[0].mxu0
  %v3565 = vadd.f32 0.0, %v3564
  %v3566 = vpop.f32.mrb[0].mxu0
  %3567 = vmatprep.mubr.f32.mxu0 0.0
  %3568 = vmatmul.mubr.f32.gmra.mrb[0].mxu0 %v3411
  %v3569 = vpop.f32.mrb[0].mxu0
  %v3570 = vadd.f32 0.0, %v3569
  %v3571 = vpop.f32.mrb[0].mxu0
  %3572 = vmatprep.mubr.f32.mxu0 0.0
  %3573 = vmatmul.mubr.f32.gmra.mrb[0].mxu0 %v3412
  %v3574 = vpop.f32.mrb[0].mxu0
  %v3575 = vadd.f32 0.0, %v3574
  %v3576 = vpop.f32.mrb[0].mxu0
  %3577 = vmatprep.mubr.f32.mxu0 0.0
  %3578 = vmatmul.mubr.f32.gmra.mrb[0].mxu0 %v3413
  %v3579 = vpop.f32.mrb[0].mxu0
  %v3580 = vadd.f32 0.0, %v3579
  %v3581 = vpop.f32.mrb[0].mxu0
  %3582 = vmatprep.mubr.f32.mxu0 0.0
  %3583 = vmatmul.mubr.f32.gmra.mrb[0].mxu0 %v3414
  %v3584 = vpop.f32.mrb[0].mxu0
  %v3585 = vadd.f32 0.0, %v3584
  %v3586 = vpop.f32.mrb[0].mxu0
  %3587 = vmatprep.mubr.f32.mxu0 0.0
  %3588 = vmatmul.mubr.f32.gmra.mrb[0].mxu0 %v3415
  %v3589 = vpop.f32.mrb[0].mxu0
  %v3590 = vadd.f32 0.0, %v3589
  %v3591 = vpop.f32.mrb[0].mxu0
  %3592 = vmatprep.mubr.f32.mxu0 0.0
  %3593 = vmatmul.mubr.f32.gmra.mrb[0].mxu0 %v3416
  %v3594 = vpop.f32.mrb[0].mxu0
  %v3595 = vadd.f32 0.0, %v3594
  %v3596 = vpop.f32.mrb[0].mxu0
  %3597 = vmatprep.mubr.f32.mxu0 0.0
  %3598 = vmatmul.mubr.f32.gmra.mrb[0].mxu0 %v3417
  %v3599 = vpop.f32.mrb[0].mxu0
  %v3600 = vadd.f32 0.0, %v3599
  %v3601 = vpop.f32.mrb[0].mxu0
  %3602 = vmatprep.mubr.f32.mxu0 0.0
  %3603 = vmatmul.mubr.f32.gmra.mrb[0].mxu0 %v3418
  %v3604 = vpop.f32.mrb[0].mxu0
  %v3605 = vadd.f32 0.0, %v3604
  %v3606 = vpop.f32.mrb[0].mxu0
  %3607 = vmatprep.mubr.f32.mxu0 0.0
  %3608 = vmatmul.mubr.f32.gmra.mrb[0].mxu0 %v3419
  %v3609 = vpop.f32.mrb[0].mxu0
  %v3610 = vadd.f32 0.0, %v3609
  %v3611 = vpop.f32.mrb[0].mxu0
  %3612 = vdwg.mxu0
  %v3613 = vld [vmem:[%s6 + $0x18] sm:$0xff]
  %v3615 = vsel %vm587, %v3535, 0
  %v3618 = vsel %vm587, %v3540, 0
  %v3621 = vsel %vm587, %v3545, 0
  %v3624 = vsel %vm587, %v3550, 0
  %v3627 = vsel %vm587, %v3555, 0
  %v3630 = vsel %vm587, %v3560, 0
  %v3633 = vsel %vm587, %v3565, 0
  %v3636 = vsel %vm587, %v3570, 0
  %v3639 = vsel %vm587, %v3575, 0
  %v3642 = vsel %vm587, %v3580, 0
  %v3645 = vsel %vm587, %v3585, 0
  %v3648 = vsel %vm587, %v3590, 0
  %v3651 = vsel %vm587, %v3595, 0
  %v3654 = vsel %vm587, %v3600, 0
  %v3657 = vsel %vm587, %v3605, 0
  %v3660 = vsel %vm587, %v3610, 0
  %3662 = vmatprep.subr.mxu0 0.0
  %3663 = vmatpush1.msra.mxu0 %v3613
  %3664 = vmatprep.subr.mxu0 0.0
  %3665 = vmatpush1.msra.mxu0 0.0
  %3666 = vmatprep.subr.mxu0 0.0
  %3667 = vmatpush1.msra.mxu0 0.0
  %3668 = vmatprep.subr.mxu0 0.0
  %3669 = vmatpush1.msra.mxu0 0.0
  %3670 = vmatprep.subr.mxu0 0.0
  %3671 = vmatpush1.msra.mxu0 0.0
  %3672 = vmatprep.subr.mxu0 0.0
  %3673 = vmatpush1.msra.mxu0 0.0
  %3674 = vmatprep.subr.mxu0 0.0
  %3675 = vmatpush1.msra.mxu0 0.0
  %3676 = vmatprep.subr.mxu0 0.0
  %3677 = vmatpush1.msra.mxu0 0.0
  %3678 = vmatprep.subr.mxu0 0.0
  %3679 = vmatpush1.msra.mxu0 0.0
  %3680 = vmatprep.subr.mxu0 0.0
  %3681 = vmatpush1.msra.mxu0 0.0
  %3682 = vmatprep.subr.mxu0 0.0
  %3683 = vmatpush1.msra.mxu0 0.0
  %3684 = vmatprep.subr.mxu0 0.0
  %3685 = vmatpush1.msra.mxu0 0.0
  %3686 = vmatprep.subr.mxu0 0.0
  %3687 = vmatpush1.msra.mxu0 0.0
  %3688 = vmatprep.subr.mxu0 0.0
  %3689 = vmatpush1.msra.mxu0 0.0
  %3690 = vmatprep.subr.mxu0 0.0
  %3691 = vmatpush1.msra.mxu0 0.0
  %3692 = vmatprep.subr.mxu0 0.0
  %3693 = vmatpush1.msra.mxu0 0.0
  %3694 = vmatprep.subr.mxu0 0.0
  %3695 = vmatpush1.msra.mxu0 0.0
  %3696 = vmatprep.subr.mxu0 0.0
  %3697 = vmatpush1.msra.mxu0 0.0
  %3698 = vmatprep.subr.mxu0 0.0
  %3699 = vmatpush1.msra.mxu0 0.0
  %3700 = vmatprep.subr.mxu0 0.0
  %3701 = vmatpush1.msra.mxu0 0.0
  %3702 = vmatprep.subr.mxu0 0.0
  %3703 = vmatpush1.msra.mxu0 0.0
  %3704 = vmatprep.subr.mxu0 0.0
  %3705 = vmatpush1.msra.mxu0 0.0
  %3706 = vmatprep.subr.mxu0 0.0
  %3707 = vmatpush1.msra.mxu0 0.0
  %3708 = vmatprep.subr.mxu0 0.0
  %3709 = vmatpush1.msra.mxu0 0.0
  %3710 = vmatprep.subr.mxu0 0.0
  %3711 = vmatpush1.msra.mxu0 0.0
  %3712 = vmatprep.subr.mxu0 0.0
  %3713 = vmatpush1.msra.mxu0 0.0
  %3714 = vmatprep.subr.mxu0 0.0
  %3715 = vmatpush1.msra.mxu0 0.0
  %3716 = vmatprep.subr.mxu0 0.0
  %3717 = vmatpush1.msra.mxu0 0.0
  %3718 = vmatprep.subr.mxu0 0.0
  %3719 = vmatpush1.msra.mxu0 0.0
  %3720 = vmatprep.subr.mxu0 0.0
  %3721 = vmatpush1.msra.mxu0 0.0
  %3722 = vmatprep.subr.mxu0 0.0
  %3723 = vmatpush1.msra.mxu0 0.0
  %3724 = vmatprep.subr.mxu0 0.0
  %3725 = vmatpush1.msra.mxu0 0.0
  %3726 = vmatprep.mubr.f32.mxu0 0.0
  %3727 = vmatmul.mubr.f32.gmra.mrb[0].mxu0 %v3615
  %v3728 = vpop.f32.mrb[0].mxu0
  %v3729 = vadd.f32 0.0, %v3728
  %v3730 = vpop.f32.mrb[0].mxu0
  %3731 = vmatprep.mubr.f32.mxu0 0.0
  %3732 = vmatmul.mubr.f32.gmra.mrb[0].mxu0 %v3618
  %v3733 = vpop.f32.mrb[0].mxu0
  %v3734 = vadd.f32 0.0, %v3733
  %v3735 = vpop.f32.mrb[0].mxu0
  %3736 = vmatprep.mubr.f32.mxu0 0.0
  %3737 = vmatmul.mubr.f32.gmra.mrb[0].mxu0 %v3621
  %v3738 = vpop.f32.mrb[0].mxu0
  %v3739 = vadd.f32 0.0, %v3738
  %v3740 = vpop.f32.mrb[0].mxu0
  %3741 = vmatprep.mubr.f32.mxu0 0.0
  %3742 = vmatmul.mubr.f32.gmra.mrb[0].mxu0 %v3624
  %v3743 = vpop.f32.mrb[0].mxu0
  %v3744 = vadd.f32 0.0, %v3743
  %v3745 = vpop.f32.mrb[0].mxu0
  %3746 = vmatprep.mubr.f32.mxu0 0.0
  %3747 = vmatmul.mubr.f32.gmra.mrb[0].mxu0 %v3627
  %v3748 = vpop.f32.mrb[0].mxu0
  %v3749 = vadd.f32 0.0, %v3748
  %v3750 = vpop.f32.mrb[0].mxu0
  %3751 = vmatprep.mubr.f32.mxu0 0.0
  %3752 = vmatmul.mubr.f32.gmra.mrb[0].mxu0 %v3630
  %v3753 = vpop.f32.mrb[0].mxu0
  %v3754 = vadd.f32 0.0, %v3753
  %v3755 = vpop.f32.mrb[0].mxu0
  %3756 = vmatprep.mubr.f32.mxu0 0.0
  %3757 = vmatmul.mubr.f32.gmra.mrb[0].mxu0 %v3633
  %v3758 = vpop.f32.mrb[0].mxu0
  %v3759 = vadd.f32 0.0, %v3758
  %v3760 = vpop.f32.mrb[0].mxu0
  %3761 = vmatprep.mubr.f32.mxu0 0.0
  %3762 = vmatmul.mubr.f32.gmra.mrb[0].mxu0 %v3636
  %v3763 = vpop.f32.mrb[0].mxu0
  %v3764 = vadd.f32 0.0, %v3763
  %v3765 = vpop.f32.mrb[0].mxu0
  %3766 = vmatprep.mubr.f32.mxu0 0.0
  %3767 = vmatmul.mubr.f32.gmra.mrb[0].mxu0 %v3639
  %v3768 = vpop.f32.mrb[0].mxu0
  %v3769 = vadd.f32 0.0, %v3768
  %v3770 = vpop.f32.mrb[0].mxu0
  %3771 = vmatprep.mubr.f32.mxu0 0.0
  %3772 = vmatmul.mubr.f32.gmra.mrb[0].mxu0 %v3642
  %v3773 = vpop.f32.mrb[0].mxu0
  %v3774 = vadd.f32 0.0, %v3773
  %v3775 = vpop.f32.mrb[0].mxu0
  %3776 = vmatprep.mubr.f32.mxu0 0.0
  %3777 = vmatmul.mubr.f32.gmra.mrb[0].mxu0 %v3645
  %v3778 = vpop.f32.mrb[0].mxu0
  %v3779 = vadd.f32 0.0, %v3778
  %v3780 = vpop.f32.mrb[0].mxu0
  %3781 = vmatprep.mubr.f32.mxu0 0.0
  %3782 = vmatmul.mubr.f32.gmra.mrb[0].mxu0 %v3648
  %v3783 = vpop.f32.mrb[0].mxu0
  %v3784 = vadd.f32 0.0, %v3783
  %v3785 = vpop.f32.mrb[0].mxu0
  %3786 = vmatprep.mubr.f32.mxu0 0.0
  %3787 = vmatmul.mubr.f32.gmra.mrb[0].mxu0 %v3651
  %v3788 = vpop.f32.mrb[0].mxu0
  %v3789 = vadd.f32 0.0, %v3788
  %v3790 = vpop.f32.mrb[0].mxu0
  %3791 = vmatprep.mubr.f32.mxu0 0.0
  %3792 = vmatmul.mubr.f32.gmra.mrb[0].mxu0 %v3654
  %v3793 = vpop.f32.mrb[0].mxu0
  %v3794 = vadd.f32 0.0, %v3793
  %v3795 = vpop.f32.mrb[0].mxu0
  %3796 = vmatprep.mubr.f32.mxu0 0.0
  %3797 = vmatmul.mubr.f32.gmra.mrb[0].mxu0 %v3657
  %v3798 = vpop.f32.mrb[0].mxu0
  %v3799 = vadd.f32 0.0, %v3798
  %v3800 = vpop.f32.mrb[0].mxu0
  %3801 = vmatprep.mubr.f32.mxu0 0.0
  %3802 = vmatmul.mubr.f32.gmra.mrb[0].mxu0 %v3660
  %v3803 = vpop.f32.mrb[0].mxu0
  %v3804 = vadd.f32 0.0, %v3803
  %v3805 = vpop.f32.mrb[0].mxu0
  %3806 = vdwg.mxu0
  %v3807 = vadd.f32 %v2970, %v3729
  %v3808 = vadd.f32 %v2971, %v3734
  %v3809 = vadd.f32 %v2972, %v3739
  %v3810 = vadd.f32 %v2973, %v3744
  %v3811 = vadd.f32 %v2974, %v3749
  %v3812 = vadd.f32 %v2975, %v3754
  %v3813 = vadd.f32 %v2976, %v3759
  %v3814 = vadd.f32 %v2977, %v3764
  %v3815 = vadd.f32 %v2978, %v3769
  %v3816 = vadd.f32 %v2979, %v3774
  %v3817 = vadd.f32 %v2980, %v3779
  %v3818 = vadd.f32 %v2981, %v3784
  %v3819 = vadd.f32 %v2982, %v3789
  %v3820 = vadd.f32 %v2983, %v3794
  %v3821 = vadd.f32 %v2984, %v3799
  %v3822 = vadd.f32 %v2985, %v3804
  %v3823 = vadd.f32 %v47, %v3807
  %v3824 = vadd.f32 %v48, %v3808
  %v3825 = vadd.f32 %v49, %v3809
  %v3826 = vadd.f32 %v50, %v3810
  %v3827 = vadd.f32 %v51, %v3811
  %v3828 = vadd.f32 %v52, %v3812
  %v3829 = vadd.f32 %v53, %v3813
  %v3830 = vadd.f32 %v54, %v3814
  %v3831 = vadd.f32 %v55, %v3815
  %v3832 = vadd.f32 %v56, %v3816
  %v3833 = vadd.f32 %v57, %v3817
  %v3834 = vadd.f32 %v58, %v3818
  %v3835 = vadd.f32 %v59, %v3819
  %v3836 = vadd.f32 %v60, %v3820
  %v3837 = vadd.f32 %v61, %v3821
  %v3838 = vadd.f32 %v62, %v3822
  %v3839 = vld [vmem:[%s7] sm:$0x1]
  %v3841 = vlaneseq
  %v3842 = vshrl.u32 %v3841, 7
  %v3843 = vsub.s32 0, %v3842
  %v3844 = vrot.slane %v3839, %v3843
  %v3846 = vadd.f32 %v3823, %v3844
  %v3847 = vadd.f32 %v3824, %v3844
  %v3848 = vadd.f32 %v3825, %v3844
  %v3849 = vadd.f32 %v3826, %v3844
  %v3850 = vadd.f32 %v3827, %v3844
  %v3851 = vadd.f32 %v3828, %v3844
  %v3852 = vadd.f32 %v3829, %v3844
  %v3853 = vadd.f32 %v3830, %v3844
  %v3854 = vadd.f32 %v3831, %v3844
  %v3855 = vadd.f32 %v3832, %v3844
  %v3856 = vadd.f32 %v3833, %v3844
  %v3857 = vadd.f32 %v3834, %v3844
  %v3858 = vadd.f32 %v3835, %v3844
  %v3859 = vadd.f32 %v3836, %v3844
  %v3860 = vadd.f32 %v3837, %v3844
  %v3861 = vadd.f32 %v3838, %v3844
  %v3862 = vsel %vm63, %v3846, 0.0
  %3863 = vadd.xlane.f32.xlu0 %v3862
  %v3864 = vpop.xlane.xlu0 %3863
  %v3865 = vsel %vm63, %v3847, 0.0
  %3866 = vadd.xlane.f32.xlu0 %v3865
  %v3867 = vpop.xlane.xlu0 %3866
  %v3868 = vsel %vm63, %v3848, 0.0
  %3869 = vadd.xlane.f32.xlu0 %v3868
  %v3870 = vpop.xlane.xlu0 %3869
  %v3871 = vsel %vm63, %v3849, 0.0
  %3872 = vadd.xlane.f32.xlu0 %v3871
  %v3873 = vpop.xlane.xlu0 %3872
  %v3874 = vsel %vm63, %v3850, 0.0
  %3875 = vadd.xlane.f32.xlu0 %v3874
  %v3876 = vpop.xlane.xlu0 %3875
  %v3877 = vsel %vm63, %v3851, 0.0
  %3878 = vadd.xlane.f32.xlu0 %v3877
  %v3879 = vpop.xlane.xlu0 %3878
  %v3880 = vsel %vm63, %v3852, 0.0
  %3881 = vadd.xlane.f32.xlu0 %v3880
  %v3882 = vpop.xlane.xlu0 %3881
  %v3883 = vsel %vm63, %v3853, 0.0
  %3884 = vadd.xlane.f32.xlu0 %v3883
  %v3885 = vpop.xlane.xlu0 %3884
  %v3886 = vsel %vm63, %v3854, 0.0
  %3887 = vadd.xlane.f32.xlu0 %v3886
  %v3888 = vpop.xlane.xlu0 %3887
  %v3889 = vsel %vm63, %v3855, 0.0
  %3890 = vadd.xlane.f32.xlu0 %v3889
  %v3891 = vpop.xlane.xlu0 %3890
  %v3892 = vsel %vm63, %v3856, 0.0
  %3893 = vadd.xlane.f32.xlu0 %v3892
  %v3894 = vpop.xlane.xlu0 %3893
  %v3895 = vsel %vm63, %v3857, 0.0
  %3896 = vadd.xlane.f32.xlu0 %v3895
  %v3897 = vpop.xlane.xlu0 %3896
  %v3898 = vsel %vm63, %v3858, 0.0
  %3899 = vadd.xlane.f32.xlu0 %v3898
  %v3900 = vpop.xlane.xlu0 %3899
  %v3901 = vsel %vm63, %v3859, 0.0
  %3902 = vadd.xlane.f32.xlu0 %v3901
  %v3903 = vpop.xlane.xlu0 %3902
  %v3904 = vsel %vm63, %v3860, 0.0
  %3905 = vadd.xlane.f32.xlu0 %v3904
  %v3906 = vpop.xlane.xlu0 %3905
  %v3907 = vsel %vm63, %v3861, 0.0
  %3908 = vadd.xlane.f32.xlu0 %v3907
  %v3909 = vpop.xlane.xlu0 %3908
  %v3910 = vmul.f32 %v3864, %v112
  %v3911 = vmul.f32 %v3867, %v112
  %v3912 = vmul.f32 %v3870, %v112
  %v3913 = vmul.f32 %v3873, %v112
  %v3914 = vmul.f32 %v3876, %v112
  %v3915 = vmul.f32 %v3879, %v112
  %v3916 = vmul.f32 %v3882, %v112
  %v3917 = vmul.f32 %v3885, %v112
  %v3918 = vmul.f32 %v3888, %v112
  %v3919 = vmul.f32 %v3891, %v112
  %v3920 = vmul.f32 %v3894, %v112
  %v3921 = vmul.f32 %v3897, %v112
  %v3922 = vmul.f32 %v3900, %v112
  %v3923 = vmul.f32 %v3903, %v112
  %v3924 = vmul.f32 %v3906, %v112
  %v3925 = vmul.f32 %v3909, %v112
  %v3926 = vsub.f32 %v3846, %v3910
  %v3927 = vsub.f32 %v3847, %v3911
  %v3928 = vsub.f32 %v3848, %v3912
  %v3929 = vsub.f32 %v3849, %v3913
  %v3930 = vsub.f32 %v3850, %v3914
  %v3931 = vsub.f32 %v3851, %v3915
  %v3932 = vsub.f32 %v3852, %v3916
  %v3933 = vsub.f32 %v3853, %v3917
  %v3934 = vsub.f32 %v3854, %v3918
  %v3935 = vsub.f32 %v3855, %v3919
  %v3936 = vsub.f32 %v3856, %v3920
  %v3937 = vsub.f32 %v3857, %v3921
  %v3938 = vsub.f32 %v3858, %v3922
  %v3939 = vsub.f32 %v3859, %v3923
  %v3940 = vsub.f32 %v3860, %v3924
  %v3941 = vsub.f32 %v3861, %v3925
  %v3942 = vmul.f32 %v3926, %v3926
  %v3943 = vmul.f32 %v3927, %v3927
  %v3944 = vmul.f32 %v3928, %v3928
  %v3945 = vmul.f32 %v3929, %v3929
  %v3946 = vmul.f32 %v3930, %v3930
  %v3947 = vmul.f32 %v3931, %v3931
  %v3948 = vmul.f32 %v3932, %v3932
  %v3949 = vmul.f32 %v3933, %v3933
  %v3950 = vmul.f32 %v3934, %v3934
  %v3951 = vmul.f32 %v3935, %v3935
  %v3952 = vmul.f32 %v3936, %v3936
  %v3953 = vmul.f32 %v3937, %v3937
  %v3954 = vmul.f32 %v3938, %v3938
  %v3955 = vmul.f32 %v3939, %v3939
  %v3956 = vmul.f32 %v3940, %v3940
  %v3957 = vmul.f32 %v3941, %v3941
  %v3958 = vsel %vm63, %v3942, 0.0
  %3959 = vadd.xlane.f32.xlu0 %v3958
  %v3960 = vpop.xlane.xlu0 %3959
  %v3961 = vsel %vm63, %v3943, 0.0
  %3962 = vadd.xlane.f32.xlu0 %v3961
  %v3963 = vpop.xlane.xlu0 %3962
  %v3964 = vsel %vm63, %v3944, 0.0
  %3965 = vadd.xlane.f32.xlu0 %v3964
  %v3966 = vpop.xlane.xlu0 %3965
  %v3967 = vsel %vm63, %v3945, 0.0
  %3968 = vadd.xlane.f32.xlu0 %v3967
  %v3969 = vpop.xlane.xlu0 %3968
  %v3970 = vsel %vm63, %v3946, 0.0
  %3971 = vadd.xlane.f32.xlu0 %v3970
  %v3972 = vpop.xlane.xlu0 %3971
  %v3973 = vsel %vm63, %v3947, 0.0
  %3974 = vadd.xlane.f32.xlu0 %v3973
  %v3975 = vpop.xlane.xlu0 %3974
  %v3976 = vsel %vm63, %v3948, 0.0
  %3977 = vadd.xlane.f32.xlu0 %v3976
  %v3978 = vpop.xlane.xlu0 %3977
  %v3979 = vsel %vm63, %v3949, 0.0
  %3980 = vadd.xlane.f32.xlu0 %v3979
  %v3981 = vpop.xlane.xlu0 %3980
  %v3982 = vsel %vm63, %v3950, 0.0
  %3983 = vadd.xlane.f32.xlu0 %v3982
  %v3984 = vpop.xlane.xlu0 %3983
  %v3985 = vsel %vm63, %v3951, 0.0
  %3986 = vadd.xlane.f32.xlu0 %v3985
  %v3987 = vpop.xlane.xlu0 %3986
  %v3988 = vsel %vm63, %v3952, 0.0
  %3989 = vadd.xlane.f32.xlu0 %v3988
  %v3990 = vpop.xlane.xlu0 %3989
  %v3991 = vsel %vm63, %v3953, 0.0
  %3992 = vadd.xlane.f32.xlu0 %v3991
  %v3993 = vpop.xlane.xlu0 %3992
  %v3994 = vsel %vm63, %v3954, 0.0
  %3995 = vadd.xlane.f32.xlu0 %v3994
  %v3996 = vpop.xlane.xlu0 %3995
  %v3997 = vsel %vm63, %v3955, 0.0
  %3998 = vadd.xlane.f32.xlu0 %v3997
  %v3999 = vpop.xlane.xlu0 %3998
  %v4000 = vsel %vm63, %v3956, 0.0
  %4001 = vadd.xlane.f32.xlu0 %v4000
  %v4002 = vpop.xlane.xlu0 %4001
  %v4003 = vsel %vm63, %v3957, 0.0
  %4004 = vadd.xlane.f32.xlu0 %v4003
  %v4005 = vpop.xlane.xlu0 %4004
  %v4006 = vmul.f32 %v3960, %v112
  %v4007 = vmul.f32 %v3963, %v112
  %v4008 = vmul.f32 %v3966, %v112
  %v4009 = vmul.f32 %v3969, %v112
  %v4010 = vmul.f32 %v3972, %v112
  %v4011 = vmul.f32 %v3975, %v112
  %v4012 = vmul.f32 %v3978, %v112
  %v4013 = vmul.f32 %v3981, %v112
  %v4014 = vmul.f32 %v3984, %v112
  %v4015 = vmul.f32 %v3987, %v112
  %v4016 = vmul.f32 %v3990, %v112
  %v4017 = vmul.f32 %v3993, %v112
  %v4018 = vmul.f32 %v3996, %v112
  %v4019 = vmul.f32 %v3999, %v112
  %v4020 = vmul.f32 %v4002, %v112
  %v4021 = vmul.f32 %v4005, %v112
  %v4022 = vadd.f32 %v4006, 1e-05
  %v4023 = vadd.f32 %v4007, 1e-05
  %v4024 = vadd.f32 %v4008, 1e-05
  %v4025 = vadd.f32 %v4009, 1e-05
  %v4026 = vadd.f32 %v4010, 1e-05
  %v4027 = vadd.f32 %v4011, 1e-05
  %v4028 = vadd.f32 %v4012, 1e-05
  %v4029 = vadd.f32 %v4013, 1e-05
  %v4030 = vadd.f32 %v4014, 1e-05
  %v4031 = vadd.f32 %v4015, 1e-05
  %v4032 = vadd.f32 %v4016, 1e-05
  %v4033 = vadd.f32 %v4017, 1e-05
  %v4034 = vadd.f32 %v4018, 1e-05
  %v4035 = vadd.f32 %v4019, 1e-05
  %v4036 = vadd.f32 %v4020, 1e-05
  %v4037 = vadd.f32 %v4021, 1e-05
  %v4038 = vrsqrt.pop %v4022
  %v4039 = vrsqrt.pop %v4023
  %v4040 = vrsqrt.pop %v4024
  %v4041 = vrsqrt.pop %v4025
  %v4042 = vrsqrt.pop %v4026
  %v4043 = vrsqrt.pop %v4027
  %v4044 = vrsqrt.pop %v4028
  %v4045 = vrsqrt.pop %v4029
  %v4046 = vrsqrt.pop %v4030
  %v4047 = vrsqrt.pop %v4031
  %v4048 = vrsqrt.pop %v4032
  %v4049 = vrsqrt.pop %v4033
  %v4050 = vrsqrt.pop %v4034
  %v4051 = vrsqrt.pop %v4035
  %v4052 = vrsqrt.pop %v4036
  %v4053 = vrsqrt.pop %v4037
  %v4054 = vmul.f32 %v3926, %v4038
  %v4055 = vmul.f32 %v3927, %v4039
  %v4056 = vmul.f32 %v3928, %v4040
  %v4057 = vmul.f32 %v3929, %v4041
  %v4058 = vmul.f32 %v3930, %v4042
  %v4059 = vmul.f32 %v3931, %v4043
  %v4060 = vmul.f32 %v3932, %v4044
  %v4061 = vmul.f32 %v3933, %v4045
  %v4062 = vmul.f32 %v3934, %v4046
  %v4063 = vmul.f32 %v3935, %v4047
  %v4064 = vmul.f32 %v3936, %v4048
  %v4065 = vmul.f32 %v3937, %v4049
  %v4066 = vmul.f32 %v3938, %v4050
  %v4067 = vmul.f32 %v3939, %v4051
  %v4068 = vmul.f32 %v3940, %v4052
  %v4069 = vmul.f32 %v3941, %v4053
  %v4070 = vld [vmem:[%s8] sm:$0x1]
  %v4072 = vlaneseq
  %v4073 = vshrl.u32 %v4072, 7
  %v4074 = vsub.s32 0, %v4073
  %v4075 = vrot.slane %v4070, %v4074
  %v4077 = vmul.f32 %v4054, %v4075
  %v4078 = vmul.f32 %v4055, %v4075
  %v4079 = vmul.f32 %v4056, %v4075
  %v4080 = vmul.f32 %v4057, %v4075
  %v4081 = vmul.f32 %v4058, %v4075
  %v4082 = vmul.f32 %v4059, %v4075
  %v4083 = vmul.f32 %v4060, %v4075
  %v4084 = vmul.f32 %v4061, %v4075
  %v4085 = vmul.f32 %v4062, %v4075
  %v4086 = vmul.f32 %v4063, %v4075
  %v4087 = vmul.f32 %v4064, %v4075
  %v4088 = vmul.f32 %v4065, %v4075
  %v4089 = vmul.f32 %v4066, %v4075
  %v4090 = vmul.f32 %v4067, %v4075
  %v4091 = vmul.f32 %v4068, %v4075
  %v4092 = vmul.f32 %v4069, %v4075
  %v4093 = vld [vmem:[%s9] sm:$0x1]
  %v4095 = vlaneseq
  %v4096 = vshrl.u32 %v4095, 7
  %v4097 = vsub.s32 0, %v4096
  %v4098 = vrot.slane %v4093, %v4097
  %v4100 = vadd.f32 %v4077, %v4098
  %v4101 = vadd.f32 %v4078, %v4098
  %v4102 = vadd.f32 %v4079, %v4098
  %v4103 = vadd.f32 %v4080, %v4098
  %v4104 = vadd.f32 %v4081, %v4098
  %v4105 = vadd.f32 %v4082, %v4098
  %v4106 = vadd.f32 %v4083, %v4098
  %v4107 = vadd.f32 %v4084, %v4098
  %v4108 = vadd.f32 %v4085, %v4098
  %v4109 = vadd.f32 %v4086, %v4098
  %v4110 = vadd.f32 %v4087, %v4098
  %v4111 = vadd.f32 %v4088, %v4098
  %v4112 = vadd.f32 %v4089, %v4098
  %v4113 = vadd.f32 %v4090, %v4098
  %v4114 = vadd.f32 %v4091, %v4098
  %v4115 = vadd.f32 %v4092, %v4098
  %v4116 = vld [vmem:[%s10] sm:$0xff]
  %v4117 = vld [vmem:[%s10 + $0x8] sm:$0xff]
  %v4118 = vld [vmem:[%s10 + $0x10] sm:$0xff]
  %v4119 = vld [vmem:[%s10 + $0x18] sm:$0xff]
  %v4120 = vld [vmem:[%s11] sm:$0x1]
  %v4122 = vlaneseq
  %v4123 = vshrl.u32 %v4122, 7
  %v4124 = vsub.s32 0, %v4123
  %v4125 = vrot.slane %v4120, %v4124
  %v4128 = vsel %vm63, %v4100, 0
  %v4131 = vsel %vm63, %v4101, 0
  %v4134 = vsel %vm63, %v4102, 0
  %v4137 = vsel %vm63, %v4103, 0
  %v4140 = vsel %vm63, %v4104, 0
  %v4143 = vsel %vm63, %v4105, 0
  %v4146 = vsel %vm63, %v4106, 0
  %v4149 = vsel %vm63, %v4107, 0
  %v4152 = vsel %vm63, %v4108, 0
  %v4155 = vsel %vm63, %v4109, 0
  %v4158 = vsel %vm63, %v4110, 0
  %v4161 = vsel %vm63, %v4111, 0
  %v4164 = vsel %vm63, %v4112, 0
  %v4167 = vsel %vm63, %v4113, 0
  %v4170 = vsel %vm63, %v4114, 0
  %v4173 = vsel %vm63, %v4115, 0
  %4175 = vmatprep.subr.mxu0 0.0
  %4176 = vmatpush1.msra.mxu0 %v4116
  %4177 = vmatprep.subr.mxu0 0.0
  %4178 = vmatpush1.msra.mxu0 %v4117
  %4179 = vmatprep.subr.mxu0 0.0
  %4180 = vmatpush1.msra.mxu0 %v4118
  %4181 = vmatprep.subr.mxu0 0.0
  %4182 = vmatpush1.msra.mxu0 %v4119
  %4183 = vmatprep.subr.mxu0 0.0
  %4184 = vmatpush1.msra.mxu0 0.0
  %4185 = vmatprep.subr.mxu0 0.0
  %4186 = vmatpush1.msra.mxu0 0.0
  %4187 = vmatprep.subr.mxu0 0.0
  %4188 = vmatpush1.msra.mxu0 0.0
  %4189 = vmatprep.subr.mxu0 0.0
  %4190 = vmatpush1.msra.mxu0 0.0
  %4191 = vmatprep.subr.mxu0 0.0
  %4192 = vmatpush1.msra.mxu0 0.0
  %4193 = vmatprep.subr.mxu0 0.0
  %4194 = vmatpush1.msra.mxu0 0.0
  %4195 = vmatprep.subr.mxu0 0.0
  %4196 = vmatpush1.msra.mxu0 0.0
  %4197 = vmatprep.subr.mxu0 0.0
  %4198 = vmatpush1.msra.mxu0 0.0
  %4199 = vmatprep.subr.mxu0 0.0
  %4200 = vmatpush1.msra.mxu0 0.0
  %4201 = vmatprep.subr.mxu0 0.0
  %4202 = vmatpush1.msra.mxu0 0.0
  %4203 = vmatprep.subr.mxu0 0.0
  %4204 = vmatpush1.msra.mxu0 0.0
  %4205 = vmatprep.subr.mxu0 0.0
  %4206 = vmatpush1.msra.mxu0 0.0
  %4207 = vmatprep.subr.mxu0 0.0
  %4208 = vmatpush1.msra.mxu0 0.0
  %4209 = vmatprep.subr.mxu0 0.0
  %4210 = vmatpush1.msra.mxu0 0.0
  %4211 = vmatprep.subr.mxu0 0.0
  %4212 = vmatpush1.msra.mxu0 0.0
  %4213 = vmatprep.subr.mxu0 0.0
  %4214 = vmatpush1.msra.mxu0 0.0
  %4215 = vmatprep.subr.mxu0 0.0
  %4216 = vmatpush1.msra.mxu0 0.0
  %4217 = vmatprep.subr.mxu0 0.0
  %4218 = vmatpush1.msra.mxu0 0.0
  %4219 = vmatprep.subr.mxu0 0.0
  %4220 = vmatpush1.msra.mxu0 0.0
  %4221 = vmatprep.subr.mxu0 0.0
  %4222 = vmatpush1.msra.mxu0 0.0
  %4223 = vmatprep.subr.mxu0 0.0
  %4224 = vmatpush1.msra.mxu0 0.0
  %4225 = vmatprep.subr.mxu0 0.0
  %4226 = vmatpush1.msra.mxu0 0.0
  %4227 = vmatprep.subr.mxu0 0.0
  %4228 = vmatpush1.msra.mxu0 0.0
  %4229 = vmatprep.subr.mxu0 0.0
  %4230 = vmatpush1.msra.mxu0 0.0
  %4231 = vmatprep.subr.mxu0 0.0
  %4232 = vmatpush1.msra.mxu0 0.0
  %4233 = vmatprep.subr.mxu0 0.0
  %4234 = vmatpush1.msra.mxu0 0.0
  %4235 = vmatprep.subr.mxu0 0.0
  %4236 = vmatpush1.msra.mxu0 0.0
  %4237 = vmatprep.subr.mxu0 0.0
  %4238 = vmatpush1.msra.mxu0 0.0
  %4239 = vmatprep.mubr.f32.mxu0 0.0
  %4240 = vmatmul.mubr.f32.gmra.mrb[0].mxu0 %v4128
  %v4241 = vpop.f32.mrb[0].mxu0
  %v4242 = vadd.f32 %v4125, %v4241
  %v4243 = vpop.f32.mrb[0].mxu0
  %4244 = vmatprep.mubr.f32.mxu0 0.0
  %4245 = vmatmul.mubr.f32.gmra.mrb[0].mxu0 %v4131
  %v4246 = vpop.f32.mrb[0].mxu0
  %v4247 = vadd.f32 %v4125, %v4246
  %v4248 = vpop.f32.mrb[0].mxu0
  %4249 = vmatprep.mubr.f32.mxu0 0.0
  %4250 = vmatmul.mubr.f32.gmra.mrb[0].mxu0 %v4134
  %v4251 = vpop.f32.mrb[0].mxu0
  %v4252 = vadd.f32 %v4125, %v4251
  %v4253 = vpop.f32.mrb[0].mxu0
  %4254 = vmatprep.mubr.f32.mxu0 0.0
  %4255 = vmatmul.mubr.f32.gmra.mrb[0].mxu0 %v4137
  %v4256 = vpop.f32.mrb[0].mxu0
  %v4257 = vadd.f32 %v4125, %v4256
  %v4258 = vpop.f32.mrb[0].mxu0
  %4259 = vmatprep.mubr.f32.mxu0 0.0
  %4260 = vmatmul.mubr.f32.gmra.mrb[0].mxu0 %v4140
  %v4261 = vpop.f32.mrb[0].mxu0
  %v4262 = vadd.f32 %v4125, %v4261
  %v4263 = vpop.f32.mrb[0].mxu0
  %4264 = vmatprep.mubr.f32.mxu0 0.0
  %4265 = vmatmul.mubr.f32.gmra.mrb[0].mxu0 %v4143
  %v4266 = vpop.f32.mrb[0].mxu0
  %v4267 = vadd.f32 %v4125, %v4266
  %v4268 = vpop.f32.mrb[0].mxu0
  %4269 = vmatprep.mubr.f32.mxu0 0.0
  %4270 = vmatmul.mubr.f32.gmra.mrb[0].mxu0 %v4146
  %v4271 = vpop.f32.mrb[0].mxu0
  %v4272 = vadd.f32 %v4125, %v4271
  %v4273 = vpop.f32.mrb[0].mxu0
  %4274 = vmatprep.mubr.f32.mxu0 0.0
  %4275 = vmatmul.mubr.f32.gmra.mrb[0].mxu0 %v4149
  %v4276 = vpop.f32.mrb[0].mxu0
  %v4277 = vadd.f32 %v4125, %v4276
  %v4278 = vpop.f32.mrb[0].mxu0
  %4279 = vmatprep.mubr.f32.mxu0 0.0
  %4280 = vmatmul.mubr.f32.gmra.mrb[0].mxu0 %v4152
  %v4281 = vpop.f32.mrb[0].mxu0
  %v4282 = vadd.f32 %v4125, %v4281
  %v4283 = vpop.f32.mrb[0].mxu0
  %4284 = vmatprep.mubr.f32.mxu0 0.0
  %4285 = vmatmul.mubr.f32.gmra.mrb[0].mxu0 %v4155
  %v4286 = vpop.f32.mrb[0].mxu0
  %v4287 = vadd.f32 %v4125, %v4286
  %v4288 = vpop.f32.mrb[0].mxu0
  %4289 = vmatprep.mubr.f32.mxu0 0.0
  %4290 = vmatmul.mubr.f32.gmra.mrb[0].mxu0 %v4158
  %v4291 = vpop.f32.mrb[0].mxu0
  %v4292 = vadd.f32 %v4125, %v4291
  %v4293 = vpop.f32.mrb[0].mxu0
  %4294 = vmatprep.mubr.f32.mxu0 0.0
  %4295 = vmatmul.mubr.f32.gmra.mrb[0].mxu0 %v4161
  %v4296 = vpop.f32.mrb[0].mxu0
  %v4297 = vadd.f32 %v4125, %v4296
  %v4298 = vpop.f32.mrb[0].mxu0
  %4299 = vmatprep.mubr.f32.mxu0 0.0
  %4300 = vmatmul.mubr.f32.gmra.mrb[0].mxu0 %v4164
  %v4301 = vpop.f32.mrb[0].mxu0
  %v4302 = vadd.f32 %v4125, %v4301
  %v4303 = vpop.f32.mrb[0].mxu0
  %4304 = vmatprep.mubr.f32.mxu0 0.0
  %4305 = vmatmul.mubr.f32.gmra.mrb[0].mxu0 %v4167
  %v4306 = vpop.f32.mrb[0].mxu0
  %v4307 = vadd.f32 %v4125, %v4306
  %v4308 = vpop.f32.mrb[0].mxu0
  %4309 = vmatprep.mubr.f32.mxu0 0.0
  %4310 = vmatmul.mubr.f32.gmra.mrb[0].mxu0 %v4170
  %v4311 = vpop.f32.mrb[0].mxu0
  %v4312 = vadd.f32 %v4125, %v4311
  %v4313 = vpop.f32.mrb[0].mxu0
  %4314 = vmatprep.mubr.f32.mxu0 0.0
  %4315 = vmatmul.mubr.f32.gmra.mrb[0].mxu0 %v4173
  %v4316 = vpop.f32.mrb[0].mxu0
  %v4317 = vadd.f32 %v4125, %v4316
  %v4318 = vpop.f32.mrb[0].mxu0
  %4319 = vdwg.mxu0
  %v4320 = vmul.f32 %v4242, 0.5
  %v4321 = vmul.f32 %v4247, 0.5
  %v4322 = vmul.f32 %v4252, 0.5
  %v4323 = vmul.f32 %v4257, 0.5
  %v4324 = vmul.f32 %v4262, 0.5
  %v4325 = vmul.f32 %v4267, 0.5
  %v4326 = vmul.f32 %v4272, 0.5
  %v4327 = vmul.f32 %v4277, 0.5
  %v4328 = vmul.f32 %v4282, 0.5
  %v4329 = vmul.f32 %v4287, 0.5
  %v4330 = vmul.f32 %v4292, 0.5
  %v4331 = vmul.f32 %v4297, 0.5
  %v4332 = vmul.f32 %v4302, 0.5
  %v4333 = vmul.f32 %v4307, 0.5
  %v4334 = vmul.f32 %v4312, 0.5
  %v4335 = vmul.f32 %v4317, 0.5
  %v4336 = vmul.f32 %v4242, 0.70710677
  %v4337 = vmul.f32 %v4247, 0.70710677
  %v4338 = vmul.f32 %v4252, 0.70710677
  %v4339 = vmul.f32 %v4257, 0.70710677
  %v4340 = vmul.f32 %v4262, 0.70710677
  %v4341 = vmul.f32 %v4267, 0.70710677
  %v4342 = vmul.f32 %v4272, 0.70710677
  %v4343 = vmul.f32 %v4277, 0.70710677
  %v4344 = vmul.f32 %v4282, 0.70710677
  %v4345 = vmul.f32 %v4287, 0.70710677
  %v4346 = vmul.f32 %v4292, 0.70710677
  %v4347 = vmul.f32 %v4297, 0.70710677
  %v4348 = vmul.f32 %v4302, 0.70710677
  %v4349 = vmul.f32 %v4307, 0.70710677
  %v4350 = vmul.f32 %v4312, 0.70710677
  %v4351 = vmul.f32 %v4317, 0.70710677
  %v4352 = verf.f32.pop %v4336
  %v4353 = verf.f32.pop %v4337
  %v4354 = verf.f32.pop %v4338
  %v4355 = verf.f32.pop %v4339
  %v4356 = verf.f32.pop %v4340
  %v4357 = verf.f32.pop %v4341
  %v4358 = verf.f32.pop %v4342
  %v4359 = verf.f32.pop %v4343
  %v4360 = verf.f32.pop %v4344
  %v4361 = verf.f32.pop %v4345
  %v4362 = verf.f32.pop %v4346
  %v4363 = verf.f32.pop %v4347
  %v4364 = verf.f32.pop %v4348
  %v4365 = verf.f32.pop %v4349
  %v4366 = verf.f32.pop %v4350
  %v4367 = verf.f32.pop %v4351
  %v4368 = vadd.f32 %v4352, 1.0
  %v4369 = vadd.f32 %v4353, 1.0
  %v4370 = vadd.f32 %v4354, 1.0
  %v4371 = vadd.f32 %v4355, 1.0
  %v4372 = vadd.f32 %v4356, 1.0
  %v4373 = vadd.f32 %v4357, 1.0
  %v4374 = vadd.f32 %v4358, 1.0
  %v4375 = vadd.f32 %v4359, 1.0
  %v4376 = vadd.f32 %v4360, 1.0
  %v4377 = vadd.f32 %v4361, 1.0
  %v4378 = vadd.f32 %v4362, 1.0
  %v4379 = vadd.f32 %v4363, 1.0
  %v4380 = vadd.f32 %v4364, 1.0
  %v4381 = vadd.f32 %v4365, 1.0
  %v4382 = vadd.f32 %v4366, 1.0
  %v4383 = vadd.f32 %v4367, 1.0
  %v4384 = vmul.f32 %v4320, %v4368
  %v4385 = vmul.f32 %v4321, %v4369
  %v4386 = vmul.f32 %v4322, %v4370
  %v4387 = vmul.f32 %v4323, %v4371
  %v4388 = vmul.f32 %v4324, %v4372
  %v4389 = vmul.f32 %v4325, %v4373
  %v4390 = vmul.f32 %v4326, %v4374
  %v4391 = vmul.f32 %v4327, %v4375
  %v4392 = vmul.f32 %v4328, %v4376
  %v4393 = vmul.f32 %v4329, %v4377
  %v4394 = vmul.f32 %v4330, %v4378
  %v4395 = vmul.f32 %v4331, %v4379
  %v4396 = vmul.f32 %v4332, %v4380
  %v4397 = vmul.f32 %v4333, %v4381
  %v4398 = vmul.f32 %v4334, %v4382
  %v4399 = vmul.f32 %v4335, %v4383
  %v4400 = vld [vmem:[%s12] sm:$0xff]
  %v4401 = vld [vmem:[%s12 + $0x8] sm:$0xff]
  %v4402 = vld [vmem:[%s12 + $0x10] sm:$0xff]
  %v4403 = vld [vmem:[%s12 + $0x18] sm:$0xff]
  %v4404 = vld [vmem:[%s12 + $0x20] sm:$0xff]
  %v4405 = vld [vmem:[%s12 + $0x28] sm:$0xff]
  %v4406 = vld [vmem:[%s12 + $0x30] sm:$0xff]
  %v4407 = vld [vmem:[%s12 + $0x38] sm:$0xff]
  %v4408 = vld [vmem:[%s12 + $0x40] sm:$0xff]
  %v4409 = vld [vmem:[%s12 + $0x48] sm:$0xff]
  %v4410 = vld [vmem:[%s12 + $0x50] sm:$0xff]
  %v4411 = vld [vmem:[%s12 + $0x58] sm:$0xff]
  %v4412 = vld [vmem:[%s12 + $0x60] sm:$0xff]
  %v4413 = vld [vmem:[%s12 + $0x68] sm:$0xff]
  %v4414 = vld [vmem:[%s12 + $0x70] sm:$0xff]
  %v4415 = vld [vmem:[%s12 + $0x78] sm:$0xff]
  %4416 = vmatprep.subr.mxu0 0.0
  %4417 = vmatpush1.msra.mxu0 %v4400
  %4418 = vmatprep.subr.mxu0 0.0
  %4419 = vmatpush1.msra.mxu0 %v4401
  %4420 = vmatprep.subr.mxu0 0.0
  %4421 = vmatpush1.msra.mxu0 %v4402
  %4422 = vmatprep.subr.mxu0 0.0
  %4423 = vmatpush1.msra.mxu0 %v4403
  %4424 = vmatprep.subr.mxu0 0.0
  %4425 = vmatpush1.msra.mxu0 %v4404
  %4426 = vmatprep.subr.mxu0 0.0
  %4427 = vmatpush1.msra.mxu0 %v4405
  %4428 = vmatprep.subr.mxu0 0.0
  %4429 = vmatpush1.msra.mxu0 %v4406
  %4430 = vmatprep.subr.mxu0 0.0
  %4431 = vmatpush1.msra.mxu0 %v4407
  %4432 = vmatprep.subr.mxu0 0.0
  %4433 = vmatpush1.msra.mxu0 %v4408
  %4434 = vmatprep.subr.mxu0 0.0
  %4435 = vmatpush1.msra.mxu0 %v4409
  %4436 = vmatprep.subr.mxu0 0.0
  %4437 = vmatpush1.msra.mxu0 %v4410
  %4438 = vmatprep.subr.mxu0 0.0
  %4439 = vmatpush1.msra.mxu0 %v4411
  %4440 = vmatprep.subr.mxu0 0.0
  %4441 = vmatpush1.msra.mxu0 %v4412
  %4442 = vmatprep.subr.mxu0 0.0
  %4443 = vmatpush1.msra.mxu0 %v4413
  %4444 = vmatprep.subr.mxu0 0.0
  %4445 = vmatpush1.msra.mxu0 %v4414
  %4446 = vmatprep.subr.mxu0 0.0
  %4447 = vmatpush1.msra.mxu0 %v4415
  %4448 = vmatprep.subr.mxu0 0.0
  %4449 = vmatpush1.msra.mxu0 0.0
  %4450 = vmatprep.subr.mxu0 0.0
  %4451 = vmatpush1.msra.mxu0 0.0
  %4452 = vmatprep.subr.mxu0 0.0
  %4453 = vmatpush1.msra.mxu0 0.0
  %4454 = vmatprep.subr.mxu0 0.0
  %4455 = vmatpush1.msra.mxu0 0.0
  %4456 = vmatprep.subr.mxu0 0.0
  %4457 = vmatpush1.msra.mxu0 0.0
  %4458 = vmatprep.subr.mxu0 0.0
  %4459 = vmatpush1.msra.mxu0 0.0
  %4460 = vmatprep.subr.mxu0 0.0
  %4461 = vmatpush1.msra.mxu0 0.0
  %4462 = vmatprep.subr.mxu0 0.0
  %4463 = vmatpush1.msra.mxu0 0.0
  %4464 = vmatprep.subr.mxu0 0.0
  %4465 = vmatpush1.msra.mxu0 0.0
  %4466 = vmatprep.subr.mxu0 0.0
  %4467 = vmatpush1.msra.mxu0 0.0
  %4468 = vmatprep.subr.mxu0 0.0
  %4469 = vmatpush1.msra.mxu0 0.0
  %4470 = vmatprep.subr.mxu0 0.0
  %4471 = vmatpush1.msra.mxu0 0.0
  %4472 = vmatprep.subr.mxu0 0.0
  %4473 = vmatpush1.msra.mxu0 0.0
  %4474 = vmatprep.subr.mxu0 0.0
  %4475 = vmatpush1.msra.mxu0 0.0
  %4476 = vmatprep.subr.mxu0 0.0
  %4477 = vmatpush1.msra.mxu0 0.0
  %4478 = vmatprep.subr.mxu0 0.0
  %4479 = vmatpush1.msra.mxu0 0.0
  %4480 = vmatprep.mubr.f32.mxu0 0.0
  %4481 = vmatmul.mubr.f32.gmra.mrb[0].mxu0 %v4384
  %v4482 = vpop.f32.mrb[0].mxu0
  %v4483 = vadd.f32 0.0, %v4482
  %v4484 = vpop.f32.mrb[0].mxu0
  %4485 = vmatprep.mubr.f32.mxu0 0.0
  %4486 = vmatmul.mubr.f32.gmra.mrb[0].mxu0 %v4385
  %v4487 = vpop.f32.mrb[0].mxu0
  %v4488 = vadd.f32 0.0, %v4487
  %v4489 = vpop.f32.mrb[0].mxu0
  %4490 = vmatprep.mubr.f32.mxu0 0.0
  %4491 = vmatmul.mubr.f32.gmra.mrb[0].mxu0 %v4386
  %v4492 = vpop.f32.mrb[0].mxu0
  %v4493 = vadd.f32 0.0, %v4492
  %v4494 = vpop.f32.mrb[0].mxu0
  %4495 = vmatprep.mubr.f32.mxu0 0.0
  %4496 = vmatmul.mubr.f32.gmra.mrb[0].mxu0 %v4387
  %v4497 = vpop.f32.mrb[0].mxu0
  %v4498 = vadd.f32 0.0, %v4497
  %v4499 = vpop.f32.mrb[0].mxu0
  %4500 = vmatprep.mubr.f32.mxu0 0.0
  %4501 = vmatmul.mubr.f32.gmra.mrb[0].mxu0 %v4388
  %v4502 = vpop.f32.mrb[0].mxu0
  %v4503 = vadd.f32 0.0, %v4502
  %v4504 = vpop.f32.mrb[0].mxu0
  %4505 = vmatprep.mubr.f32.mxu0 0.0
  %4506 = vmatmul.mubr.f32.gmra.mrb[0].mxu0 %v4389
  %v4507 = vpop.f32.mrb[0].mxu0
  %v4508 = vadd.f32 0.0, %v4507
  %v4509 = vpop.f32.mrb[0].mxu0
  %4510 = vmatprep.mubr.f32.mxu0 0.0
  %4511 = vmatmul.mubr.f32.gmra.mrb[0].mxu0 %v4390
  %v4512 = vpop.f32.mrb[0].mxu0
  %v4513 = vadd.f32 0.0, %v4512
  %v4514 = vpop.f32.mrb[0].mxu0
  %4515 = vmatprep.mubr.f32.mxu0 0.0
  %4516 = vmatmul.mubr.f32.gmra.mrb[0].mxu0 %v4391
  %v4517 = vpop.f32.mrb[0].mxu0
  %v4518 = vadd.f32 0.0, %v4517
  %v4519 = vpop.f32.mrb[0].mxu0
  %4520 = vmatprep.mubr.f32.mxu0 0.0
  %4521 = vmatmul.mubr.f32.gmra.mrb[0].mxu0 %v4392
  %v4522 = vpop.f32.mrb[0].mxu0
  %v4523 = vadd.f32 0.0, %v4522
  %v4524 = vpop.f32.mrb[0].mxu0
  %4525 = vmatprep.mubr.f32.mxu0 0.0
  %4526 = vmatmul.mubr.f32.gmra.mrb[0].mxu0 %v4393
  %v4527 = vpop.f32.mrb[0].mxu0
  %v4528 = vadd.f32 0.0, %v4527
  %v4529 = vpop.f32.mrb[0].mxu0
  %4530 = vmatprep.mubr.f32.mxu0 0.0
  %4531 = vmatmul.mubr.f32.gmra.mrb[0].mxu0 %v4394
  %v4532 = vpop.f32.mrb[0].mxu0
  %v4533 = vadd.f32 0.0, %v4532
  %v4534 = vpop.f32.mrb[0].mxu0
  %4535 = vmatprep.mubr.f32.mxu0 0.0
  %4536 = vmatmul.mubr.f32.gmra.mrb[0].mxu0 %v4395
  %v4537 = vpop.f32.mrb[0].mxu0
  %v4538 = vadd.f32 0.0, %v4537
  %v4539 = vpop.f32.mrb[0].mxu0
  %4540 = vmatprep.mubr.f32.mxu0 0.0
  %4541 = vmatmul.mubr.f32.gmra.mrb[0].mxu0 %v4396
  %v4542 = vpop.f32.mrb[0].mxu0
  %v4543 = vadd.f32 0.0, %v4542
  %v4544 = vpop.f32.mrb[0].mxu0
  %4545 = vmatprep.mubr.f32.mxu0 0.0
  %4546 = vmatmul.mubr.f32.gmra.mrb[0].mxu0 %v4397
  %v4547 = vpop.f32.mrb[0].mxu0
  %v4548 = vadd.f32 0.0, %v4547
  %v4549 = vpop.f32.mrb[0].mxu0
  %4550 = vmatprep.mubr.f32.mxu0 0.0
  %4551 = vmatmul.mubr.f32.gmra.mrb[0].mxu0 %v4398
  %v4552 = vpop.f32.mrb[0].mxu0
  %v4553 = vadd.f32 0.0, %v4552
  %v4554 = vpop.f32.mrb[0].mxu0
  %4555 = vmatprep.mubr.f32.mxu0 0.0
  %4556 = vmatmul.mubr.f32.gmra.mrb[0].mxu0 %v4399
  %v4557 = vpop.f32.mrb[0].mxu0
  %v4558 = vadd.f32 0.0, %v4557
  %v4559 = vpop.f32.mrb[0].mxu0
  %4560 = vdwg.mxu0
  %v4561 = vadd.f32 %v3846, %v4483
  %v4562 = vadd.f32 %v3847, %v4488
  %v4563 = vadd.f32 %v3848, %v4493
  %v4564 = vadd.f32 %v3849, %v4498
  %v4565 = vadd.f32 %v3850, %v4503
  %v4566 = vadd.f32 %v3851, %v4508
  %v4567 = vadd.f32 %v3852, %v4513
  %v4568 = vadd.f32 %v3853, %v4518
  %v4569 = vadd.f32 %v3854, %v4523
  %v4570 = vadd.f32 %v3855, %v4528
  %v4571 = vadd.f32 %v3856, %v4533
  %v4572 = vadd.f32 %v3857, %v4538
  %v4573 = vadd.f32 %v3858, %v4543
  %v4574 = vadd.f32 %v3859, %v4548
  %v4575 = vadd.f32 %v3860, %v4553
  %v4576 = vadd.f32 %v3861, %v4558
  %v4577 = vld [vmem:[%s13] sm:$0x1]
  %v4579 = vlaneseq
  %v4580 = vshrl.u32 %v4579, 7
  %v4581 = vsub.s32 0, %v4580
  %v4582 = vrot.slane %v4577, %v4581
  %v4584 = vadd.f32 %v4561, %v4582
  %v4585 = vadd.f32 %v4562, %v4582
  %v4586 = vadd.f32 %v4563, %v4582
  %v4587 = vadd.f32 %v4564, %v4582
  %v4588 = vadd.f32 %v4565, %v4582
  %v4589 = vadd.f32 %v4566, %v4582
  %v4590 = vadd.f32 %v4567, %v4582
  %v4591 = vadd.f32 %v4568, %v4582
  %v4592 = vadd.f32 %v4569, %v4582
  %v4593 = vadd.f32 %v4570, %v4582
  %v4594 = vadd.f32 %v4571, %v4582
  %v4595 = vadd.f32 %v4572, %v4582
  %v4596 = vadd.f32 %v4573, %v4582
  %v4597 = vadd.f32 %v4574, %v4582
  %v4598 = vadd.f32 %v4575, %v4582
  %v4599 = vadd.f32 %v4576, %v4582
  %4600 = vst.msk [vmem:[%s14] sm:$0xff] %vm63, %v4584
  %4601 = vst.msk [vmem:[%s14 + $0x8] sm:$0xff] %vm63, %v4585
  %4602 = vst.msk [vmem:[%s14 + $0x10] sm:$0xff] %vm63, %v4586
  %4603 = vst.msk [vmem:[%s14 + $0x18] sm:$0xff] %vm63, %v4587
  %4604 = vst.msk [vmem:[%s14 + $0x20] sm:$0xff] %vm63, %v4588
  %4605 = vst.msk [vmem:[%s14 + $0x28] sm:$0xff] %vm63, %v4589
  %4606 = vst.msk [vmem:[%s14 + $0x30] sm:$0xff] %vm63, %v4590
  %4607 = vst.msk [vmem:[%s14 + $0x38] sm:$0xff] %vm63, %v4591
  %4608 = vst.msk [vmem:[%s14 + $0x40] sm:$0xff] %vm63, %v4592
  %4609 = vst.msk [vmem:[%s14 + $0x48] sm:$0xff] %vm63, %v4593
  %4610 = vst.msk [vmem:[%s14 + $0x50] sm:$0xff] %vm63, %v4594
  %4611 = vst.msk [vmem:[%s14 + $0x58] sm:$0xff] %vm63, %v4595
  %4612 = vst.msk [vmem:[%s14 + $0x60] sm:$0xff] %vm63, %v4596
  %4613 = vst.msk [vmem:[%s14 + $0x68] sm:$0xff] %vm63, %v4597
  %4614 = vst.msk [vmem:[%s14 + $0x70] sm:$0xff] %vm63, %v4598
  %4615 = vst.msk [vmem:[%s14 + $0x78] sm:$0xff] %vm63, %v4599
  // Predicated region
  $region58: #{run.2} parent=0 // pred_check
    _
  $region59: #{run.2} parent=0 // pred_check_branch
    %4617 = sbr.rel (0) target = $region61
  $region60: #{run.2} parent=0 // pred_region
    _
  $region61: #{run.2} parent=0 // pred_fallthru
    _
  // Predicated region
  $region62: #{run.2} parent=0 // pred_check
    _
  $region63: #{run.2} parent=0 // pred_check_branch
    %4619 = sbr.rel (0) target = $region65
  $region64: #{run.2} parent=0 // pred_region
    _
  $region65: #{run.2} parent=0 // pred_fallthru
    _

</llo_original>
